<compile_context>
chip_gen: v7x
topology: tpu7x:2x2x1
jax: 0.10.0
libtpu: 0.0.40
codegen_flags: <defaults>
</compile_context>

<pallas_src>
import math

import jax
import jax.numpy as jnp
from jax import lax
from jax.experimental import pallas as pl
from jax.experimental.pallas import tpu as pltpu

# -----------------------------------------------------------------------------
# Module-consistent hyper-parameters
# -----------------------------------------------------------------------------
INPUT_SIZE = 4                   # per-step sequence feature size
IMAGE_SHAPE = (4, 16, 16)        # (C, H, W): 16 -> conv5 -> 12 -> pool -> 6 -> conv5 -> 2 -> pool -> 1
N_LABELS = 8
HIDDEN = 32                      # hidden_size argument of the module
BATCH = 2
SEQ_LEN = 8                      # padded sequence length T

LSTM_IN = INPUT_SIZE + 2         # cat([seq_x_abs, seq_x], dim=2) -> 6
K = 5                            # conv kernel size
C_IN = IMAGE_SHAPE[0]            # 4
C1 = 20                          # conv1 out channels
C2 = 50                          # conv2 out channels
H1 = IMAGE_SHAPE[1] - K + 1      # 12 (conv1 out spatial)
P1 = H1 // 2                     # 6  (pool1 out spatial)
H2 = P1 - K + 1                  # 2  (conv2 out spatial)
CONV_OUT = C2 * (H2 // 2) * (H2 // 2)   # 50
FC_IN = CONV_OUT + 2 * HIDDEN    # 114

G = 2 * HIDDEN                   # 64: combined [fwd | bwd] state / per-gate width
NGATE = 4 * G                    # 256: packed gate width
XAUG = 2 * LSTM_IN + 4           # 16: LSTM input row = [x_fwd(6) | x_bwd(6) | mask | 0 0 0]
MASK_COL = 2 * LSTM_IN           # 12: column carrying the packed-sequence mask

# Packed weight-slab row offsets (multiples of 8 so all in-kernel slices are aligned).
LSTM_WH_OFF = XAUG               # rows [16, 80): block-diagonal recurrent weights
LSTM_B_ROW = XAUG + G            # row 80: fused bias (b_ih + b_hh), both directions
C1_B_ROW = 104                   # conv1 bias row (w1m occupies rows [0, 100))
C1_TAP = 24                      # conv2 slab: per-tap row stride (20 rows used, padded to 24)
C2_B_ROW = K * K * C1_TAP        # 600: conv2 bias row
FC1_B_ROW = 120                  # fc1 bias row (fw1 occupies rows [0, 114))
FC2_B_ROW = 504                  # fc2 bias row (fw2 occupies rows [0, 500))
FC3_B_ROW = 256                  # fc3 bias row (fw3 occupies rows [0, 250))
OUT_PAD = 128                    # lane-dense padded output width


def _vmem_spec():
    return pl.BlockSpec(memory_space=pltpu.MemorySpace.VMEM)


def _sigmoid(x):
    # Exact tanh identity: one EUP op, no exp-overflow, no full-precision divide.
    return 0.5 * jnp.tanh(0.5 * x) + 0.5


# -----------------------------------------------------------------------------
# The single fused Pallas kernel: bi-LSTM + conv branch + FC head
# -----------------------------------------------------------------------------
def fused_kernel(xseq_ref, pat1_ref, lstmw_ref, c1w_ref, c2w_ref,
                 fc1_ref, fc2_ref, fc3_ref, out_ref):
    B = out_ref.shape[0]
    T = xseq_ref.shape[0] // B

    # ------------------ fused bi-directional LSTM ------------------
    wx = lstmw_ref[0:XAUG, :]                              # (16, 256) input proj (both dirs)
    wh = lstmw_ref[LSTM_WH_OFF:LSTM_WH_OFF + G, :]         # (64, 256) block-diag recurrent
    bg = lstmw_ref[LSTM_B_ROW:LSTM_B_ROW + 1, :]           # (1, 256) fused bias

    xall = xseq_ref[...]                                   # (T*B, 16); cols 12.. are mask/zeros
    xw = jnp.dot(xall, wx, preferred_element_type=jnp.float32) + bg   # (T*B, 256)
    mask_col = xall[:, MASK_COL:MASK_COL + 1]              # (T*B, 1) packed-seq validity mask

    h = jnp.zeros((B, G), jnp.float32)
    c = jnp.zeros((B, G), jnp.float32)
    for t in range(T):                    # fully unrolled; static slices only
        gates = xw[t * B:(t + 1) * B, :] + jnp.dot(
            h, wh, preferred_element_type=jnp.float32)     # (B, 256), layout [i|f|o|g]
        sg = _sigmoid(gates[:, :3 * G])                    # one sigmoid over i, f, o
        i = sg[:, 0:G]
        f = sg[:, G:2 * G]
        o = sg[:, 2 * G:3 * G]
        g = jnp.tanh(gates[:, 3 * G:])
        c_new = f * c + i * g
        h_new = o * jnp.tanh(c_new)
        keep = mask_col[t * B:(t + 1) * B, :] > 0.5        # packed-sequence emulation
        h = jnp.where(keep, h_new, h)
        c = jnp.where(keep, c_new, c)
    seq_feat = h                                           # (B, 2H) = [hx[-2] | hx[-1]]

    # ------------------ conv branch (im2col MXU matmuls) ------------------
    # conv1 + ReLU; 1/255 folded into the weights at pack time.
    a1 = jnp.maximum(
        jnp.dot(pat1_ref[...], c1w_ref[0:K * K * C_IN, :],
                preferred_element_type=jnp.float32)
        + c1w_ref[C1_B_ROW:C1_B_ROW + 1, :], 0.0)          # (4*25*4*B, C1) rows (dy,dx,t,p,b)
    Q = a1.shape[0] // 4
    # maxpool1: 2x2-pool offsets are the outermost row blocks -> max of 4 chunks.
    p1 = jnp.maximum(jnp.maximum(a1[0:Q], a1[Q:2 * Q]),
                     jnp.maximum(a1[2 * Q:3 * Q], a1[3 * Q:4 * Q]))  # (25*4*B, C1) rows (t,p,b)

    # conv2 as a 25-tap accumulation of small aligned matmuls (no im2col build).
    PB = Q // (K * K)                                      # 4*B rows per tap block
    taps = [jnp.dot(p1[t * PB:(t + 1) * PB, :],
                    c2w_ref[t * C1_TAP:t * C1_TAP + C1, :],
                    preferred_element_type=jnp.float32)
            for t in range(K * K)]
    while len(taps) > 1:                                   # balanced tree sum
        nxt = [taps[j] + taps[j + 1] for j in range(0, len(taps) - 1, 2)]
        if len(taps) % 2:
            nxt.append(taps[-1])
        taps = nxt
    a2 = jnp.maximum(taps[0] + c2w_ref[C2_B_ROW:C2_B_ROW + 1, :], 0.0)   # (4*B, C2) rows (p,b)
    # maxpool2 (2x2 map -> 1x1): max over the four conv2 output-pixel blocks.
    conv_feat = jnp.maximum(jnp.maximum(a2[0:B], a2[B:2 * B]),
                            jnp.maximum(a2[2 * B:3 * B], a2[3 * B:4 * B]))  # (B, C2)

    # ------------------ fused FC head ------------------
    feat = jnp.concatenate([seq_feat, conv_feat], axis=1)                  # (B, FC_IN)
    h1 = jnp.maximum(
        jnp.dot(feat, fc1_ref[0:FC_IN, :], preferred_element_type=jnp.float32)
        + fc1_ref[FC1_B_ROW:FC1_B_ROW + 1, :], 0.0)                        # (B, 500)
    h2 = jnp.maximum(
        jnp.dot(h1, fc2_ref[0:500, :], preferred_element_type=jnp.float32)
        + fc2_ref[FC2_B_ROW:FC2_B_ROW + 1, :], 0.0)                        # (B, 250)
    out_ref[...] = (jnp.dot(h2, fc3_ref[0:250, :], preferred_element_type=jnp.float32)
                    + fc3_ref[FC3_B_ROW:FC3_B_ROW + 1, :])                 # (B, 128) lane-dense


# -----------------------------------------------------------------------------
# Wrapper: layout plumbing only (transposes / im2col gather), then ONE pallas_call
# -----------------------------------------------------------------------------
def _prep_seq(seq_x, seq_x_abs, seq_x_len):
    combined = jnp.concatenate([seq_x_abs, seq_x], axis=2).astype(jnp.float32)  # (B, T, 6)
    B, T, _ = combined.shape
    lens = seq_x_len.astype(jnp.int32)
    # reversed *valid prefix* of each sequence (packed backward-direction semantics)
    idx = lens[:, None] - 1 - jnp.arange(T, dtype=jnp.int32)[None, :]           # (B, T)
    valid = idx >= 0
    idx3 = jnp.broadcast_to(jnp.clip(idx, 0, T - 1)[:, :, None], combined.shape)
    x_rev = jnp.where(valid[:, :, None],
                      jnp.take_along_axis(combined, idx3, axis=1), 0.0)
    return combined, x_rev, lens


def _build_conv1_patches(img_x):
    """conv1 im2col patches, rows ordered (pool_dy, pool_dx, conv2_tap, conv2_pixel, batch)."""
    B = img_x.shape[0]
    img = jnp.transpose(img_x, (0, 2, 3, 1)).astype(jnp.float32)           # (B, 16, 16, C)
    patches = jnp.concatenate(
        [img[:, ky:ky + H1, kx:kx + H1, :] for ky in range(K) for kx in range(K)],
        axis=3)                                                            # (B, 12, 12, K*K*C)
    pr = patches.reshape(B, P1, 2, P1, 2, K * K * C_IN)                    # (B, Y, dy, X, dx, lane)
    blocks = [pr[:, ky:ky + H2, :, kx:kx + H2, :, :]                       # (B, oy, dy, ox, dx, lane)
              for ky in range(K) for kx in range(K)]
    pat = jnp.stack(blocks, axis=0)                                        # (t, B, oy, dy, ox, dx, lane)
    pat = jnp.transpose(pat, (3, 5, 0, 2, 4, 1, 6))                        # (dy, dx, t, oy, ox, B, lane)
    return pat.reshape(4 * K * K * H2 * H2 * B, K * K * C_IN)              # (800, 100)


def pallas_forward(kparams, seq_x, seq_x_abs, img_x, seq_x_len):
    B, T, _ = seq_x.shape
    combined, x_rev, lens = _prep_seq(seq_x, seq_x_abs, seq_x_len)
    x_tm = jnp.transpose(jnp.concatenate([combined, x_rev], axis=2), (1, 0, 2))   # (T, B, 12)
    step_mask = (jnp.arange(T, dtype=jnp.int32)[:, None] < lens[None, :]).astype(jnp.float32)
    xseq_aug = jnp.concatenate(
        [x_tm, step_mask[:, :, None],
         jnp.zeros((T, B, XAUG - MASK_COL - 1), jnp.float32)], axis=2
    ).reshape(T * B, XAUG)                                                        # (T*B, 16)

    pat1 = _build_conv1_patches(img_x)                                            # (800, 100)

    cost = pl.CostEstimate(flops=6_000_000, transcendentals=8_192,
                           bytes_accessed=1_500_000)
    out = pl.pallas_call(
        fused_kernel,
        out_shape=jax.ShapeDtypeStruct((B, OUT_PAD), jnp.float32),
        in_specs=[_vmem_spec() for _ in range(8)],
        out_specs=_vmem_spec(),
        cost_estimate=cost,
    )(xseq_aug, pat1, kparams["lstm"], kparams["conv1"], kparams["conv2"],
      kparams["fc1"], kparams["fc2"], kparams["fc3"])
    return out[:, :N_LABELS]


# -----------------------------------------------------------------------------
# Pure-JAX reference (same math, no Pallas) for the correctness check
# -----------------------------------------------------------------------------
def reference_forward(params, seq_x, seq_x_abs, img_x, seq_x_len):
    B = seq_x.shape[0]
    combined, x_rev, lens = _prep_seq(seq_x, seq_x_abs, seq_x_len)
    x_fwd = jnp.transpose(combined, (1, 0, 2))
    x_bwd = jnp.transpose(x_rev, (1, 0, 2))

    def lstm_ref(x_tm, wih_t, whh_t, b):
        H = whh_t.shape[0]
        T = x_tm.shape[0]

        def step(carry, inp):
            h, c = carry
            x_t, t = inp
            gates = x_t @ wih_t + h @ whh_t + b
            i = jax.nn.sigmoid(gates[:, :H])
            f = jax.nn.sigmoid(gates[:, H:2 * H])
            g = jnp.tanh(gates[:, 2 * H:3 * H])
            o = jax.nn.sigmoid(gates[:, 3 * H:])
            c_new = f * c + i * g
            h_new = o * jnp.tanh(c_new)
            upd = t < lens[:, None]
            return (jnp.where(upd, h_new, h), jnp.where(upd, c_new, c)), None

        init = (jnp.zeros((B, H), jnp.float32), jnp.zeros((B, H), jnp.float32))
        (h, _), _ = lax.scan(step, init, (x_tm, jnp.arange(T, dtype=jnp.int32)))
        return h

    h_fwd = lstm_ref(x_fwd, *params["lstm_fwd"])
    h_bwd = lstm_ref(x_bwd, *params["lstm_bwd"])
    seq_feat = jnp.concatenate([h_fwd, h_bwd], axis=1)

    w1, b1, w2, b2 = params["conv"]
    img = jnp.transpose(img_x, (0, 2, 3, 1)).astype(jnp.float32) / 255.0
    dn = ("NHWC", "HWIO", "NHWC")
    a1 = jax.nn.relu(lax.conv_general_dilated(img, w1, (1, 1), "VALID",
                                              dimension_numbers=dn) + b1)
    p1 = lax.reduce_window(a1, -jnp.inf, lax.max, (1, 2, 2, 1), (1, 2, 2, 1), "VALID")
    a2 = jax.nn.relu(lax.conv_general_dilated(p1, w2, (1, 1), "VALID",
                                              dimension_numbers=dn) + b2)
    p2 = lax.reduce_window(a2, -jnp.inf, lax.max, (1, 2, 2, 1), (1, 2, 2, 1), "VALID")
    conv_flat = jnp.transpose(p2, (0, 3, 1, 2)).reshape(B, -1)

    feat = jnp.concatenate([seq_feat, conv_flat], axis=1)
    fw1, fb1, fw2, fb2, fw3, fb3 = params["fc"]
    h1 = jax.nn.relu(feat @ fw1 + fb1)
    h2 = jax.nn.relu(h1 @ fw2 + fb2)
    return h2 @ fw3 + fb3


# -----------------------------------------------------------------------------
# Deterministic synthetic parameters (PyTorch-style uniform init bounds)
# -----------------------------------------------------------------------------
def _uniform(key, shape, bound):
    return jax.random.uniform(key, shape, jnp.float32, minval=-bound, maxval=bound)


def init_params(key):
    keys = jax.random.split(key, 18)
    it = iter(keys)
    H = HIDDEN
    kb = 1.0 / math.sqrt(H)

    def lstm_dir_params():
        wih = _uniform(next(it), (4 * H, LSTM_IN), kb)   # torch layout (4H, D), gates i,f,g,o
        whh = _uniform(next(it), (4 * H, H), kb)
        b_ih = _uniform(next(it), (4 * H,), kb)
        b_hh = _uniform(next(it), (4 * H,), kb)
        return (wih.T, whh.T, (b_ih + b_hh)[None, :])    # (D,4H), (H,4H), (1,4H)

    lstm_fwd = lstm_dir_params()
    lstm_bwd = lstm_dir_params()

    cb1 = 1.0 / math.sqrt(C_IN * K * K)
    w1 = _uniform(next(it), (K, K, C_IN, C1), cb1)       # HWIO
    b1 = _uniform(next(it), (C1,), cb1).reshape(1, C1)
    cb2 = 1.0 / math.sqrt(C1 * K * K)
    w2 = _uniform(next(it), (K, K, C1, C2), cb2)
    b2 = _uniform(next(it), (C2,), cb2).reshape(1, C2)
    conv = (w1, b1, w2, b2)

    def linear(fan_in, fan_out):
        bd = 1.0 / math.sqrt(fan_in)
        w = _uniform(next(it), (fan_in, fan_out), bd)    # stored as (in, out)
        b = _uniform(next(it), (1, fan_out), bd)
        return w, b

    fw1, fb1 = linear(FC_IN, 500)
    fw2, fb2 = linear(500, 250)
    fw3, fb3 = linear(250, N_LABELS)
    fc = (fw1, fb1, fw2, fb2, fw3, fb3)

    return {"lstm_fwd": lstm_fwd, "lstm_bwd": lstm_bwd, "conv": conv, "fc": fc}


def pack_kernel_params(params):
    """Repack canonical per-direction weights into the fused-kernel slab layouts."""
    H = HIDDEN
    # torch gate order (i, f, g, o) -> packed slot order (i, f, o, g): the three
    # sigmoid gates land in one contiguous 3*G lane block, g in the last G lanes.
    slot = {0: 0, 1: 1, 2: 3, 3: 2}
    lstm_w = jnp.zeros((LSTM_B_ROW + 1, NGATE), jnp.float32)
    for d, name in enumerate(("lstm_fwd", "lstm_bwd")):
        wih_t, whh_t, b = params[name]                   # (D,4H), (H,4H), (1,4H)
        for k in range(4):
            cs = G * slot[k] + H * d                     # [gate_fwd | gate_bwd] per slot
            lstm_w = lstm_w.at[d * LSTM_IN:(d + 1) * LSTM_IN, cs:cs + H].set(
                wih_t[:, k * H:(k + 1) * H])
            lstm_w = lstm_w.at[LSTM_WH_OFF + d * H:LSTM_WH_OFF + (d + 1) * H,
                               cs:cs + H].set(whh_t[:, k * H:(k + 1) * H])
            lstm_w = lstm_w.at[LSTM_B_ROW:LSTM_B_ROW + 1, cs:cs + H].set(
                b[:, k * H:(k + 1) * H])

    w1, b1, w2, b2 = params["conv"]
    c1w = jnp.zeros((C1_B_ROW + 1, C1), jnp.float32)
    c1w = c1w.at[0:K * K * C_IN, :].set(w1.reshape(K * K * C_IN, C1) * (1.0 / 255.0))
    c1w = c1w.at[C1_B_ROW:C1_B_ROW + 1, :].set(b1)       # 1/255 folded into the weights
    c2w = jnp.zeros((C2_B_ROW + 1, C2), jnp.float32)
    for t in range(K * K):
        ky, kx = divmod(t, K)
        c2w = c2w.at[t * C1_TAP:t * C1_TAP + C1, :].set(w2[ky, kx])
    c2w = c2w.at[C2_B_ROW:C2_B_ROW + 1, :].set(b2)

    fw1, fb1, fw2, fb2, fw3, fb3 = params["fc"]
    fc1 = jnp.zeros((FC1_B_ROW + 1, 500), jnp.float32)
    fc1 = fc1.at[0:FC_IN, :].set(fw1).at[FC1_B_ROW:FC1_B_ROW + 1, :].set(fb1)
    fc2 = jnp.zeros((FC2_B_ROW + 1, 250), jnp.float32)
    fc2 = fc2.at[0:500, :].set(fw2).at[FC2_B_ROW:FC2_B_ROW + 1, :].set(fb2)
    fc3 = jnp.zeros((FC3_B_ROW + 1, OUT_PAD), jnp.float32)
    fc3 = fc3.at[0:250, 0:N_LABELS].set(fw3).at[FC3_B_ROW:FC3_B_ROW + 1,
                                                0:N_LABELS].set(fb3)

    return {"lstm": lstm_w, "conv1": c1w, "conv2": c2w,
            "fc1": fc1, "fc2": fc2, "fc3": fc3}


# -----------------------------------------------------------------------------
if __name__ == "__main__":
    root = jax.random.PRNGKey(0)
    kparam_key, ks1, ks2, kim = jax.random.split(root, 4)

    params = init_params(kparam_key)
    kparams = pack_kernel_params(params)

    seq_x = jax.random.normal(ks1, (BATCH, SEQ_LEN, INPUT_SIZE), jnp.float32)
    seq_x_abs = jax.random.normal(ks2, (BATCH, SEQ_LEN, 2), jnp.float32)
    img_x = jax.random.uniform(kim, (BATCH, *IMAGE_SHAPE), jnp.float32, 0.0, 255.0)
    seq_x_len = jnp.array([SEQ_LEN, 5], dtype=jnp.int32)   # padded lengths (packed-seq emulation)

    y = jax.jit(pallas_forward)(kparams, seq_x, seq_x_abs, img_x, seq_x_len)
    y = jax.block_until_ready(y)

    y_ref = reference_forward(params, seq_x, seq_x_abs, img_x, seq_x_len)

    assert y.shape == (BATCH, N_LABELS), y.shape
    assert jnp.allclose(y, y_ref, atol=2e-3, rtol=2e-3), (y, y_ref)
    print("KERNEL_OK")
</pallas_src>

<mosaic_0001>
module attributes {stable_mosaic.version = 11 : i64} {
  func.func @fused_kernel(%arg0: memref<16x16xf32, #tpu.memory_space<vmem>>, %arg1: memref<800x100xf32, #tpu.memory_space<vmem>>, %arg2: memref<81x256xf32, #tpu.memory_space<vmem>>, %arg3: memref<105x20xf32, #tpu.memory_space<vmem>>, %arg4: memref<601x50xf32, #tpu.memory_space<vmem>>, %arg5: memref<121x500xf32, #tpu.memory_space<vmem>>, %arg6: memref<505x250xf32, #tpu.memory_space<vmem>>, %arg7: memref<257x128xf32, #tpu.memory_space<vmem>>, %arg8: memref<2x128xf32, #tpu.memory_space<vmem>>) attributes {dimension_semantics = [], scalar_prefetch = 0 : i64, scratch_operands = 0 : i64, tpu.core_type = #tpu.core_type<tc>} {
    %c0 = arith.constant 0 : index
    %c0_0 = arith.constant 0 : index
    %0 = vector.load %arg2[%c0, %c0_0] : memref<81x256xf32, #tpu.memory_space<vmem>>, vector<16x256xf32>
    %c16 = arith.constant 16 : index
    %c0_1 = arith.constant 0 : index
    %1 = vector.load %arg2[%c16, %c0_1] : memref<81x256xf32, #tpu.memory_space<vmem>>, vector<64x256xf32>
    %c80 = arith.constant 80 : index
    %c0_2 = arith.constant 0 : index
    %2 = vector.load %arg2[%c80, %c0_2] : memref<81x256xf32, #tpu.memory_space<vmem>>, vector<1x256xf32>
    %c0_3 = arith.constant 0 : index
    %c0_4 = arith.constant 0 : index
    %3 = vector.load %arg0[%c0_3, %c0_4] : memref<16x16xf32, #tpu.memory_space<vmem>>, vector<16x16xf32>
    %cst = arith.constant dense<0.000000e+00> : vector<16x256xf32>
    %4 = tpu.matmul %3, %0, %cst {dimension_numbers = #tpu.dot_dimension_numbers<[1], [0], [0], [1], [0, 0, 1, 1], [], []>} : vector<16x16xf32>, vector<16x256xf32>, vector<16x256xf32> -> vector<16x256xf32>
    %5 = vector.broadcast %2 : vector<1x256xf32> to vector<16x256xf32>
    %6 = arith.addf %4, %5 : vector<16x256xf32>
    %7 = vector.extract_strided_slice %3 {offsets = [0, 12], sizes = [16, 1], strides = [1, 1]} : vector<16x16xf32> to vector<16x1xf32>
    %cst_5 = arith.constant 0.000000e+00 : f32
    %8 = vector.broadcast %cst_5 : f32 to vector<2x64xf32>
    %cst_6 = arith.constant 0.000000e+00 : f32
    %9 = vector.broadcast %cst_6 : f32 to vector<2x64xf32>
    %10 = vector.extract_strided_slice %6 {offsets = [0, 0], sizes = [2, 256], strides = [1, 1]} : vector<16x256xf32> to vector<2x256xf32>
    %cst_7 = arith.constant dense<0.000000e+00> : vector<2x256xf32>
    %11 = tpu.matmul %8, %1, %cst_7 {dimension_numbers = #tpu.dot_dimension_numbers<[1], [0], [0], [1], [0, 0, 1, 1], [], []>} : vector<2x64xf32>, vector<64x256xf32>, vector<2x256xf32> -> vector<2x256xf32>
    %12 = arith.addf %10, %11 : vector<2x256xf32>
    %13 = vector.extract_strided_slice %12 {offsets = [0, 0], sizes = [2, 192], strides = [1, 1]} : vector<2x256xf32> to vector<2x192xf32>
    %cst_8 = arith.constant 5.000000e-01 : f32
    %14 = vector.broadcast %cst_8 : f32 to vector<2x192xf32>
    %15 = arith.mulf %14, %13 : vector<2x192xf32>
    %16 = math.tanh %15 : vector<2x192xf32>
    %cst_9 = arith.constant 5.000000e-01 : f32
    %17 = vector.broadcast %cst_9 : f32 to vector<2x192xf32>
    %18 = arith.mulf %17, %16 : vector<2x192xf32>
    %cst_10 = arith.constant 5.000000e-01 : f32
    %19 = vector.broadcast %cst_10 : f32 to vector<2x192xf32>
    %20 = arith.addf %18, %19 : vector<2x192xf32>
    %21 = vector.extract_strided_slice %20 {offsets = [0, 0], sizes = [2, 64], strides = [1, 1]} : vector<2x192xf32> to vector<2x64xf32>
    %22 = vector.extract_strided_slice %20 {offsets = [0, 64], sizes = [2, 64], strides = [1, 1]} : vector<2x192xf32> to vector<2x64xf32>
    %23 = vector.extract_strided_slice %20 {offsets = [0, 128], sizes = [2, 64], strides = [1, 1]} : vector<2x192xf32> to vector<2x64xf32>
    %24 = vector.extract_strided_slice %12 {offsets = [0, 192], sizes = [2, 64], strides = [1, 1]} : vector<2x256xf32> to vector<2x64xf32>
    %25 = math.tanh %24 : vector<2x64xf32>
    %26 = arith.mulf %22, %9 : vector<2x64xf32>
    %27 = arith.mulf %21, %25 : vector<2x64xf32>
    %28 = arith.addf %26, %27 : vector<2x64xf32>
    %29 = math.tanh %28 : vector<2x64xf32>
    %30 = arith.mulf %23, %29 : vector<2x64xf32>
    %31 = vector.extract_strided_slice %7 {offsets = [0, 0], sizes = [2, 1], strides = [1, 1]} : vector<16x1xf32> to vector<2x1xf32>
    %cst_11 = arith.constant 5.000000e-01 : f32
    %32 = vector.broadcast %cst_11 : f32 to vector<2x1xf32>
    %33 = arith.cmpf ogt, %31, %32 : vector<2x1xf32>
    %34 = vector.shape_cast %33 : vector<2x1xi1> to vector<2x1xi1>
    %35 = vector.broadcast %34 : vector<2x1xi1> to vector<2x64xi1>
    %36 = arith.select %35, %30, %8 : vector<2x64xi1>, vector<2x64xf32>
    %37 = vector.shape_cast %33 : vector<2x1xi1> to vector<2x1xi1>
    %38 = vector.broadcast %37 : vector<2x1xi1> to vector<2x64xi1>
    %39 = arith.select %38, %28, %9 : vector<2x64xi1>, vector<2x64xf32>
    %40 = vector.extract_strided_slice %6 {offsets = [2, 0], sizes = [2, 256], strides = [1, 1]} : vector<16x256xf32> to vector<2x256xf32>
    %cst_12 = arith.constant dense<0.000000e+00> : vector<2x256xf32>
    %41 = tpu.matmul %36, %1, %cst_12 {dimension_numbers = #tpu.dot_dimension_numbers<[1], [0], [0], [1], [0, 0, 1, 1], [], []>} : vector<2x64xf32>, vector<64x256xf32>, vector<2x256xf32> -> vector<2x256xf32>
    %42 = arith.addf %40, %41 : vector<2x256xf32>
    %43 = vector.extract_strided_slice %42 {offsets = [0, 0], sizes = [2, 192], strides = [1, 1]} : vector<2x256xf32> to vector<2x192xf32>
    %cst_13 = arith.constant 5.000000e-01 : f32
    %44 = vector.broadcast %cst_13 : f32 to vector<2x192xf32>
    %45 = arith.mulf %44, %43 : vector<2x192xf32>
    %46 = math.tanh %45 : vector<2x192xf32>
    %cst_14 = arith.constant 5.000000e-01 : f32
    %47 = vector.broadcast %cst_14 : f32 to vector<2x192xf32>
    %48 = arith.mulf %47, %46 : vector<2x192xf32>
    %cst_15 = arith.constant 5.000000e-01 : f32
    %49 = vector.broadcast %cst_15 : f32 to vector<2x192xf32>
    %50 = arith.addf %48, %49 : vector<2x192xf32>
    %51 = vector.extract_strided_slice %50 {offsets = [0, 0], sizes = [2, 64], strides = [1, 1]} : vector<2x192xf32> to vector<2x64xf32>
    %52 = vector.extract_strided_slice %50 {offsets = [0, 64], sizes = [2, 64], strides = [1, 1]} : vector<2x192xf32> to vector<2x64xf32>
    %53 = vector.extract_strided_slice %50 {offsets = [0, 128], sizes = [2, 64], strides = [1, 1]} : vector<2x192xf32> to vector<2x64xf32>
    %54 = vector.extract_strided_slice %42 {offsets = [0, 192], sizes = [2, 64], strides = [1, 1]} : vector<2x256xf32> to vector<2x64xf32>
    %55 = math.tanh %54 : vector<2x64xf32>
    %56 = arith.mulf %52, %39 : vector<2x64xf32>
    %57 = arith.mulf %51, %55 : vector<2x64xf32>
    %58 = arith.addf %56, %57 : vector<2x64xf32>
    %59 = math.tanh %58 : vector<2x64xf32>
    %60 = arith.mulf %53, %59 : vector<2x64xf32>
    %61 = vector.extract_strided_slice %7 {offsets = [2, 0], sizes = [2, 1], strides = [1, 1]} : vector<16x1xf32> to vector<2x1xf32>
    %cst_16 = arith.constant 5.000000e-01 : f32
    %62 = vector.broadcast %cst_16 : f32 to vector<2x1xf32>
    %63 = arith.cmpf ogt, %61, %62 : vector<2x1xf32>
    %64 = vector.shape_cast %63 : vector<2x1xi1> to vector<2x1xi1>
    %65 = vector.broadcast %64 : vector<2x1xi1> to vector<2x64xi1>
    %66 = arith.select %65, %60, %36 : vector<2x64xi1>, vector<2x64xf32>
    %67 = vector.shape_cast %63 : vector<2x1xi1> to vector<2x1xi1>
    %68 = vector.broadcast %67 : vector<2x1xi1> to vector<2x64xi1>
    %69 = arith.select %68, %58, %39 : vector<2x64xi1>, vector<2x64xf32>
    %70 = vector.extract_strided_slice %6 {offsets = [4, 0], sizes = [2, 256], strides = [1, 1]} : vector<16x256xf32> to vector<2x256xf32>
    %cst_17 = arith.constant dense<0.000000e+00> : vector<2x256xf32>
    %71 = tpu.matmul %66, %1, %cst_17 {dimension_numbers = #tpu.dot_dimension_numbers<[1], [0], [0], [1], [0, 0, 1, 1], [], []>} : vector<2x64xf32>, vector<64x256xf32>, vector<2x256xf32> -> vector<2x256xf32>
    %72 = arith.addf %70, %71 : vector<2x256xf32>
    %73 = vector.extract_strided_slice %72 {offsets = [0, 0], sizes = [2, 192], strides = [1, 1]} : vector<2x256xf32> to vector<2x192xf32>
    %cst_18 = arith.constant 5.000000e-01 : f32
    %74 = vector.broadcast %cst_18 : f32 to vector<2x192xf32>
    %75 = arith.mulf %74, %73 : vector<2x192xf32>
    %76 = math.tanh %75 : vector<2x192xf32>
    %cst_19 = arith.constant 5.000000e-01 : f32
    %77 = vector.broadcast %cst_19 : f32 to vector<2x192xf32>
    %78 = arith.mulf %77, %76 : vector<2x192xf32>
    %cst_20 = arith.constant 5.000000e-01 : f32
    %79 = vector.broadcast %cst_20 : f32 to vector<2x192xf32>
    %80 = arith.addf %78, %79 : vector<2x192xf32>
    %81 = vector.extract_strided_slice %80 {offsets = [0, 0], sizes = [2, 64], strides = [1, 1]} : vector<2x192xf32> to vector<2x64xf32>
    %82 = vector.extract_strided_slice %80 {offsets = [0, 64], sizes = [2, 64], strides = [1, 1]} : vector<2x192xf32> to vector<2x64xf32>
    %83 = vector.extract_strided_slice %80 {offsets = [0, 128], sizes = [2, 64], strides = [1, 1]} : vector<2x192xf32> to vector<2x64xf32>
    %84 = vector.extract_strided_slice %72 {offsets = [0, 192], sizes = [2, 64], strides = [1, 1]} : vector<2x256xf32> to vector<2x64xf32>
    %85 = math.tanh %84 : vector<2x64xf32>
    %86 = arith.mulf %82, %69 : vector<2x64xf32>
    %87 = arith.mulf %81, %85 : vector<2x64xf32>
    %88 = arith.addf %86, %87 : vector<2x64xf32>
    %89 = math.tanh %88 : vector<2x64xf32>
    %90 = arith.mulf %83, %89 : vector<2x64xf32>
    %91 = vector.extract_strided_slice %7 {offsets = [4, 0], sizes = [2, 1], strides = [1, 1]} : vector<16x1xf32> to vector<2x1xf32>
    %cst_21 = arith.constant 5.000000e-01 : f32
    %92 = vector.broadcast %cst_21 : f32 to vector<2x1xf32>
    %93 = arith.cmpf ogt, %91, %92 : vector<2x1xf32>
    %94 = vector.shape_cast %93 : vector<2x1xi1> to vector<2x1xi1>
    %95 = vector.broadcast %94 : vector<2x1xi1> to vector<2x64xi1>
    %96 = arith.select %95, %90, %66 : vector<2x64xi1>, vector<2x64xf32>
    %97 = vector.shape_cast %93 : vector<2x1xi1> to vector<2x1xi1>
    %98 = vector.broadcast %97 : vector<2x1xi1> to vector<2x64xi1>
    %99 = arith.select %98, %88, %69 : vector<2x64xi1>, vector<2x64xf32>
    %100 = vector.extract_strided_slice %6 {offsets = [6, 0], sizes = [2, 256], strides = [1, 1]} : vector<16x256xf32> to vector<2x256xf32>
    %cst_22 = arith.constant dense<0.000000e+00> : vector<2x256xf32>
    %101 = tpu.matmul %96, %1, %cst_22 {dimension_numbers = #tpu.dot_dimension_numbers<[1], [0], [0], [1], [0, 0, 1, 1], [], []>} : vector<2x64xf32>, vector<64x256xf32>, vector<2x256xf32> -> vector<2x256xf32>
    %102 = arith.addf %100, %101 : vector<2x256xf32>
    %103 = vector.extract_strided_slice %102 {offsets = [0, 0], sizes = [2, 192], strides = [1, 1]} : vector<2x256xf32> to vector<2x192xf32>
    %cst_23 = arith.constant 5.000000e-01 : f32
    %104 = vector.broadcast %cst_23 : f32 to vector<2x192xf32>
    %105 = arith.mulf %104, %103 : vector<2x192xf32>
    %106 = math.tanh %105 : vector<2x192xf32>
    %cst_24 = arith.constant 5.000000e-01 : f32
    %107 = vector.broadcast %cst_24 : f32 to vector<2x192xf32>
    %108 = arith.mulf %107, %106 : vector<2x192xf32>
    %cst_25 = arith.constant 5.000000e-01 : f32
    %109 = vector.broadcast %cst_25 : f32 to vector<2x192xf32>
    %110 = arith.addf %108, %109 : vector<2x192xf32>
    %111 = vector.extract_strided_slice %110 {offsets = [0, 0], sizes = [2, 64], strides = [1, 1]} : vector<2x192xf32> to vector<2x64xf32>
    %112 = vector.extract_strided_slice %110 {offsets = [0, 64], sizes = [2, 64], strides = [1, 1]} : vector<2x192xf32> to vector<2x64xf32>
    %113 = vector.extract_strided_slice %110 {offsets = [0, 128], sizes = [2, 64], strides = [1, 1]} : vector<2x192xf32> to vector<2x64xf32>
    %114 = vector.extract_strided_slice %102 {offsets = [0, 192], sizes = [2, 64], strides = [1, 1]} : vector<2x256xf32> to vector<2x64xf32>
    %115 = math.tanh %114 : vector<2x64xf32>
    %116 = arith.mulf %112, %99 : vector<2x64xf32>
    %117 = arith.mulf %111, %115 : vector<2x64xf32>
    %118 = arith.addf %116, %117 : vector<2x64xf32>
    %119 = math.tanh %118 : vector<2x64xf32>
    %120 = arith.mulf %113, %119 : vector<2x64xf32>
    %121 = vector.extract_strided_slice %7 {offsets = [6, 0], sizes = [2, 1], strides = [1, 1]} : vector<16x1xf32> to vector<2x1xf32>
    %cst_26 = arith.constant 5.000000e-01 : f32
    %122 = vector.broadcast %cst_26 : f32 to vector<2x1xf32>
    %123 = arith.cmpf ogt, %121, %122 : vector<2x1xf32>
    %124 = vector.shape_cast %123 : vector<2x1xi1> to vector<2x1xi1>
    %125 = vector.broadcast %124 : vector<2x1xi1> to vector<2x64xi1>
    %126 = arith.select %125, %120, %96 : vector<2x64xi1>, vector<2x64xf32>
    %127 = vector.shape_cast %123 : vector<2x1xi1> to vector<2x1xi1>
    %128 = vector.broadcast %127 : vector<2x1xi1> to vector<2x64xi1>
    %129 = arith.select %128, %118, %99 : vector<2x64xi1>, vector<2x64xf32>
    %130 = vector.extract_strided_slice %6 {offsets = [8, 0], sizes = [2, 256], strides = [1, 1]} : vector<16x256xf32> to vector<2x256xf32>
    %cst_27 = arith.constant dense<0.000000e+00> : vector<2x256xf32>
    %131 = tpu.matmul %126, %1, %cst_27 {dimension_numbers = #tpu.dot_dimension_numbers<[1], [0], [0], [1], [0, 0, 1, 1], [], []>} : vector<2x64xf32>, vector<64x256xf32>, vector<2x256xf32> -> vector<2x256xf32>
    %132 = arith.addf %130, %131 : vector<2x256xf32>
    %133 = vector.extract_strided_slice %132 {offsets = [0, 0], sizes = [2, 192], strides = [1, 1]} : vector<2x256xf32> to vector<2x192xf32>
    %cst_28 = arith.constant 5.000000e-01 : f32
    %134 = vector.broadcast %cst_28 : f32 to vector<2x192xf32>
    %135 = arith.mulf %134, %133 : vector<2x192xf32>
    %136 = math.tanh %135 : vector<2x192xf32>
    %cst_29 = arith.constant 5.000000e-01 : f32
    %137 = vector.broadcast %cst_29 : f32 to vector<2x192xf32>
    %138 = arith.mulf %137, %136 : vector<2x192xf32>
    %cst_30 = arith.constant 5.000000e-01 : f32
    %139 = vector.broadcast %cst_30 : f32 to vector<2x192xf32>
    %140 = arith.addf %138, %139 : vector<2x192xf32>
    %141 = vector.extract_strided_slice %140 {offsets = [0, 0], sizes = [2, 64], strides = [1, 1]} : vector<2x192xf32> to vector<2x64xf32>
    %142 = vector.extract_strided_slice %140 {offsets = [0, 64], sizes = [2, 64], strides = [1, 1]} : vector<2x192xf32> to vector<2x64xf32>
    %143 = vector.extract_strided_slice %140 {offsets = [0, 128], sizes = [2, 64], strides = [1, 1]} : vector<2x192xf32> to vector<2x64xf32>
    %144 = vector.extract_strided_slice %132 {offsets = [0, 192], sizes = [2, 64], strides = [1, 1]} : vector<2x256xf32> to vector<2x64xf32>
    %145 = math.tanh %144 : vector<2x64xf32>
    %146 = arith.mulf %142, %129 : vector<2x64xf32>
    %147 = arith.mulf %141, %145 : vector<2x64xf32>
    %148 = arith.addf %146, %147 : vector<2x64xf32>
    %149 = math.tanh %148 : vector<2x64xf32>
    %150 = arith.mulf %143, %149 : vector<2x64xf32>
    %151 = vector.extract_strided_slice %7 {offsets = [8, 0], sizes = [2, 1], strides = [1, 1]} : vector<16x1xf32> to vector<2x1xf32>
    %cst_31 = arith.constant 5.000000e-01 : f32
    %152 = vector.broadcast %cst_31 : f32 to vector<2x1xf32>
    %153 = arith.cmpf ogt, %151, %152 : vector<2x1xf32>
    %154 = vector.shape_cast %153 : vector<2x1xi1> to vector<2x1xi1>
    %155 = vector.broadcast %154 : vector<2x1xi1> to vector<2x64xi1>
    %156 = arith.select %155, %150, %126 : vector<2x64xi1>, vector<2x64xf32>
    %157 = vector.shape_cast %153 : vector<2x1xi1> to vector<2x1xi1>
    %158 = vector.broadcast %157 : vector<2x1xi1> to vector<2x64xi1>
    %159 = arith.select %158, %148, %129 : vector<2x64xi1>, vector<2x64xf32>
    %160 = vector.extract_strided_slice %6 {offsets = [10, 0], sizes = [2, 256], strides = [1, 1]} : vector<16x256xf32> to vector<2x256xf32>
    %cst_32 = arith.constant dense<0.000000e+00> : vector<2x256xf32>
    %161 = tpu.matmul %156, %1, %cst_32 {dimension_numbers = #tpu.dot_dimension_numbers<[1], [0], [0], [1], [0, 0, 1, 1], [], []>} : vector<2x64xf32>, vector<64x256xf32>, vector<2x256xf32> -> vector<2x256xf32>
    %162 = arith.addf %160, %161 : vector<2x256xf32>
    %163 = vector.extract_strided_slice %162 {offsets = [0, 0], sizes = [2, 192], strides = [1, 1]} : vector<2x256xf32> to vector<2x192xf32>
    %cst_33 = arith.constant 5.000000e-01 : f32
    %164 = vector.broadcast %cst_33 : f32 to vector<2x192xf32>
    %165 = arith.mulf %164, %163 : vector<2x192xf32>
    %166 = math.tanh %165 : vector<2x192xf32>
    %cst_34 = arith.constant 5.000000e-01 : f32
    %167 = vector.broadcast %cst_34 : f32 to vector<2x192xf32>
    %168 = arith.mulf %167, %166 : vector<2x192xf32>
    %cst_35 = arith.constant 5.000000e-01 : f32
    %169 = vector.broadcast %cst_35 : f32 to vector<2x192xf32>
    %170 = arith.addf %168, %169 : vector<2x192xf32>
    %171 = vector.extract_strided_slice %170 {offsets = [0, 0], sizes = [2, 64], strides = [1, 1]} : vector<2x192xf32> to vector<2x64xf32>
    %172 = vector.extract_strided_slice %170 {offsets = [0, 64], sizes = [2, 64], strides = [1, 1]} : vector<2x192xf32> to vector<2x64xf32>
    %173 = vector.extract_strided_slice %170 {offsets = [0, 128], sizes = [2, 64], strides = [1, 1]} : vector<2x192xf32> to vector<2x64xf32>
    %174 = vector.extract_strided_slice %162 {offsets = [0, 192], sizes = [2, 64], strides = [1, 1]} : vector<2x256xf32> to vector<2x64xf32>
    %175 = math.tanh %174 : vector<2x64xf32>
    %176 = arith.mulf %172, %159 : vector<2x64xf32>
    %177 = arith.mulf %171, %175 : vector<2x64xf32>
    %178 = arith.addf %176, %177 : vector<2x64xf32>
    %179 = math.tanh %178 : vector<2x64xf32>
    %180 = arith.mulf %173, %179 : vector<2x64xf32>
    %181 = vector.extract_strided_slice %7 {offsets = [10, 0], sizes = [2, 1], strides = [1, 1]} : vector<16x1xf32> to vector<2x1xf32>
    %cst_36 = arith.constant 5.000000e-01 : f32
    %182 = vector.broadcast %cst_36 : f32 to vector<2x1xf32>
    %183 = arith.cmpf ogt, %181, %182 : vector<2x1xf32>
    %184 = vector.shape_cast %183 : vector<2x1xi1> to vector<2x1xi1>
    %185 = vector.broadcast %184 : vector<2x1xi1> to vector<2x64xi1>
    %186 = arith.select %185, %180, %156 : vector<2x64xi1>, vector<2x64xf32>
    %187 = vector.shape_cast %183 : vector<2x1xi1> to vector<2x1xi1>
    %188 = vector.broadcast %187 : vector<2x1xi1> to vector<2x64xi1>
    %189 = arith.select %188, %178, %159 : vector<2x64xi1>, vector<2x64xf32>
    %190 = vector.extract_strided_slice %6 {offsets = [12, 0], sizes = [2, 256], strides = [1, 1]} : vector<16x256xf32> to vector<2x256xf32>
    %cst_37 = arith.constant dense<0.000000e+00> : vector<2x256xf32>
    %191 = tpu.matmul %186, %1, %cst_37 {dimension_numbers = #tpu.dot_dimension_numbers<[1], [0], [0], [1], [0, 0, 1, 1], [], []>} : vector<2x64xf32>, vector<64x256xf32>, vector<2x256xf32> -> vector<2x256xf32>
    %192 = arith.addf %190, %191 : vector<2x256xf32>
    %193 = vector.extract_strided_slice %192 {offsets = [0, 0], sizes = [2, 192], strides = [1, 1]} : vector<2x256xf32> to vector<2x192xf32>
    %cst_38 = arith.constant 5.000000e-01 : f32
    %194 = vector.broadcast %cst_38 : f32 to vector<2x192xf32>
    %195 = arith.mulf %194, %193 : vector<2x192xf32>
    %196 = math.tanh %195 : vector<2x192xf32>
    %cst_39 = arith.constant 5.000000e-01 : f32
    %197 = vector.broadcast %cst_39 : f32 to vector<2x192xf32>
    %198 = arith.mulf %197, %196 : vector<2x192xf32>
    %cst_40 = arith.constant 5.000000e-01 : f32
    %199 = vector.broadcast %cst_40 : f32 to vector<2x192xf32>
    %200 = arith.addf %198, %199 : vector<2x192xf32>
    %201 = vector.extract_strided_slice %200 {offsets = [0, 0], sizes = [2, 64], strides = [1, 1]} : vector<2x192xf32> to vector<2x64xf32>
    %202 = vector.extract_strided_slice %200 {offsets = [0, 64], sizes = [2, 64], strides = [1, 1]} : vector<2x192xf32> to vector<2x64xf32>
    %203 = vector.extract_strided_slice %200 {offsets = [0, 128], sizes = [2, 64], strides = [1, 1]} : vector<2x192xf32> to vector<2x64xf32>
    %204 = vector.extract_strided_slice %192 {offsets = [0, 192], sizes = [2, 64], strides = [1, 1]} : vector<2x256xf32> to vector<2x64xf32>
    %205 = math.tanh %204 : vector<2x64xf32>
    %206 = arith.mulf %202, %189 : vector<2x64xf32>
    %207 = arith.mulf %201, %205 : vector<2x64xf32>
    %208 = arith.addf %206, %207 : vector<2x64xf32>
    %209 = math.tanh %208 : vector<2x64xf32>
    %210 = arith.mulf %203, %209 : vector<2x64xf32>
    %211 = vector.extract_strided_slice %7 {offsets = [12, 0], sizes = [2, 1], strides = [1, 1]} : vector<16x1xf32> to vector<2x1xf32>
    %cst_41 = arith.constant 5.000000e-01 : f32
    %212 = vector.broadcast %cst_41 : f32 to vector<2x1xf32>
    %213 = arith.cmpf ogt, %211, %212 : vector<2x1xf32>
    %214 = vector.shape_cast %213 : vector<2x1xi1> to vector<2x1xi1>
    %215 = vector.broadcast %214 : vector<2x1xi1> to vector<2x64xi1>
    %216 = arith.select %215, %210, %186 : vector<2x64xi1>, vector<2x64xf32>
    %217 = vector.shape_cast %213 : vector<2x1xi1> to vector<2x1xi1>
    %218 = vector.broadcast %217 : vector<2x1xi1> to vector<2x64xi1>
    %219 = arith.select %218, %208, %189 : vector<2x64xi1>, vector<2x64xf32>
    %220 = vector.extract_strided_slice %6 {offsets = [14, 0], sizes = [2, 256], strides = [1, 1]} : vector<16x256xf32> to vector<2x256xf32>
    %cst_42 = arith.constant dense<0.000000e+00> : vector<2x256xf32>
    %221 = tpu.matmul %216, %1, %cst_42 {dimension_numbers = #tpu.dot_dimension_numbers<[1], [0], [0], [1], [0, 0, 1, 1], [], []>} : vector<2x64xf32>, vector<64x256xf32>, vector<2x256xf32> -> vector<2x256xf32>
    %222 = arith.addf %220, %221 : vector<2x256xf32>
    %223 = vector.extract_strided_slice %222 {offsets = [0, 0], sizes = [2, 192], strides = [1, 1]} : vector<2x256xf32> to vector<2x192xf32>
    %cst_43 = arith.constant 5.000000e-01 : f32
    %224 = vector.broadcast %cst_43 : f32 to vector<2x192xf32>
    %225 = arith.mulf %224, %223 : vector<2x192xf32>
    %226 = math.tanh %225 : vector<2x192xf32>
    %cst_44 = arith.constant 5.000000e-01 : f32
    %227 = vector.broadcast %cst_44 : f32 to vector<2x192xf32>
    %228 = arith.mulf %227, %226 : vector<2x192xf32>
    %cst_45 = arith.constant 5.000000e-01 : f32
    %229 = vector.broadcast %cst_45 : f32 to vector<2x192xf32>
    %230 = arith.addf %228, %229 : vector<2x192xf32>
    %231 = vector.extract_strided_slice %230 {offsets = [0, 0], sizes = [2, 64], strides = [1, 1]} : vector<2x192xf32> to vector<2x64xf32>
    %232 = vector.extract_strided_slice %230 {offsets = [0, 64], sizes = [2, 64], strides = [1, 1]} : vector<2x192xf32> to vector<2x64xf32>
    %233 = vector.extract_strided_slice %230 {offsets = [0, 128], sizes = [2, 64], strides = [1, 1]} : vector<2x192xf32> to vector<2x64xf32>
    %234 = vector.extract_strided_slice %222 {offsets = [0, 192], sizes = [2, 64], strides = [1, 1]} : vector<2x256xf32> to vector<2x64xf32>
    %235 = math.tanh %234 : vector<2x64xf32>
    %236 = arith.mulf %232, %219 : vector<2x64xf32>
    %237 = arith.mulf %231, %235 : vector<2x64xf32>
    %238 = arith.addf %236, %237 : vector<2x64xf32>
    %239 = math.tanh %238 : vector<2x64xf32>
    %240 = arith.mulf %233, %239 : vector<2x64xf32>
    %241 = vector.extract_strided_slice %7 {offsets = [14, 0], sizes = [2, 1], strides = [1, 1]} : vector<16x1xf32> to vector<2x1xf32>
    %cst_46 = arith.constant 5.000000e-01 : f32
    %242 = vector.broadcast %cst_46 : f32 to vector<2x1xf32>
    %243 = arith.cmpf ogt, %241, %242 : vector<2x1xf32>
    %244 = vector.shape_cast %243 : vector<2x1xi1> to vector<2x1xi1>
    %245 = vector.broadcast %244 : vector<2x1xi1> to vector<2x64xi1>
    %246 = arith.select %245, %240, %216 : vector<2x64xi1>, vector<2x64xf32>
    %c0_47 = arith.constant 0 : index
    %c0_48 = arith.constant 0 : index
    %247 = vector.load %arg1[%c0_47, %c0_48] : memref<800x100xf32, #tpu.memory_space<vmem>>, vector<800x100xf32>
    %c0_49 = arith.constant 0 : index
    %c0_50 = arith.constant 0 : index
    %248 = vector.load %arg3[%c0_49, %c0_50] : memref<105x20xf32, #tpu.memory_space<vmem>>, vector<100x20xf32>
    %cst_51 = arith.constant dense<0.000000e+00> : vector<800x20xf32>
    %249 = tpu.matmul %247, %248, %cst_51 {dimension_numbers = #tpu.dot_dimension_numbers<[1], [0], [0], [1], [0, 0, 1, 1], [], []>} : vector<800x100xf32>, vector<100x20xf32>, vector<800x20xf32> -> vector<800x20xf32>
    %c104 = arith.constant 104 : index
    %c0_52 = arith.constant 0 : index
    %250 = vector.load %arg3[%c104, %c0_52] : memref<105x20xf32, #tpu.memory_space<vmem>>, vector<1x20xf32>
    %251 = vector.broadcast %250 : vector<1x20xf32> to vector<800x20xf32>
    %252 = arith.addf %249, %251 : vector<800x20xf32>
    %cst_53 = arith.constant 0.000000e+00 : f32
    %253 = vector.broadcast %cst_53 : f32 to vector<800x20xf32>
    %254 = arith.maximumf %252, %253 : vector<800x20xf32>
    %255 = vector.extract_strided_slice %254 {offsets = [0, 0], sizes = [200, 20], strides = [1, 1]} : vector<800x20xf32> to vector<200x20xf32>
    %256 = vector.extract_strided_slice %254 {offsets = [200, 0], sizes = [200, 20], strides = [1, 1]} : vector<800x20xf32> to vector<200x20xf32>
    %257 = arith.maximumf %255, %256 : vector<200x20xf32>
    %258 = vector.extract_strided_slice %254 {offsets = [400, 0], sizes = [200, 20], strides = [1, 1]} : vector<800x20xf32> to vector<200x20xf32>
    %259 = vector.extract_strided_slice %254 {offsets = [600, 0], sizes = [200, 20], strides = [1, 1]} : vector<800x20xf32> to vector<200x20xf32>
    %260 = arith.maximumf %258, %259 : vector<200x20xf32>
    %261 = arith.maximumf %257, %260 : vector<200x20xf32>
    %262 = vector.extract_strided_slice %261 {offsets = [0, 0], sizes = [8, 20], strides = [1, 1]} : vector<200x20xf32> to vector<8x20xf32>
    %c0_54 = arith.constant 0 : index
    %c0_55 = arith.constant 0 : index
    %263 = vector.load %arg4[%c0_54, %c0_55] : memref<601x50xf32, #tpu.memory_space<vmem>>, vector<20x50xf32>
    %cst_56 = arith.constant dense<0.000000e+00> : vector<8x50xf32>
    %264 = tpu.matmul %262, %263, %cst_56 {dimension_numbers = #tpu.dot_dimension_numbers<[1], [0], [0], [1], [0, 0, 1, 1], [], []>} : vector<8x20xf32>, vector<20x50xf32>, vector<8x50xf32> -> vector<8x50xf32>
    %265 = vector.extract_strided_slice %261 {offsets = [8, 0], sizes = [8, 20], strides = [1, 1]} : vector<200x20xf32> to vector<8x20xf32>
    %c24 = arith.constant 24 : index
    %c0_57 = arith.constant 0 : index
    %266 = vector.load %arg4[%c24, %c0_57] : memref<601x50xf32, #tpu.memory_space<vmem>>, vector<20x50xf32>
    %cst_58 = arith.constant dense<0.000000e+00> : vector<8x50xf32>
    %267 = tpu.matmul %265, %266, %cst_58 {dimension_numbers = #tpu.dot_dimension_numbers<[1], [0], [0], [1], [0, 0, 1, 1], [], []>} : vector<8x20xf32>, vector<20x50xf32>, vector<8x50xf32> -> vector<8x50xf32>
    %268 = vector.extract_strided_slice %261 {offsets = [16, 0], sizes = [8, 20], strides = [1, 1]} : vector<200x20xf32> to vector<8x20xf32>
    %c48 = arith.constant 48 : index
    %c0_59 = arith.constant 0 : index
    %269 = vector.load %arg4[%c48, %c0_59] : memref<601x50xf32, #tpu.memory_space<vmem>>, vector<20x50xf32>
    %cst_60 = arith.constant dense<0.000000e+00> : vector<8x50xf32>
    %270 = tpu.matmul %268, %269, %cst_60 {dimension_numbers = #tpu.dot_dimension_numbers<[1], [0], [0], [1], [0, 0, 1, 1], [], []>} : vector<8x20xf32>, vector<20x50xf32>, vector<8x50xf32> -> vector<8x50xf32>
    %271 = vector.extract_strided_slice %261 {offsets = [24, 0], sizes = [8, 20], strides = [1, 1]} : vector<200x20xf32> to vector<8x20xf32>
    %c72 = arith.constant 72 : index
    %c0_61 = arith.constant 0 : index
    %272 = vector.load %arg4[%c72, %c0_61] : memref<601x50xf32, #tpu.memory_space<vmem>>, vector<20x50xf32>
    %cst_62 = arith.constant dense<0.000000e+00> : vector<8x50xf32>
    %273 = tpu.matmul %271, %272, %cst_62 {dimension_numbers = #tpu.dot_dimension_numbers<[1], [0], [0], [1], [0, 0, 1, 1], [], []>} : vector<8x20xf32>, vector<20x50xf32>, vector<8x50xf32> -> vector<8x50xf32>
    %274 = vector.extract_strided_slice %261 {offsets = [32, 0], sizes = [8, 20], strides = [1, 1]} : vector<200x20xf32> to vector<8x20xf32>
    %c96 = arith.constant 96 : index
    %c0_63 = arith.constant 0 : index
    %275 = vector.load %arg4[%c96, %c0_63] : memref<601x50xf32, #tpu.memory_space<vmem>>, vector<20x50xf32>
    %cst_64 = arith.constant dense<0.000000e+00> : vector<8x50xf32>
    %276 = tpu.matmul %274, %275, %cst_64 {dimension_numbers = #tpu.dot_dimension_numbers<[1], [0], [0], [1], [0, 0, 1, 1], [], []>} : vector<8x20xf32>, vector<20x50xf32>, vector<8x50xf32> -> vector<8x50xf32>
    %277 = vector.extract_strided_slice %261 {offsets = [40, 0], sizes = [8, 20], strides = [1, 1]} : vector<200x20xf32> to vector<8x20xf32>
    %c120 = arith.constant 120 : index
    %c0_65 = arith.constant 0 : index
    %278 = vector.load %arg4[%c120, %c0_65] : memref<601x50xf32, #tpu.memory_space<vmem>>, vector<20x50xf32>
    %cst_66 = arith.constant dense<0.000000e+00> : vector<8x50xf32>
    %279 = tpu.matmul %277, %278, %cst_66 {dimension_numbers = #tpu.dot_dimension_numbers<[1], [0], [0], [1], [0, 0, 1, 1], [], []>} : vector<8x20xf32>, vector<20x50xf32>, vector<8x50xf32> -> vector<8x50xf32>
    %280 = vector.extract_strided_slice %261 {offsets = [48, 0], sizes = [8, 20], strides = [1, 1]} : vector<200x20xf32> to vector<8x20xf32>
    %c144 = arith.constant 144 : index
    %c0_67 = arith.constant 0 : index
    %281 = vector.load %arg4[%c144, %c0_67] : memref<601x50xf32, #tpu.memory_space<vmem>>, vector<20x50xf32>
    %cst_68 = arith.constant dense<0.000000e+00> : vector<8x50xf32>
    %282 = tpu.matmul %280, %281, %cst_68 {dimension_numbers = #tpu.dot_dimension_numbers<[1], [0], [0], [1], [0, 0, 1, 1], [], []>} : vector<8x20xf32>, vector<20x50xf32>, vector<8x50xf32> -> vector<8x50xf32>
    %283 = vector.extract_strided_slice %261 {offsets = [56, 0], sizes = [8, 20], strides = [1, 1]} : vector<200x20xf32> to vector<8x20xf32>
    %c168 = arith.constant 168 : index
    %c0_69 = arith.constant 0 : index
    %284 = vector.load %arg4[%c168, %c0_69] : memref<601x50xf32, #tpu.memory_space<vmem>>, vector<20x50xf32>
    %cst_70 = arith.constant dense<0.000000e+00> : vector<8x50xf32>
    %285 = tpu.matmul %283, %284, %cst_70 {dimension_numbers = #tpu.dot_dimension_numbers<[1], [0], [0], [1], [0, 0, 1, 1], [], []>} : vector<8x20xf32>, vector<20x50xf32>, vector<8x50xf32> -> vector<8x50xf32>
    %286 = vector.extract_strided_slice %261 {offsets = [64, 0], sizes = [8, 20], strides = [1, 1]} : vector<200x20xf32> to vector<8x20xf32>
    %c192 = arith.constant 192 : index
    %c0_71 = arith.constant 0 : index
    %287 = vector.load %arg4[%c192, %c0_71] : memref<601x50xf32, #tpu.memory_space<vmem>>, vector<20x50xf32>
    %cst_72 = arith.constant dense<0.000000e+00> : vector<8x50xf32>
    %288 = tpu.matmul %286, %287, %cst_72 {dimension_numbers = #tpu.dot_dimension_numbers<[1], [0], [0], [1], [0, 0, 1, 1], [], []>} : vector<8x20xf32>, vector<20x50xf32>, vector<8x50xf32> -> vector<8x50xf32>
    %289 = vector.extract_strided_slice %261 {offsets = [72, 0], sizes = [8, 20], strides = [1, 1]} : vector<200x20xf32> to vector<8x20xf32>
    %c216 = arith.constant 216 : index
    %c0_73 = arith.constant 0 : index
    %290 = vector.load %arg4[%c216, %c0_73] : memref<601x50xf32, #tpu.memory_space<vmem>>, vector<20x50xf32>
    %cst_74 = arith.constant dense<0.000000e+00> : vector<8x50xf32>
    %291 = tpu.matmul %289, %290, %cst_74 {dimension_numbers = #tpu.dot_dimension_numbers<[1], [0], [0], [1], [0, 0, 1, 1], [], []>} : vector<8x20xf32>, vector<20x50xf32>, vector<8x50xf32> -> vector<8x50xf32>
    %292 = vector.extract_strided_slice %261 {offsets = [80, 0], sizes = [8, 20], strides = [1, 1]} : vector<200x20xf32> to vector<8x20xf32>
    %c240 = arith.constant 240 : index
    %c0_75 = arith.constant 0 : index
    %293 = vector.load %arg4[%c240, %c0_75] : memref<601x50xf32, #tpu.memory_space<vmem>>, vector<20x50xf32>
    %cst_76 = arith.constant dense<0.000000e+00> : vector<8x50xf32>
    %294 = tpu.matmul %292, %293, %cst_76 {dimension_numbers = #tpu.dot_dimension_numbers<[1], [0], [0], [1], [0, 0, 1, 1], [], []>} : vector<8x20xf32>, vector<20x50xf32>, vector<8x50xf32> -> vector<8x50xf32>
    %295 = vector.extract_strided_slice %261 {offsets = [88, 0], sizes = [8, 20], strides = [1, 1]} : vector<200x20xf32> to vector<8x20xf32>
    %c264 = arith.constant 264 : index
    %c0_77 = arith.constant 0 : index
    %296 = vector.load %arg4[%c264, %c0_77] : memref<601x50xf32, #tpu.memory_space<vmem>>, vector<20x50xf32>
    %cst_78 = arith.constant dense<0.000000e+00> : vector<8x50xf32>
    %297 = tpu.matmul %295, %296, %cst_78 {dimension_numbers = #tpu.dot_dimension_numbers<[1], [0], [0], [1], [0, 0, 1, 1], [], []>} : vector<8x20xf32>, vector<20x50xf32>, vector<8x50xf32> -> vector<8x50xf32>
    %298 = vector.extract_strided_slice %261 {offsets = [96, 0], sizes = [8, 20], strides = [1, 1]} : vector<200x20xf32> to vector<8x20xf32>
    %c288 = arith.constant 288 : index
    %c0_79 = arith.constant 0 : index
    %299 = vector.load %arg4[%c288, %c0_79] : memref<601x50xf32, #tpu.memory_space<vmem>>, vector<20x50xf32>
    %cst_80 = arith.constant dense<0.000000e+00> : vector<8x50xf32>
    %300 = tpu.matmul %298, %299, %cst_80 {dimension_numbers = #tpu.dot_dimension_numbers<[1], [0], [0], [1], [0, 0, 1, 1], [], []>} : vector<8x20xf32>, vector<20x50xf32>, vector<8x50xf32> -> vector<8x50xf32>
    %301 = vector.extract_strided_slice %261 {offsets = [104, 0], sizes = [8, 20], strides = [1, 1]} : vector<200x20xf32> to vector<8x20xf32>
    %c312 = arith.constant 312 : index
    %c0_81 = arith.constant 0 : index
    %302 = vector.load %arg4[%c312, %c0_81] : memref<601x50xf32, #tpu.memory_space<vmem>>, vector<20x50xf32>
    %cst_82 = arith.constant dense<0.000000e+00> : vector<8x50xf32>
    %303 = tpu.matmul %301, %302, %cst_82 {dimension_numbers = #tpu.dot_dimension_numbers<[1], [0], [0], [1], [0, 0, 1, 1], [], []>} : vector<8x20xf32>, vector<20x50xf32>, vector<8x50xf32> -> vector<8x50xf32>
    %304 = vector.extract_strided_slice %261 {offsets = [112, 0], sizes = [8, 20], strides = [1, 1]} : vector<200x20xf32> to vector<8x20xf32>
    %c336 = arith.constant 336 : index
    %c0_83 = arith.constant 0 : index
    %305 = vector.load %arg4[%c336, %c0_83] : memref<601x50xf32, #tpu.memory_space<vmem>>, vector<20x50xf32>
    %cst_84 = arith.constant dense<0.000000e+00> : vector<8x50xf32>
    %306 = tpu.matmul %304, %305, %cst_84 {dimension_numbers = #tpu.dot_dimension_numbers<[1], [0], [0], [1], [0, 0, 1, 1], [], []>} : vector<8x20xf32>, vector<20x50xf32>, vector<8x50xf32> -> vector<8x50xf32>
    %307 = vector.extract_strided_slice %261 {offsets = [120, 0], sizes = [8, 20], strides = [1, 1]} : vector<200x20xf32> to vector<8x20xf32>
    %c360 = arith.constant 360 : index
    %c0_85 = arith.constant 0 : index
    %308 = vector.load %arg4[%c360, %c0_85] : memref<601x50xf32, #tpu.memory_space<vmem>>, vector<20x50xf32>
    %cst_86 = arith.constant dense<0.000000e+00> : vector<8x50xf32>
    %309 = tpu.matmul %307, %308, %cst_86 {dimension_numbers = #tpu.dot_dimension_numbers<[1], [0], [0], [1], [0, 0, 1, 1], [], []>} : vector<8x20xf32>, vector<20x50xf32>, vector<8x50xf32> -> vector<8x50xf32>
    %310 = vector.extract_strided_slice %261 {offsets = [128, 0], sizes = [8, 20], strides = [1, 1]} : vector<200x20xf32> to vector<8x20xf32>
    %c384 = arith.constant 384 : index
    %c0_87 = arith.constant 0 : index
    %311 = vector.load %arg4[%c384, %c0_87] : memref<601x50xf32, #tpu.memory_space<vmem>>, vector<20x50xf32>
    %cst_88 = arith.constant dense<0.000000e+00> : vector<8x50xf32>
    %312 = tpu.matmul %310, %311, %cst_88 {dimension_numbers = #tpu.dot_dimension_numbers<[1], [0], [0], [1], [0, 0, 1, 1], [], []>} : vector<8x20xf32>, vector<20x50xf32>, vector<8x50xf32> -> vector<8x50xf32>
    %313 = vector.extract_strided_slice %261 {offsets = [136, 0], sizes = [8, 20], strides = [1, 1]} : vector<200x20xf32> to vector<8x20xf32>
    %c408 = arith.constant 408 : index
    %c0_89 = arith.constant 0 : index
    %314 = vector.load %arg4[%c408, %c0_89] : memref<601x50xf32, #tpu.memory_space<vmem>>, vector<20x50xf32>
    %cst_90 = arith.constant dense<0.000000e+00> : vector<8x50xf32>
    %315 = tpu.matmul %313, %314, %cst_90 {dimension_numbers = #tpu.dot_dimension_numbers<[1], [0], [0], [1], [0, 0, 1, 1], [], []>} : vector<8x20xf32>, vector<20x50xf32>, vector<8x50xf32> -> vector<8x50xf32>
    %316 = vector.extract_strided_slice %261 {offsets = [144, 0], sizes = [8, 20], strides = [1, 1]} : vector<200x20xf32> to vector<8x20xf32>
    %c432 = arith.constant 432 : index
    %c0_91 = arith.constant 0 : index
    %317 = vector.load %arg4[%c432, %c0_91] : memref<601x50xf32, #tpu.memory_space<vmem>>, vector<20x50xf32>
    %cst_92 = arith.constant dense<0.000000e+00> : vector<8x50xf32>
    %318 = tpu.matmul %316, %317, %cst_92 {dimension_numbers = #tpu.dot_dimension_numbers<[1], [0], [0], [1], [0, 0, 1, 1], [], []>} : vector<8x20xf32>, vector<20x50xf32>, vector<8x50xf32> -> vector<8x50xf32>
    %319 = vector.extract_strided_slice %261 {offsets = [152, 0], sizes = [8, 20], strides = [1, 1]} : vector<200x20xf32> to vector<8x20xf32>
    %c456 = arith.constant 456 : index
    %c0_93 = arith.constant 0 : index
    %320 = vector.load %arg4[%c456, %c0_93] : memref<601x50xf32, #tpu.memory_space<vmem>>, vector<20x50xf32>
    %cst_94 = arith.constant dense<0.000000e+00> : vector<8x50xf32>
    %321 = tpu.matmul %319, %320, %cst_94 {dimension_numbers = #tpu.dot_dimension_numbers<[1], [0], [0], [1], [0, 0, 1, 1], [], []>} : vector<8x20xf32>, vector<20x50xf32>, vector<8x50xf32> -> vector<8x50xf32>
    %322 = vector.extract_strided_slice %261 {offsets = [160, 0], sizes = [8, 20], strides = [1, 1]} : vector<200x20xf32> to vector<8x20xf32>
    %c480 = arith.constant 480 : index
    %c0_95 = arith.constant 0 : index
    %323 = vector.load %arg4[%c480, %c0_95] : memref<601x50xf32, #tpu.memory_space<vmem>>, vector<20x50xf32>
    %cst_96 = arith.constant dense<0.000000e+00> : vector<8x50xf32>
    %324 = tpu.matmul %322, %323, %cst_96 {dimension_numbers = #tpu.dot_dimension_numbers<[1], [0], [0], [1], [0, 0, 1, 1], [], []>} : vector<8x20xf32>, vector<20x50xf32>, vector<8x50xf32> -> vector<8x50xf32>
    %325 = vector.extract_strided_slice %261 {offsets = [168, 0], sizes = [8, 20], strides = [1, 1]} : vector<200x20xf32> to vector<8x20xf32>
    %c504 = arith.constant 504 : index
    %c0_97 = arith.constant 0 : index
    %326 = vector.load %arg4[%c504, %c0_97] : memref<601x50xf32, #tpu.memory_space<vmem>>, vector<20x50xf32>
    %cst_98 = arith.constant dense<0.000000e+00> : vector<8x50xf32>
    %327 = tpu.matmul %325, %326, %cst_98 {dimension_numbers = #tpu.dot_dimension_numbers<[1], [0], [0], [1], [0, 0, 1, 1], [], []>} : vector<8x20xf32>, vector<20x50xf32>, vector<8x50xf32> -> vector<8x50xf32>
    %328 = vector.extract_strided_slice %261 {offsets = [176, 0], sizes = [8, 20], strides = [1, 1]} : vector<200x20xf32> to vector<8x20xf32>
    %c528 = arith.constant 528 : index
    %c0_99 = arith.constant 0 : index
    %329 = vector.load %arg4[%c528, %c0_99] : memref<601x50xf32, #tpu.memory_space<vmem>>, vector<20x50xf32>
    %cst_100 = arith.constant dense<0.000000e+00> : vector<8x50xf32>
    %330 = tpu.matmul %328, %329, %cst_100 {dimension_numbers = #tpu.dot_dimension_numbers<[1], [0], [0], [1], [0, 0, 1, 1], [], []>} : vector<8x20xf32>, vector<20x50xf32>, vector<8x50xf32> -> vector<8x50xf32>
    %331 = vector.extract_strided_slice %261 {offsets = [184, 0], sizes = [8, 20], strides = [1, 1]} : vector<200x20xf32> to vector<8x20xf32>
    %c552 = arith.constant 552 : index
    %c0_101 = arith.constant 0 : index
    %332 = vector.load %arg4[%c552, %c0_101] : memref<601x50xf32, #tpu.memory_space<vmem>>, vector<20x50xf32>
    %cst_102 = arith.constant dense<0.000000e+00> : vector<8x50xf32>
    %333 = tpu.matmul %331, %332, %cst_102 {dimension_numbers = #tpu.dot_dimension_numbers<[1], [0], [0], [1], [0, 0, 1, 1], [], []>} : vector<8x20xf32>, vector<20x50xf32>, vector<8x50xf32> -> vector<8x50xf32>
    %334 = vector.extract_strided_slice %261 {offsets = [192, 0], sizes = [8, 20], strides = [1, 1]} : vector<200x20xf32> to vector<8x20xf32>
    %c576 = arith.constant 576 : index
    %c0_103 = arith.constant 0 : index
    %335 = vector.load %arg4[%c576, %c0_103] : memref<601x50xf32, #tpu.memory_space<vmem>>, vector<20x50xf32>
    %cst_104 = arith.constant dense<0.000000e+00> : vector<8x50xf32>
    %336 = tpu.matmul %334, %335, %cst_104 {dimension_numbers = #tpu.dot_dimension_numbers<[1], [0], [0], [1], [0, 0, 1, 1], [], []>} : vector<8x20xf32>, vector<20x50xf32>, vector<8x50xf32> -> vector<8x50xf32>
    %337 = arith.addf %264, %267 : vector<8x50xf32>
    %338 = arith.addf %270, %273 : vector<8x50xf32>
    %339 = arith.addf %276, %279 : vector<8x50xf32>
    %340 = arith.addf %282, %285 : vector<8x50xf32>
    %341 = arith.addf %288, %291 : vector<8x50xf32>
    %342 = arith.addf %294, %297 : vector<8x50xf32>
    %343 = arith.addf %300, %303 : vector<8x50xf32>
    %344 = arith.addf %306, %309 : vector<8x50xf32>
    %345 = arith.addf %312, %315 : vector<8x50xf32>
    %346 = arith.addf %318, %321 : vector<8x50xf32>
    %347 = arith.addf %324, %327 : vector<8x50xf32>
    %348 = arith.addf %330, %333 : vector<8x50xf32>
    %349 = arith.addf %337, %338 : vector<8x50xf32>
    %350 = arith.addf %339, %340 : vector<8x50xf32>
    %351 = arith.addf %341, %342 : vector<8x50xf32>
    %352 = arith.addf %343, %344 : vector<8x50xf32>
    %353 = arith.addf %345, %346 : vector<8x50xf32>
    %354 = arith.addf %347, %348 : vector<8x50xf32>
    %355 = arith.addf %349, %350 : vector<8x50xf32>
    %356 = arith.addf %351, %352 : vector<8x50xf32>
    %357 = arith.addf %353, %354 : vector<8x50xf32>
    %358 = arith.addf %355, %356 : vector<8x50xf32>
    %359 = arith.addf %357, %336 : vector<8x50xf32>
    %360 = arith.addf %358, %359 : vector<8x50xf32>
    %c600 = arith.constant 600 : index
    %c0_105 = arith.constant 0 : index
    %361 = vector.load %arg4[%c600, %c0_105] : memref<601x50xf32, #tpu.memory_space<vmem>>, vector<1x50xf32>
    %362 = vector.broadcast %361 : vector<1x50xf32> to vector<8x50xf32>
    %363 = arith.addf %360, %362 : vector<8x50xf32>
    %cst_106 = arith.constant 0.000000e+00 : f32
    %364 = vector.broadcast %cst_106 : f32 to vector<8x50xf32>
    %365 = arith.maximumf %363, %364 : vector<8x50xf32>
    %366 = vector.extract_strided_slice %365 {offsets = [0, 0], sizes = [2, 50], strides = [1, 1]} : vector<8x50xf32> to vector<2x50xf32>
    %367 = vector.extract_strided_slice %365 {offsets = [2, 0], sizes = [2, 50], strides = [1, 1]} : vector<8x50xf32> to vector<2x50xf32>
    %368 = arith.maximumf %366, %367 : vector<2x50xf32>
    %369 = vector.extract_strided_slice %365 {offsets = [4, 0], sizes = [2, 50], strides = [1, 1]} : vector<8x50xf32> to vector<2x50xf32>
    %370 = vector.extract_strided_slice %365 {offsets = [6, 0], sizes = [2, 50], strides = [1, 1]} : vector<8x50xf32> to vector<2x50xf32>
    %371 = arith.maximumf %369, %370 : vector<2x50xf32>
    %372 = arith.maximumf %368, %371 : vector<2x50xf32>
    %373 = tpu.concatenate %246, %372 in 1 : vector<2x64xf32>, vector<2x50xf32> -> vector<2x114xf32>
    %c0_107 = arith.constant 0 : index
    %c0_108 = arith.constant 0 : index
    %374 = vector.load %arg5[%c0_107, %c0_108] : memref<121x500xf32, #tpu.memory_space<vmem>>, vector<114x500xf32>
    %cst_109 = arith.constant dense<0.000000e+00> : vector<2x500xf32>
    %375 = tpu.matmul %373, %374, %cst_109 {dimension_numbers = #tpu.dot_dimension_numbers<[1], [0], [0], [1], [0, 0, 1, 1], [], []>} : vector<2x114xf32>, vector<114x500xf32>, vector<2x500xf32> -> vector<2x500xf32>
    %c120_110 = arith.constant 120 : index
    %c0_111 = arith.constant 0 : index
    %376 = vector.load %arg5[%c120_110, %c0_111] : memref<121x500xf32, #tpu.memory_space<vmem>>, vector<1x500xf32>
    %377 = vector.broadcast %376 : vector<1x500xf32> to vector<2x500xf32>
    %378 = arith.addf %375, %377 : vector<2x500xf32>
    %cst_112 = arith.constant 0.000000e+00 : f32
    %379 = vector.broadcast %cst_112 : f32 to vector<2x500xf32>
    %380 = arith.maximumf %378, %379 : vector<2x500xf32>
    %c0_113 = arith.constant 0 : index
    %c0_114 = arith.constant 0 : index
    %381 = vector.load %arg6[%c0_113, %c0_114] : memref<505x250xf32, #tpu.memory_space<vmem>>, vector<500x250xf32>
    %cst_115 = arith.constant dense<0.000000e+00> : vector<2x250xf32>
    %382 = tpu.matmul %380, %381, %cst_115 {dimension_numbers = #tpu.dot_dimension_numbers<[1], [0], [0], [1], [0, 0, 1, 1], [], []>} : vector<2x500xf32>, vector<500x250xf32>, vector<2x250xf32> -> vector<2x250xf32>
    %c504_116 = arith.constant 504 : index
    %c0_117 = arith.constant 0 : index
    %383 = vector.load %arg6[%c504_116, %c0_117] : memref<505x250xf32, #tpu.memory_space<vmem>>, vector<1x250xf32>
    %384 = vector.broadcast %383 : vector<1x250xf32> to vector<2x250xf32>
    %385 = arith.addf %382, %384 : vector<2x250xf32>
    %cst_118 = arith.constant 0.000000e+00 : f32
    %386 = vector.broadcast %cst_118 : f32 to vector<2x250xf32>
    %387 = arith.maximumf %385, %386 : vector<2x250xf32>
    %c0_119 = arith.constant 0 : index
    %c0_120 = arith.constant 0 : index
    %388 = vector.load %arg7[%c0_119, %c0_120] : memref<257x128xf32, #tpu.memory_space<vmem>>, vector<250x128xf32>
    %cst_121 = arith.constant dense<0.000000e+00> : vector<2x128xf32>
    %389 = tpu.matmul %387, %388, %cst_121 {dimension_numbers = #tpu.dot_dimension_numbers<[1], [0], [0], [1], [0, 0, 1, 1], [], []>} : vector<2x250xf32>, vector<250x128xf32>, vector<2x128xf32> -> vector<2x128xf32>
    %c256 = arith.constant 256 : index
    %c0_122 = arith.constant 0 : index
    %390 = vector.load %arg7[%c256, %c0_122] : memref<257x128xf32, #tpu.memory_space<vmem>>, vector<1x128xf32>
    %391 = vector.broadcast %390 : vector<1x128xf32> to vector<2x128xf32>
    %392 = arith.addf %389, %391 : vector<2x128xf32>
    %c0_123 = arith.constant 0 : index
    %c0_124 = arith.constant 0 : index
    %393 = vector.load %arg8[%c0_123, %c0_124] : memref<2x128xf32, #tpu.memory_space<vmem>>, vector<2x128xf32>
    tpu.vector_store %arg8[%c0_123, %c0_124], %392 {strides = array<i32>} : memref<2x128xf32, #tpu.memory_space<vmem>>, vector<2x128xf32>,
    return
  }
}

</mosaic_0001>

<llo_original>
// kernel: pallas_forward.1
$region0: #{pallas_forward.1}
  #allocation0 [shape = 'u32[]', space=smem, size = 0x4, offset = 0x4, fixed_abs, tag = 'smem constant byte address 0x4 - core index']
  #allocation1 [shape = 'u32[144,128]{1,0:T(1,128)}', space=vmem, size = 0x12000, scoped, tag = 'internal scratch']
  %s0 = inlined_call_operand.vmem [shape: f32[16,16], index: 0, kind: input, shape index: {}]
  %s1 = inlined_call_operand.vmem [shape: f32[800,100], index: 1, kind: input, shape index: {}]
  %s2 = inlined_call_operand.vmem [shape: f32[81,256], index: 2, kind: input, shape index: {}]
  %s3 = inlined_call_operand.vmem [shape: f32[105,20], index: 3, kind: input, shape index: {}]
  %s4 = inlined_call_operand.vmem [shape: f32[601,50], index: 4, kind: input, shape index: {}]
  %s5 = inlined_call_operand.vmem [shape: f32[121,500], index: 5, kind: input, shape index: {}]
  %s6 = inlined_call_operand.vmem [shape: f32[505,250], index: 6, kind: input, shape index: {}]
  %s7 = inlined_call_operand.vmem [shape: f32[257,128], index: 7, kind: input, shape index: {}]
  %s8 = inlined_call_operand.hbm [shape: f32[2,128], index: 8, kind: output, shape index: {}]
  %s9 = sld [smem:[#allocation0]]
  $region42: #{pallas_forward.1} parent=0
    _
  %s11 = ssub.s32 1, %s9
  %s12 = scalar_select 0, %s11, %s9
  $region1: #{pallas_forward.1} parent=0
    #allocation2 [shape = 'u8[1024]{0}', space=vmem, size = 0x400, scoped, tag = 'output window, operand 0, single buffered']
    #allocation3 [shape = 's32[1]{0}', space=sflag, size = 0x4, scoped, tag = 'scoped memory for pallas_forward.1']
    %13 = vsyncpa [#allocation3], 0
    // Predicated region
    $region2: #{pallas_forward.1} parent=1 // pred_check
      _
    $region3: #{pallas_forward.1} parent=1 // pred_check_branch
      %15 = sbr.rel (0) target = $region5
    $region4: #{pallas_forward.1} parent=1 // pred_region
      _
    $region5: #{pallas_forward.1} parent=1 // pred_fallthru
      _
    // Predicated region
    $region6: #{pallas_forward.1} parent=1 // pred_check
      _
    $region7: #{pallas_forward.1} parent=1 // pred_check_branch
      %17 = sbr.rel (0) target = $region9
    $region8: #{pallas_forward.1} parent=1 // pred_region
      _
    $region9: #{pallas_forward.1} parent=1 // pred_fallthru
      _
    // Predicated region
    $region10: #{pallas_forward.1} parent=1 // pred_check
      _
    $region11: #{pallas_forward.1} parent=1 // pred_check_branch
      %19 = sbr.rel (0) target = $region13
    $region12: #{pallas_forward.1} parent=1 // pred_region
      _
    $region13: #{pallas_forward.1} parent=1 // pred_fallthru
      _
    // Predicated region
    $region14: #{pallas_forward.1} parent=1 // pred_check
      _
    $region15: #{pallas_forward.1} parent=1 // pred_check_branch
      %21 = sbr.rel (0) target = $region17
    $region16: #{pallas_forward.1} parent=1 // pred_region
      _
    $region17: #{pallas_forward.1} parent=1 // pred_fallthru
      _
    // Predicated region
    $region18: #{pallas_forward.1} parent=1 // pred_check
      _
    $region19: #{pallas_forward.1} parent=1 // pred_check_branch
      %23 = sbr.rel (0) target = $region21
    $region20: #{pallas_forward.1} parent=1 // pred_region
      _
    $region21: #{pallas_forward.1} parent=1 // pred_fallthru
      _
    // Predicated region
    $region22: #{pallas_forward.1} parent=1 // pred_check
      _
    $region23: #{pallas_forward.1} parent=1 // pred_check_branch
      %25 = sbr.rel (0) target = $region25
    $region24: #{pallas_forward.1} parent=1 // pred_region
      _
    $region25: #{pallas_forward.1} parent=1 // pred_fallthru
      _
    // Predicated region
    $region26: #{pallas_forward.1} parent=1 // pred_check
      _
    $region27: #{pallas_forward.1} parent=1 // pred_check_branch
      %27 = sbr.rel (0) target = $region29
    $region28: #{pallas_forward.1} parent=1 // pred_region
      _
    $region29: #{pallas_forward.1} parent=1 // pred_fallthru
      _
    // Predicated region
    $region30: #{pallas_forward.1} parent=1 // pred_check
      _
    $region31: #{pallas_forward.1} parent=1 // pred_check_branch
      %29 = sbr.rel (0) target = $region33
    $region32: #{pallas_forward.1} parent=1 // pred_region
      _
    $region33: #{pallas_forward.1} parent=1 // pred_fallthru
      _
    %v30 = vld [vmem:[%s2] sm:$0xff]
    %v31 = vld [vmem:[%s2 + $0x8] sm:$0xff]
    %v32 = vld [vmem:[%s2 + $0x10] sm:$0xff]
    %v33 = vld [vmem:[%s2 + $0x18] sm:$0xff]
    %v34 = vld [vmem:[%s2 + $0x20] sm:$0xff]
    %v35 = vld [vmem:[%s2 + $0x28] sm:$0xff]
    %v36 = vld [vmem:[%s2 + $0x30] sm:$0xff]
    %v37 = vld [vmem:[%s2 + $0x38] sm:$0xff]
    %v38 = vld [vmem:[%s2 + $0x40] sm:$0xff]
    %v39 = vld [vmem:[%s2 + $0x48] sm:$0xff]
    %v40 = vld [vmem:[%s2 + $0x50] sm:$0xff]
    %v41 = vld [vmem:[%s2 + $0x58] sm:$0xff]
    %v42 = vld [vmem:[%s2 + $0x60] sm:$0xff]
    %v43 = vld [vmem:[%s2 + $0x68] sm:$0xff]
    %v44 = vld [vmem:[%s2 + $0x70] sm:$0xff]
    %v45 = vld [vmem:[%s2 + $0x78] sm:$0xff]
    %v46 = vld [vmem:[%s2 + $0x80] sm:$0xff]
    %v47 = vld [vmem:[%s2 + $0x88] sm:$0xff]
    %v48 = vld [vmem:[%s2 + $0x90] sm:$0xff]
    %v49 = vld [vmem:[%s2 + $0x98] sm:$0xff]
    %s50 = scalar_lea.vmem %s2, 160
    %v51 = vld [vmem:[%s50] ss:$8 sm:$0x3]
    %v52 = vld [vmem:[%s0] sm:$0xff]
    %v53 = vld [vmem:[%s0 + $0x8] sm:$0xff]
    %v55 = vlaneseq
    %v56 = vshrl.u32 %v55, 7
    %v57 = vsub.s32 0, %v56
    %v58 = vrot.slane %v51, %v57
    %v59 = vlaneseq
    %v60 = vshrl.u32 %v59, 7
    %v61 = vsub.s32 1, %v60
    %v62 = vrot.slane %v51, %v61
    %vm65 = vcmask 130048
    %v67 = vsel %vm65, %v52, 0
    %v70 = vsel %vm65, %v53, 0
    %72 = vmatprep.subr.mxu0 %v31
    %73 = vmatpush1.msra.mxu0 %v30
    %74 = vmatprep.subr.mxu0 %v33
    %75 = vmatpush1.msra.mxu0 %v32
    %76 = vmatprep.subr.mxu0 0.0
    %77 = vmatpush1.msra.mxu0 0.0
    %78 = vmatprep.subr.mxu0 0.0
    %79 = vmatpush1.msra.mxu0 0.0
    %80 = vmatprep.subr.mxu0 0.0
    %81 = vmatpush1.msra.mxu0 0.0
    %82 = vmatprep.subr.mxu0 0.0
    %83 = vmatpush1.msra.mxu0 0.0
    %84 = vmatprep.subr.mxu0 0.0
    %85 = vmatpush1.msra.mxu0 0.0
    %86 = vmatprep.subr.mxu0 0.0
    %87 = vmatpush1.msra.mxu0 0.0
    %88 = vmatprep.subr.mxu0 0.0
    %89 = vmatpush1.msra.mxu0 0.0
    %90 = vmatprep.subr.mxu0 0.0
    %91 = vmatpush1.msra.mxu0 0.0
    %92 = vmatprep.subr.mxu0 0.0
    %93 = vmatpush1.msra.mxu0 0.0
    %94 = vmatprep.subr.mxu0 0.0
    %95 = vmatpush1.msra.mxu0 0.0
    %96 = vmatprep.subr.mxu0 0.0
    %97 = vmatpush1.msra.mxu0 0.0
    %98 = vmatprep.subr.mxu0 0.0
    %99 = vmatpush1.msra.mxu0 0.0
    %100 = vmatprep.subr.mxu0 0.0
    %101 = vmatpush1.msra.mxu0 0.0
    %102 = vmatprep.subr.mxu0 0.0
    %103 = vmatpush1.msra.mxu0 0.0
    %104 = vmatprep.subr.mxu0 0.0
    %105 = vmatpush1.msra.mxu0 0.0
    %106 = vmatprep.subr.mxu0 0.0
    %107 = vmatpush1.msra.mxu0 0.0
    %108 = vmatprep.subr.mxu0 0.0
    %109 = vmatpush1.msra.mxu0 0.0
    %110 = vmatprep.subr.mxu0 0.0
    %111 = vmatpush1.msra.mxu0 0.0
    %112 = vmatprep.subr.mxu0 0.0
    %113 = vmatpush1.msra.mxu0 0.0
    %114 = vmatprep.subr.mxu0 0.0
    %115 = vmatpush1.msra.mxu0 0.0
    %116 = vmatprep.subr.mxu0 0.0
    %117 = vmatpush1.msra.mxu0 0.0
    %118 = vmatprep.subr.mxu0 0.0
    %119 = vmatpush1.msra.mxu0 0.0
    %120 = vmatprep.subr.mxu0 0.0
    %121 = vmatpush1.msra.mxu0 0.0
    %122 = vmatprep.subr.mxu0 0.0
    %123 = vmatpush1.msra.mxu0 0.0
    %124 = vmatprep.subr.mxu0 0.0
    %125 = vmatpush1.msra.mxu0 0.0
    %126 = vmatprep.subr.mxu0 0.0
    %127 = vmatpush1.msra.mxu0 0.0
    %128 = vmatprep.subr.mxu0 0.0
    %129 = vmatpush1.msra.mxu0 0.0
    %130 = vmatprep.subr.mxu0 0.0
    %131 = vmatpush1.msra.mxu0 0.0
    %132 = vmatprep.subr.mxu0 0.0
    %133 = vmatpush1.msra.mxu0 0.0
    %134 = vmatprep.subr.mxu0 0.0
    %135 = vmatpush1.msra.mxu0 0.0
    %136 = vmatprep.mubr.f32.mxu0 0.0
    %137 = vmatmul.mubr.f32.gmra.mrb[0].mxu0 %v67
    %v138 = vpop.f32.mrb[0].mxu0
    %v139 = vadd.f32 %v58, %v138
    %v140 = vpop.f32.mrb[0].mxu0
    %v141 = vadd.f32 %v62, %v140
    %142 = vmatprep.mubr.f32.mxu0 0.0
    %143 = vmatmul.mubr.f32.gmra.mrb[0].mxu0 %v70
    %v144 = vpop.f32.mrb[0].mxu0
    %v145 = vadd.f32 %v58, %v144
    %v146 = vpop.f32.mrb[0].mxu0
    %v147 = vadd.f32 %v62, %v146
    %148 = vdwg.mxu0
    %vm149 = vcmask 523264
    %v151 = vsel %vm149, 0.0, 0
    %153 = vmatprep.subr.mxu0 %v35
    %154 = vmatpush1.msra.mxu0 %v34
    %155 = vmatprep.subr.mxu0 %v37
    %156 = vmatpush1.msra.mxu0 %v36
    %157 = vmatprep.subr.mxu0 %v39
    %158 = vmatpush1.msra.mxu0 %v38
    %159 = vmatprep.subr.mxu0 %v41
    %160 = vmatpush1.msra.mxu0 %v40
    %161 = vmatprep.subr.mxu0 %v43
    %162 = vmatpush1.msra.mxu0 %v42
    %163 = vmatprep.subr.mxu0 %v45
    %164 = vmatpush1.msra.mxu0 %v44
    %165 = vmatprep.subr.mxu0 %v47
    %166 = vmatpush1.msra.mxu0 %v46
    %167 = vmatprep.subr.mxu0 %v49
    %168 = vmatpush1.msra.mxu0 %v48
    %169 = vmatprep.subr.mxu0 0.0
    %170 = vmatpush1.msra.mxu0 0.0
    %171 = vmatprep.subr.mxu0 0.0
    %172 = vmatpush1.msra.mxu0 0.0
    %173 = vmatprep.subr.mxu0 0.0
    %174 = vmatpush1.msra.mxu0 0.0
    %175 = vmatprep.subr.mxu0 0.0
    %176 = vmatpush1.msra.mxu0 0.0
    %177 = vmatprep.subr.mxu0 0.0
    %178 = vmatpush1.msra.mxu0 0.0
    %179 = vmatprep.subr.mxu0 0.0
    %180 = vmatpush1.msra.mxu0 0.0
    %181 = vmatprep.subr.mxu0 0.0
    %182 = vmatpush1.msra.mxu0 0.0
    %183 = vmatprep.subr.mxu0 0.0
    %184 = vmatpush1.msra.mxu0 0.0
    %185 = vmatprep.subr.mxu0 0.0
    %186 = vmatpush1.msra.mxu0 0.0
    %187 = vmatprep.subr.mxu0 0.0
    %188 = vmatpush1.msra.mxu0 0.0
    %189 = vmatprep.subr.mxu0 0.0
    %190 = vmatpush1.msra.mxu0 0.0
    %191 = vmatprep.subr.mxu0 0.0
    %192 = vmatpush1.msra.mxu0 0.0
    %193 = vmatprep.subr.mxu0 0.0
    %194 = vmatpush1.msra.mxu0 0.0
    %195 = vmatprep.subr.mxu0 0.0
    %196 = vmatpush1.msra.mxu0 0.0
    %197 = vmatprep.subr.mxu0 0.0
    %198 = vmatpush1.msra.mxu0 0.0
    %199 = vmatprep.subr.mxu0 0.0
    %200 = vmatpush1.msra.mxu0 0.0
    %201 = vmatprep.subr.mxu0 0.0
    %202 = vmatpush1.msra.mxu0 0.0
    %203 = vmatprep.subr.mxu0 0.0
    %204 = vmatpush1.msra.mxu0 0.0
    %205 = vmatprep.subr.mxu0 0.0
    %206 = vmatpush1.msra.mxu0 0.0
    %207 = vmatprep.subr.mxu0 0.0
    %208 = vmatpush1.msra.mxu0 0.0
    %209 = vmatprep.subr.mxu0 0.0
    %210 = vmatpush1.msra.mxu0 0.0
    %211 = vmatprep.subr.mxu0 0.0
    %212 = vmatpush1.msra.mxu0 0.0
    %213 = vmatprep.subr.mxu0 0.0
    %214 = vmatpush1.msra.mxu0 0.0
    %215 = vmatprep.subr.mxu0 0.0
    %216 = vmatpush1.msra.mxu0 0.0
    %217 = vmatprep.mubr.f32.mxu0 0.0
    %218 = vmatmul.mubr.f32.gmra.mrb[0].mxu0 %v151
    %v219 = vpop.f32.mrb[0].mxu0
    %v220 = vadd.f32 0.0, %v219
    %v221 = vpop.f32.mrb[0].mxu0
    %v222 = vadd.f32 0.0, %v221
    %223 = vdwg.mxu0
    %v224 = vadd.f32 %v139, %v220
    %v225 = vadd.f32 %v141, %v222
    %v226 = vmul.f32 %v224, 0.5
    %v227 = vmul.f32 %v225, 0.5
    %v228 = vtanh.pop %v226
    %v229 = vtanh.pop %v227
    %v230 = vmul.f32 %v228, 0.5
    %v231 = vmul.f32 %v229, 0.5
    %v232 = vadd.f32 %v230, 0.5
    %v233 = vadd.f32 %v231, 0.5
    %v234 = vtanh.pop %v225
    %v235 = vmul.f32 %v232, 0.0
    %237 = vrot.lane.b32.xlu0 %v234, 64
    %v238 = vpop.permute.xlu0 %237
    %v240 = vmul.f32 %v232, %v238
    %242 = vrot.lane.b32.xlu0 %v240, 64
    %v243 = vpop.permute.xlu0 %242
    %v245 = vadd.f32 %v235, %v243
    %v246 = vtanh.pop %v245
    %248 = vrot.lane.b32.xlu0 %v246, 64
    %v249 = vpop.permute.xlu0 %248
    %v251 = vmul.f32 %v233, %v249
    %vm252 = vcmp.gt.f32.partialorder %v52, 0.5
    %v253 = vsel %vm252, 1, 0
    %254 = vset.pattern.permute.xlu0 12
    %255 = vperm.xlu0 %254, %v253
    %v256 = vpop.permute.xlu0 %255
    %vm257 = vcmp.eq.s32.totalorder %v256, 1
    %v258 = vsel %vm257, %v251, 0.0
    %v259 = vsel %vm257, %v245, 0.0
    %v261 = vsel %vm149, %v258, 0
    %263 = vmatprep.subr.mxu0 %v35
    %264 = vmatpush1.msra.mxu0 %v34
    %265 = vmatprep.subr.mxu0 %v37
    %266 = vmatpush1.msra.mxu0 %v36
    %267 = vmatprep.subr.mxu0 %v39
    %268 = vmatpush1.msra.mxu0 %v38
    %269 = vmatprep.subr.mxu0 %v41
    %270 = vmatpush1.msra.mxu0 %v40
    %271 = vmatprep.subr.mxu0 %v43
    %272 = vmatpush1.msra.mxu0 %v42
    %273 = vmatprep.subr.mxu0 %v45
    %274 = vmatpush1.msra.mxu0 %v44
    %275 = vmatprep.subr.mxu0 %v47
    %276 = vmatpush1.msra.mxu0 %v46
    %277 = vmatprep.subr.mxu0 %v49
    %278 = vmatpush1.msra.mxu0 %v48
    %279 = vmatprep.subr.mxu0 0.0
    %280 = vmatpush1.msra.mxu0 0.0
    %281 = vmatprep.subr.mxu0 0.0
    %282 = vmatpush1.msra.mxu0 0.0
    %283 = vmatprep.subr.mxu0 0.0
    %284 = vmatpush1.msra.mxu0 0.0
    %285 = vmatprep.subr.mxu0 0.0
    %286 = vmatpush1.msra.mxu0 0.0
    %287 = vmatprep.subr.mxu0 0.0
    %288 = vmatpush1.msra.mxu0 0.0
    %289 = vmatprep.subr.mxu0 0.0
    %290 = vmatpush1.msra.mxu0 0.0
    %291 = vmatprep.subr.mxu0 0.0
    %292 = vmatpush1.msra.mxu0 0.0
    %293 = vmatprep.subr.mxu0 0.0
    %294 = vmatpush1.msra.mxu0 0.0
    %295 = vmatprep.subr.mxu0 0.0
    %296 = vmatpush1.msra.mxu0 0.0
    %297 = vmatprep.subr.mxu0 0.0
    %298 = vmatpush1.msra.mxu0 0.0
    %299 = vmatprep.subr.mxu0 0.0
    %300 = vmatpush1.msra.mxu0 0.0
    %301 = vmatprep.subr.mxu0 0.0
    %302 = vmatpush1.msra.mxu0 0.0
    %303 = vmatprep.subr.mxu0 0.0
    %304 = vmatpush1.msra.mxu0 0.0
    %305 = vmatprep.subr.mxu0 0.0
    %306 = vmatpush1.msra.mxu0 0.0
    %307 = vmatprep.subr.mxu0 0.0
    %308 = vmatpush1.msra.mxu0 0.0
    %309 = vmatprep.subr.mxu0 0.0
    %310 = vmatpush1.msra.mxu0 0.0
    %311 = vmatprep.subr.mxu0 0.0
    %312 = vmatpush1.msra.mxu0 0.0
    %313 = vmatprep.subr.mxu0 0.0
    %314 = vmatpush1.msra.mxu0 0.0
    %315 = vmatprep.subr.mxu0 0.0
    %316 = vmatpush1.msra.mxu0 0.0
    %317 = vmatprep.subr.mxu0 0.0
    %318 = vmatpush1.msra.mxu0 0.0
    %319 = vmatprep.subr.mxu0 0.0
    %320 = vmatpush1.msra.mxu0 0.0
    %321 = vmatprep.subr.mxu0 0.0
    %322 = vmatpush1.msra.mxu0 0.0
    %323 = vmatprep.subr.mxu0 0.0
    %324 = vmatpush1.msra.mxu0 0.0
    %325 = vmatprep.subr.mxu0 0.0
    %326 = vmatpush1.msra.mxu0 0.0
    %327 = vmatprep.mubr.f32.mxu0 0.0
    %328 = vmatmul.mubr.f32.gmra.mrb[0].mxu0 %v261
    %v329 = vpop.f32.mrb[0].mxu0
    %v330 = vadd.f32 0.0, %v329
    %v331 = vpop.f32.mrb[0].mxu0
    %v332 = vadd.f32 0.0, %v331
    %333 = vdwg.mxu0
    %v336 = vrot.slane %v330, 6
    %v337 = vrot.slane %v332, 6
    %v340 = vadd.f32 %v139, %v336
    %v341 = vadd.f32 %v141, %v337
    %v342 = vmul.f32 %v340, 0.5
    %v343 = vmul.f32 %v341, 0.5
    %v344 = vtanh.pop %v342
    %v345 = vtanh.pop %v343
    %v346 = vmul.f32 %v344, 0.5
    %v347 = vmul.f32 %v345, 0.5
    %v348 = vadd.f32 %v346, 0.5
    %v349 = vadd.f32 %v347, 0.5
    %v350 = vtanh.pop %v341
    %v352 = vrot.slane %v259, 6
    %v354 = vmul.f32 %v348, %v352
    %356 = vrot.lane.b32.xlu0 %v350, 64
    %v357 = vpop.permute.xlu0 %356
    %v359 = vmul.f32 %v348, %v357
    %361 = vrot.lane.b32.xlu0 %v359, 64
    %v362 = vpop.permute.xlu0 %361
    %v364 = vadd.f32 %v354, %v362
    %v365 = vtanh.pop %v364
    %367 = vrot.lane.b32.xlu0 %v365, 64
    %v368 = vpop.permute.xlu0 %367
    %v370 = vmul.f32 %v349, %v368
    %v371 = vrot.slane %v258, 6
    %v373 = vsel %vm257, %v370, %v371
    %v374 = vsel %vm257, %v364, %v352
    %v376 = vrot.slane %v373, 2
    %v377 = vsel %vm149, %v376, 0
    %379 = vmatprep.subr.mxu0 %v35
    %380 = vmatpush1.msra.mxu0 %v34
    %381 = vmatprep.subr.mxu0 %v37
    %382 = vmatpush1.msra.mxu0 %v36
    %383 = vmatprep.subr.mxu0 %v39
    %384 = vmatpush1.msra.mxu0 %v38
    %385 = vmatprep.subr.mxu0 %v41
    %386 = vmatpush1.msra.mxu0 %v40
    %387 = vmatprep.subr.mxu0 %v43
    %388 = vmatpush1.msra.mxu0 %v42
    %389 = vmatprep.subr.mxu0 %v45
    %390 = vmatpush1.msra.mxu0 %v44
    %391 = vmatprep.subr.mxu0 %v47
    %392 = vmatpush1.msra.mxu0 %v46
    %393 = vmatprep.subr.mxu0 %v49
    %394 = vmatpush1.msra.mxu0 %v48
    %395 = vmatprep.subr.mxu0 0.0
    %396 = vmatpush1.msra.mxu0 0.0
    %397 = vmatprep.subr.mxu0 0.0
    %398 = vmatpush1.msra.mxu0 0.0
    %399 = vmatprep.subr.mxu0 0.0
    %400 = vmatpush1.msra.mxu0 0.0
    %401 = vmatprep.subr.mxu0 0.0
    %402 = vmatpush1.msra.mxu0 0.0
    %403 = vmatprep.subr.mxu0 0.0
    %404 = vmatpush1.msra.mxu0 0.0
    %405 = vmatprep.subr.mxu0 0.0
    %406 = vmatpush1.msra.mxu0 0.0
    %407 = vmatprep.subr.mxu0 0.0
    %408 = vmatpush1.msra.mxu0 0.0
    %409 = vmatprep.subr.mxu0 0.0
    %410 = vmatpush1.msra.mxu0 0.0
    %411 = vmatprep.subr.mxu0 0.0
    %412 = vmatpush1.msra.mxu0 0.0
    %413 = vmatprep.subr.mxu0 0.0
    %414 = vmatpush1.msra.mxu0 0.0
    %415 = vmatprep.subr.mxu0 0.0
    %416 = vmatpush1.msra.mxu0 0.0
    %417 = vmatprep.subr.mxu0 0.0
    %418 = vmatpush1.msra.mxu0 0.0
    %419 = vmatprep.subr.mxu0 0.0
    %420 = vmatpush1.msra.mxu0 0.0
    %421 = vmatprep.subr.mxu0 0.0
    %422 = vmatpush1.msra.mxu0 0.0
    %423 = vmatprep.subr.mxu0 0.0
    %424 = vmatpush1.msra.mxu0 0.0
    %425 = vmatprep.subr.mxu0 0.0
    %426 = vmatpush1.msra.mxu0 0.0
    %427 = vmatprep.subr.mxu0 0.0
    %428 = vmatpush1.msra.mxu0 0.0
    %429 = vmatprep.subr.mxu0 0.0
    %430 = vmatpush1.msra.mxu0 0.0
    %431 = vmatprep.subr.mxu0 0.0
    %432 = vmatpush1.msra.mxu0 0.0
    %433 = vmatprep.subr.mxu0 0.0
    %434 = vmatpush1.msra.mxu0 0.0
    %435 = vmatprep.subr.mxu0 0.0
    %436 = vmatpush1.msra.mxu0 0.0
    %437 = vmatprep.subr.mxu0 0.0
    %438 = vmatpush1.msra.mxu0 0.0
    %439 = vmatprep.subr.mxu0 0.0
    %440 = vmatpush1.msra.mxu0 0.0
    %441 = vmatprep.subr.mxu0 0.0
    %442 = vmatpush1.msra.mxu0 0.0
    %443 = vmatprep.mubr.f32.mxu0 0.0
    %444 = vmatmul.mubr.f32.gmra.mrb[0].mxu0 %v377
    %v445 = vpop.f32.mrb[0].mxu0
    %v446 = vadd.f32 0.0, %v445
    %v447 = vpop.f32.mrb[0].mxu0
    %v448 = vadd.f32 0.0, %v447
    %449 = vdwg.mxu0
    %v452 = vrot.slane %v446, 4
    %v453 = vrot.slane %v448, 4
    %v456 = vadd.f32 %v139, %v452
    %v457 = vadd.f32 %v141, %v453
    %v458 = vmul.f32 %v456, 0.5
    %v459 = vmul.f32 %v457, 0.5
    %v460 = vtanh.pop %v458
    %v461 = vtanh.pop %v459
    %v462 = vmul.f32 %v460, 0.5
    %v463 = vmul.f32 %v461, 0.5
    %v464 = vadd.f32 %v462, 0.5
    %v465 = vadd.f32 %v463, 0.5
    %v466 = vtanh.pop %v457
    %v468 = vrot.slane %v374, 6
    %v470 = vmul.f32 %v464, %v468
    %472 = vrot.lane.b32.xlu0 %v466, 64
    %v473 = vpop.permute.xlu0 %472
    %v475 = vmul.f32 %v464, %v473
    %477 = vrot.lane.b32.xlu0 %v475, 64
    %v478 = vpop.permute.xlu0 %477
    %v480 = vadd.f32 %v470, %v478
    %v481 = vtanh.pop %v480
    %483 = vrot.lane.b32.xlu0 %v481, 64
    %v484 = vpop.permute.xlu0 %483
    %v486 = vmul.f32 %v465, %v484
    %v487 = vrot.slane %v373, 6
    %v489 = vsel %vm257, %v486, %v487
    %v490 = vsel %vm257, %v480, %v468
    %v492 = vrot.slane %v489, 4
    %v493 = vsel %vm149, %v492, 0
    %495 = vmatprep.subr.mxu0 %v35
    %496 = vmatpush1.msra.mxu0 %v34
    %497 = vmatprep.subr.mxu0 %v37
    %498 = vmatpush1.msra.mxu0 %v36
    %499 = vmatprep.subr.mxu0 %v39
    %500 = vmatpush1.msra.mxu0 %v38
    %501 = vmatprep.subr.mxu0 %v41
    %502 = vmatpush1.msra.mxu0 %v40
    %503 = vmatprep.subr.mxu0 %v43
    %504 = vmatpush1.msra.mxu0 %v42
    %505 = vmatprep.subr.mxu0 %v45
    %506 = vmatpush1.msra.mxu0 %v44
    %507 = vmatprep.subr.mxu0 %v47
    %508 = vmatpush1.msra.mxu0 %v46
    %509 = vmatprep.subr.mxu0 %v49
    %510 = vmatpush1.msra.mxu0 %v48
    %511 = vmatprep.subr.mxu0 0.0
    %512 = vmatpush1.msra.mxu0 0.0
    %513 = vmatprep.subr.mxu0 0.0
    %514 = vmatpush1.msra.mxu0 0.0
    %515 = vmatprep.subr.mxu0 0.0
    %516 = vmatpush1.msra.mxu0 0.0
    %517 = vmatprep.subr.mxu0 0.0
    %518 = vmatpush1.msra.mxu0 0.0
    %519 = vmatprep.subr.mxu0 0.0
    %520 = vmatpush1.msra.mxu0 0.0
    %521 = vmatprep.subr.mxu0 0.0
    %522 = vmatpush1.msra.mxu0 0.0
    %523 = vmatprep.subr.mxu0 0.0
    %524 = vmatpush1.msra.mxu0 0.0
    %525 = vmatprep.subr.mxu0 0.0
    %526 = vmatpush1.msra.mxu0 0.0
    %527 = vmatprep.subr.mxu0 0.0
    %528 = vmatpush1.msra.mxu0 0.0
    %529 = vmatprep.subr.mxu0 0.0
    %530 = vmatpush1.msra.mxu0 0.0
    %531 = vmatprep.subr.mxu0 0.0
    %532 = vmatpush1.msra.mxu0 0.0
    %533 = vmatprep.subr.mxu0 0.0
    %534 = vmatpush1.msra.mxu0 0.0
    %535 = vmatprep.subr.mxu0 0.0
    %536 = vmatpush1.msra.mxu0 0.0
    %537 = vmatprep.subr.mxu0 0.0
    %538 = vmatpush1.msra.mxu0 0.0
    %539 = vmatprep.subr.mxu0 0.0
    %540 = vmatpush1.msra.mxu0 0.0
    %541 = vmatprep.subr.mxu0 0.0
    %542 = vmatpush1.msra.mxu0 0.0
    %543 = vmatprep.subr.mxu0 0.0
    %544 = vmatpush1.msra.mxu0 0.0
    %545 = vmatprep.subr.mxu0 0.0
    %546 = vmatpush1.msra.mxu0 0.0
    %547 = vmatprep.subr.mxu0 0.0
    %548 = vmatpush1.msra.mxu0 0.0
    %549 = vmatprep.subr.mxu0 0.0
    %550 = vmatpush1.msra.mxu0 0.0
    %551 = vmatprep.subr.mxu0 0.0
    %552 = vmatpush1.msra.mxu0 0.0
    %553 = vmatprep.subr.mxu0 0.0
    %554 = vmatpush1.msra.mxu0 0.0
    %555 = vmatprep.subr.mxu0 0.0
    %556 = vmatpush1.msra.mxu0 0.0
    %557 = vmatprep.subr.mxu0 0.0
    %558 = vmatpush1.msra.mxu0 0.0
    %559 = vmatprep.mubr.f32.mxu0 0.0
    %560 = vmatmul.mubr.f32.gmra.mrb[0].mxu0 %v493
    %v561 = vpop.f32.mrb[0].mxu0
    %v562 = vadd.f32 0.0, %v561
    %v563 = vpop.f32.mrb[0].mxu0
    %v564 = vadd.f32 0.0, %v563
    %565 = vdwg.mxu0
    %v568 = vrot.slane %v562, 2
    %v569 = vrot.slane %v564, 2
    %v572 = vadd.f32 %v139, %v568
    %v573 = vadd.f32 %v141, %v569
    %v574 = vmul.f32 %v572, 0.5
    %v575 = vmul.f32 %v573, 0.5
    %v576 = vtanh.pop %v574
    %v577 = vtanh.pop %v575
    %v578 = vmul.f32 %v576, 0.5
    %v579 = vmul.f32 %v577, 0.5
    %v580 = vadd.f32 %v578, 0.5
    %v581 = vadd.f32 %v579, 0.5
    %v582 = vtanh.pop %v573
    %v584 = vrot.slane %v490, 6
    %v586 = vmul.f32 %v580, %v584
    %588 = vrot.lane.b32.xlu0 %v582, 64
    %v589 = vpop.permute.xlu0 %588
    %v591 = vmul.f32 %v580, %v589
    %593 = vrot.lane.b32.xlu0 %v591, 64
    %v594 = vpop.permute.xlu0 %593
    %v596 = vadd.f32 %v586, %v594
    %v597 = vtanh.pop %v596
    %599 = vrot.lane.b32.xlu0 %v597, 64
    %v600 = vpop.permute.xlu0 %599
    %v602 = vmul.f32 %v581, %v600
    %v603 = vrot.slane %v489, 6
    %v605 = vsel %vm257, %v602, %v603
    %v606 = vsel %vm257, %v596, %v584
    %v608 = vrot.slane %v605, 6
    %v609 = vsel %vm149, %v608, 0
    %611 = vmatprep.subr.mxu0 %v35
    %612 = vmatpush1.msra.mxu0 %v34
    %613 = vmatprep.subr.mxu0 %v37
    %614 = vmatpush1.msra.mxu0 %v36
    %615 = vmatprep.subr.mxu0 %v39
    %616 = vmatpush1.msra.mxu0 %v38
    %617 = vmatprep.subr.mxu0 %v41
    %618 = vmatpush1.msra.mxu0 %v40
    %619 = vmatprep.subr.mxu0 %v43
    %620 = vmatpush1.msra.mxu0 %v42
    %621 = vmatprep.subr.mxu0 %v45
    %622 = vmatpush1.msra.mxu0 %v44
    %623 = vmatprep.subr.mxu0 %v47
    %624 = vmatpush1.msra.mxu0 %v46
    %625 = vmatprep.subr.mxu0 %v49
    %626 = vmatpush1.msra.mxu0 %v48
    %627 = vmatprep.subr.mxu0 0.0
    %628 = vmatpush1.msra.mxu0 0.0
    %629 = vmatprep.subr.mxu0 0.0
    %630 = vmatpush1.msra.mxu0 0.0
    %631 = vmatprep.subr.mxu0 0.0
    %632 = vmatpush1.msra.mxu0 0.0
    %633 = vmatprep.subr.mxu0 0.0
    %634 = vmatpush1.msra.mxu0 0.0
    %635 = vmatprep.subr.mxu0 0.0
    %636 = vmatpush1.msra.mxu0 0.0
    %637 = vmatprep.subr.mxu0 0.0
    %638 = vmatpush1.msra.mxu0 0.0
    %639 = vmatprep.subr.mxu0 0.0
    %640 = vmatpush1.msra.mxu0 0.0
    %641 = vmatprep.subr.mxu0 0.0
    %642 = vmatpush1.msra.mxu0 0.0
    %643 = vmatprep.subr.mxu0 0.0
    %644 = vmatpush1.msra.mxu0 0.0
    %645 = vmatprep.subr.mxu0 0.0
    %646 = vmatpush1.msra.mxu0 0.0
    %647 = vmatprep.subr.mxu0 0.0
    %648 = vmatpush1.msra.mxu0 0.0
    %649 = vmatprep.subr.mxu0 0.0
    %650 = vmatpush1.msra.mxu0 0.0
    %651 = vmatprep.subr.mxu0 0.0
    %652 = vmatpush1.msra.mxu0 0.0
    %653 = vmatprep.subr.mxu0 0.0
    %654 = vmatpush1.msra.mxu0 0.0
    %655 = vmatprep.subr.mxu0 0.0
    %656 = vmatpush1.msra.mxu0 0.0
    %657 = vmatprep.subr.mxu0 0.0
    %658 = vmatpush1.msra.mxu0 0.0
    %659 = vmatprep.subr.mxu0 0.0
    %660 = vmatpush1.msra.mxu0 0.0
    %661 = vmatprep.subr.mxu0 0.0
    %662 = vmatpush1.msra.mxu0 0.0
    %663 = vmatprep.subr.mxu0 0.0
    %664 = vmatpush1.msra.mxu0 0.0
    %665 = vmatprep.subr.mxu0 0.0
    %666 = vmatpush1.msra.mxu0 0.0
    %667 = vmatprep.subr.mxu0 0.0
    %668 = vmatpush1.msra.mxu0 0.0
    %669 = vmatprep.subr.mxu0 0.0
    %670 = vmatpush1.msra.mxu0 0.0
    %671 = vmatprep.subr.mxu0 0.0
    %672 = vmatpush1.msra.mxu0 0.0
    %673 = vmatprep.subr.mxu0 0.0
    %674 = vmatpush1.msra.mxu0 0.0
    %675 = vmatprep.mubr.f32.mxu0 0.0
    %676 = vmatmul.mubr.f32.gmra.mrb[0].mxu0 %v609
    %v677 = vpop.f32.mrb[0].mxu0
    %v678 = vadd.f32 0.0, %v677
    %v679 = vpop.f32.mrb[0].mxu0
    %v680 = vadd.f32 0.0, %v679
    %681 = vdwg.mxu0
    %v682 = vadd.f32 %v145, %v678
    %v683 = vadd.f32 %v147, %v680
    %v684 = vmul.f32 %v682, 0.5
    %v685 = vmul.f32 %v683, 0.5
    %v686 = vtanh.pop %v684
    %v687 = vtanh.pop %v685
    %v688 = vmul.f32 %v686, 0.5
    %v689 = vmul.f32 %v687, 0.5
    %v690 = vadd.f32 %v688, 0.5
    %v691 = vadd.f32 %v689, 0.5
    %v692 = vtanh.pop %v683
    %v694 = vrot.slane %v606, 6
    %v696 = vmul.f32 %v690, %v694
    %698 = vrot.lane.b32.xlu0 %v692, 64
    %v699 = vpop.permute.xlu0 %698
    %v701 = vmul.f32 %v690, %v699
    %703 = vrot.lane.b32.xlu0 %v701, 64
    %v704 = vpop.permute.xlu0 %703
    %v706 = vadd.f32 %v696, %v704
    %v707 = vtanh.pop %v706
    %709 = vrot.lane.b32.xlu0 %v707, 64
    %v710 = vpop.permute.xlu0 %709
    %v712 = vmul.f32 %v691, %v710
    %vm713 = vcmp.gt.f32.partialorder %v53, 0.5
    %v714 = vsel %vm713, 1, 0
    %715 = vset.pattern.permute.xlu0 12
    %716 = vperm.xlu0 %715, %v714
    %v717 = vpop.permute.xlu0 %716
    %vm718 = vcmp.eq.s32.totalorder %v717, 1
    %v720 = vsel %vm718, %v712, %v608
    %v721 = vsel %vm718, %v706, %v694
    %v723 = vsel %vm149, %v720, 0
    %725 = vmatprep.subr.mxu0 %v35
    %726 = vmatpush1.msra.mxu0 %v34
    %727 = vmatprep.subr.mxu0 %v37
    %728 = vmatpush1.msra.mxu0 %v36
    %729 = vmatprep.subr.mxu0 %v39
    %730 = vmatpush1.msra.mxu0 %v38
    %731 = vmatprep.subr.mxu0 %v41
    %732 = vmatpush1.msra.mxu0 %v40
    %733 = vmatprep.subr.mxu0 %v43
    %734 = vmatpush1.msra.mxu0 %v42
    %735 = vmatprep.subr.mxu0 %v45
    %736 = vmatpush1.msra.mxu0 %v44
    %737 = vmatprep.subr.mxu0 %v47
    %738 = vmatpush1.msra.mxu0 %v46
    %739 = vmatprep.subr.mxu0 %v49
    %740 = vmatpush1.msra.mxu0 %v48
    %741 = vmatprep.subr.mxu0 0.0
    %742 = vmatpush1.msra.mxu0 0.0
    %743 = vmatprep.subr.mxu0 0.0
    %744 = vmatpush1.msra.mxu0 0.0
    %745 = vmatprep.subr.mxu0 0.0
    %746 = vmatpush1.msra.mxu0 0.0
    %747 = vmatprep.subr.mxu0 0.0
    %748 = vmatpush1.msra.mxu0 0.0
    %749 = vmatprep.subr.mxu0 0.0
    %750 = vmatpush1.msra.mxu0 0.0
    %751 = vmatprep.subr.mxu0 0.0
    %752 = vmatpush1.msra.mxu0 0.0
    %753 = vmatprep.subr.mxu0 0.0
    %754 = vmatpush1.msra.mxu0 0.0
    %755 = vmatprep.subr.mxu0 0.0
    %756 = vmatpush1.msra.mxu0 0.0
    %757 = vmatprep.subr.mxu0 0.0
    %758 = vmatpush1.msra.mxu0 0.0
    %759 = vmatprep.subr.mxu0 0.0
    %760 = vmatpush1.msra.mxu0 0.0
    %761 = vmatprep.subr.mxu0 0.0
    %762 = vmatpush1.msra.mxu0 0.0
    %763 = vmatprep.subr.mxu0 0.0
    %764 = vmatpush1.msra.mxu0 0.0
    %765 = vmatprep.subr.mxu0 0.0
    %766 = vmatpush1.msra.mxu0 0.0
    %767 = vmatprep.subr.mxu0 0.0
    %768 = vmatpush1.msra.mxu0 0.0
    %769 = vmatprep.subr.mxu0 0.0
    %770 = vmatpush1.msra.mxu0 0.0
    %771 = vmatprep.subr.mxu0 0.0
    %772 = vmatpush1.msra.mxu0 0.0
    %773 = vmatprep.subr.mxu0 0.0
    %774 = vmatpush1.msra.mxu0 0.0
    %775 = vmatprep.subr.mxu0 0.0
    %776 = vmatpush1.msra.mxu0 0.0
    %777 = vmatprep.subr.mxu0 0.0
    %778 = vmatpush1.msra.mxu0 0.0
    %779 = vmatprep.subr.mxu0 0.0
    %780 = vmatpush1.msra.mxu0 0.0
    %781 = vmatprep.subr.mxu0 0.0
    %782 = vmatpush1.msra.mxu0 0.0
    %783 = vmatprep.subr.mxu0 0.0
    %784 = vmatpush1.msra.mxu0 0.0
    %785 = vmatprep.subr.mxu0 0.0
    %786 = vmatpush1.msra.mxu0 0.0
    %787 = vmatprep.subr.mxu0 0.0
    %788 = vmatpush1.msra.mxu0 0.0
    %789 = vmatprep.mubr.f32.mxu0 0.0
    %790 = vmatmul.mubr.f32.gmra.mrb[0].mxu0 %v723
    %v791 = vpop.f32.mrb[0].mxu0
    %v792 = vadd.f32 0.0, %v791
    %v793 = vpop.f32.mrb[0].mxu0
    %v794 = vadd.f32 0.0, %v793
    %795 = vdwg.mxu0
    %v798 = vrot.slane %v792, 6
    %v799 = vrot.slane %v794, 6
    %v802 = vadd.f32 %v145, %v798
    %v803 = vadd.f32 %v147, %v799
    %v804 = vmul.f32 %v802, 0.5
    %v805 = vmul.f32 %v803, 0.5
    %v806 = vtanh.pop %v804
    %v807 = vtanh.pop %v805
    %v808 = vmul.f32 %v806, 0.5
    %v809 = vmul.f32 %v807, 0.5
    %v810 = vadd.f32 %v808, 0.5
    %v811 = vadd.f32 %v809, 0.5
    %v812 = vtanh.pop %v803
    %v814 = vrot.slane %v721, 6
    %v816 = vmul.f32 %v810, %v814
    %818 = vrot.lane.b32.xlu0 %v812, 64
    %v819 = vpop.permute.xlu0 %818
    %v821 = vmul.f32 %v810, %v819
    %823 = vrot.lane.b32.xlu0 %v821, 64
    %v824 = vpop.permute.xlu0 %823
    %v826 = vadd.f32 %v816, %v824
    %v827 = vtanh.pop %v826
    %829 = vrot.lane.b32.xlu0 %v827, 64
    %v830 = vpop.permute.xlu0 %829
    %v832 = vmul.f32 %v811, %v830
    %v833 = vrot.slane %v720, 6
    %v835 = vsel %vm718, %v832, %v833
    %v836 = vsel %vm718, %v826, %v814
    %v838 = vrot.slane %v835, 2
    %v839 = vsel %vm149, %v838, 0
    %841 = vmatprep.subr.mxu0 %v35
    %842 = vmatpush1.msra.mxu0 %v34
    %843 = vmatprep.subr.mxu0 %v37
    %844 = vmatpush1.msra.mxu0 %v36
    %845 = vmatprep.subr.mxu0 %v39
    %846 = vmatpush1.msra.mxu0 %v38
    %847 = vmatprep.subr.mxu0 %v41
    %848 = vmatpush1.msra.mxu0 %v40
    %849 = vmatprep.subr.mxu0 %v43
    %850 = vmatpush1.msra.mxu0 %v42
    %851 = vmatprep.subr.mxu0 %v45
    %852 = vmatpush1.msra.mxu0 %v44
    %853 = vmatprep.subr.mxu0 %v47
    %854 = vmatpush1.msra.mxu0 %v46
    %855 = vmatprep.subr.mxu0 %v49
    %856 = vmatpush1.msra.mxu0 %v48
    %857 = vmatprep.subr.mxu0 0.0
    %858 = vmatpush1.msra.mxu0 0.0
    %859 = vmatprep.subr.mxu0 0.0
    %860 = vmatpush1.msra.mxu0 0.0
    %861 = vmatprep.subr.mxu0 0.0
    %862 = vmatpush1.msra.mxu0 0.0
    %863 = vmatprep.subr.mxu0 0.0
    %864 = vmatpush1.msra.mxu0 0.0
    %865 = vmatprep.subr.mxu0 0.0
    %866 = vmatpush1.msra.mxu0 0.0
    %867 = vmatprep.subr.mxu0 0.0
    %868 = vmatpush1.msra.mxu0 0.0
    %869 = vmatprep.subr.mxu0 0.0
    %870 = vmatpush1.msra.mxu0 0.0
    %871 = vmatprep.subr.mxu0 0.0
    %872 = vmatpush1.msra.mxu0 0.0
    %873 = vmatprep.subr.mxu0 0.0
    %874 = vmatpush1.msra.mxu0 0.0
    %875 = vmatprep.subr.mxu0 0.0
    %876 = vmatpush1.msra.mxu0 0.0
    %877 = vmatprep.subr.mxu0 0.0
    %878 = vmatpush1.msra.mxu0 0.0
    %879 = vmatprep.subr.mxu0 0.0
    %880 = vmatpush1.msra.mxu0 0.0
    %881 = vmatprep.subr.mxu0 0.0
    %882 = vmatpush1.msra.mxu0 0.0
    %883 = vmatprep.subr.mxu0 0.0
    %884 = vmatpush1.msra.mxu0 0.0
    %885 = vmatprep.subr.mxu0 0.0
    %886 = vmatpush1.msra.mxu0 0.0
    %887 = vmatprep.subr.mxu0 0.0
    %888 = vmatpush1.msra.mxu0 0.0
    %889 = vmatprep.subr.mxu0 0.0
    %890 = vmatpush1.msra.mxu0 0.0
    %891 = vmatprep.subr.mxu0 0.0
    %892 = vmatpush1.msra.mxu0 0.0
    %893 = vmatprep.subr.mxu0 0.0
    %894 = vmatpush1.msra.mxu0 0.0
    %895 = vmatprep.subr.mxu0 0.0
    %896 = vmatpush1.msra.mxu0 0.0
    %897 = vmatprep.subr.mxu0 0.0
    %898 = vmatpush1.msra.mxu0 0.0
    %899 = vmatprep.subr.mxu0 0.0
    %900 = vmatpush1.msra.mxu0 0.0
    %901 = vmatprep.subr.mxu0 0.0
    %902 = vmatpush1.msra.mxu0 0.0
    %903 = vmatprep.subr.mxu0 0.0
    %904 = vmatpush1.msra.mxu0 0.0
    %905 = vmatprep.mubr.f32.mxu0 0.0
    %906 = vmatmul.mubr.f32.gmra.mrb[0].mxu0 %v839
    %v907 = vpop.f32.mrb[0].mxu0
    %v908 = vadd.f32 0.0, %v907
    %v909 = vpop.f32.mrb[0].mxu0
    %v910 = vadd.f32 0.0, %v909
    %911 = vdwg.mxu0
    %v914 = vrot.slane %v908, 4
    %v915 = vrot.slane %v910, 4
    %v918 = vadd.f32 %v145, %v914
    %v919 = vadd.f32 %v147, %v915
    %v920 = vmul.f32 %v918, 0.5
    %v921 = vmul.f32 %v919, 0.5
    %v922 = vtanh.pop %v920
    %v923 = vtanh.pop %v921
    %v924 = vmul.f32 %v922, 0.5
    %v925 = vmul.f32 %v923, 0.5
    %v926 = vadd.f32 %v924, 0.5
    %v927 = vadd.f32 %v925, 0.5
    %v928 = vtanh.pop %v919
    %v930 = vrot.slane %v836, 6
    %v932 = vmul.f32 %v926, %v930
    %934 = vrot.lane.b32.xlu0 %v928, 64
    %v935 = vpop.permute.xlu0 %934
    %v937 = vmul.f32 %v926, %v935
    %939 = vrot.lane.b32.xlu0 %v937, 64
    %v940 = vpop.permute.xlu0 %939
    %v942 = vadd.f32 %v932, %v940
    %v943 = vtanh.pop %v942
    %945 = vrot.lane.b32.xlu0 %v943, 64
    %v946 = vpop.permute.xlu0 %945
    %v948 = vmul.f32 %v927, %v946
    %v949 = vrot.slane %v835, 6
    %v951 = vsel %vm718, %v948, %v949
    %v952 = vsel %vm718, %v942, %v930
    %v954 = vrot.slane %v951, 4
    %v955 = vsel %vm149, %v954, 0
    %957 = vmatprep.subr.mxu0 %v35
    %958 = vmatpush1.msra.mxu0 %v34
    %959 = vmatprep.subr.mxu0 %v37
    %960 = vmatpush1.msra.mxu0 %v36
    %961 = vmatprep.subr.mxu0 %v39
    %962 = vmatpush1.msra.mxu0 %v38
    %963 = vmatprep.subr.mxu0 %v41
    %964 = vmatpush1.msra.mxu0 %v40
    %965 = vmatprep.subr.mxu0 %v43
    %966 = vmatpush1.msra.mxu0 %v42
    %967 = vmatprep.subr.mxu0 %v45
    %968 = vmatpush1.msra.mxu0 %v44
    %969 = vmatprep.subr.mxu0 %v47
    %970 = vmatpush1.msra.mxu0 %v46
    %971 = vmatprep.subr.mxu0 %v49
    %972 = vmatpush1.msra.mxu0 %v48
    %973 = vmatprep.subr.mxu0 0.0
    %974 = vmatpush1.msra.mxu0 0.0
    %975 = vmatprep.subr.mxu0 0.0
    %976 = vmatpush1.msra.mxu0 0.0
    %977 = vmatprep.subr.mxu0 0.0
    %978 = vmatpush1.msra.mxu0 0.0
    %979 = vmatprep.subr.mxu0 0.0
    %980 = vmatpush1.msra.mxu0 0.0
    %981 = vmatprep.subr.mxu0 0.0
    %982 = vmatpush1.msra.mxu0 0.0
    %983 = vmatprep.subr.mxu0 0.0
    %984 = vmatpush1.msra.mxu0 0.0
    %985 = vmatprep.subr.mxu0 0.0
    %986 = vmatpush1.msra.mxu0 0.0
    %987 = vmatprep.subr.mxu0 0.0
    %988 = vmatpush1.msra.mxu0 0.0
    %989 = vmatprep.subr.mxu0 0.0
    %990 = vmatpush1.msra.mxu0 0.0
    %991 = vmatprep.subr.mxu0 0.0
    %992 = vmatpush1.msra.mxu0 0.0
    %993 = vmatprep.subr.mxu0 0.0
    %994 = vmatpush1.msra.mxu0 0.0
    %995 = vmatprep.subr.mxu0 0.0
    %996 = vmatpush1.msra.mxu0 0.0
    %997 = vmatprep.subr.mxu0 0.0
    %998 = vmatpush1.msra.mxu0 0.0
    %999 = vmatprep.subr.mxu0 0.0
    %1000 = vmatpush1.msra.mxu0 0.0
    %1001 = vmatprep.subr.mxu0 0.0
    %1002 = vmatpush1.msra.mxu0 0.0
    %1003 = vmatprep.subr.mxu0 0.0
    %1004 = vmatpush1.msra.mxu0 0.0
    %1005 = vmatprep.subr.mxu0 0.0
    %1006 = vmatpush1.msra.mxu0 0.0
    %1007 = vmatprep.subr.mxu0 0.0
    %1008 = vmatpush1.msra.mxu0 0.0
    %1009 = vmatprep.subr.mxu0 0.0
    %1010 = vmatpush1.msra.mxu0 0.0
    %1011 = vmatprep.subr.mxu0 0.0
    %1012 = vmatpush1.msra.mxu0 0.0
    %1013 = vmatprep.subr.mxu0 0.0
    %1014 = vmatpush1.msra.mxu0 0.0
    %1015 = vmatprep.subr.mxu0 0.0
    %1016 = vmatpush1.msra.mxu0 0.0
    %1017 = vmatprep.subr.mxu0 0.0
    %1018 = vmatpush1.msra.mxu0 0.0
    %1019 = vmatprep.subr.mxu0 0.0
    %1020 = vmatpush1.msra.mxu0 0.0
    %1021 = vmatprep.mubr.f32.mxu0 0.0
    %1022 = vmatmul.mubr.f32.gmra.mrb[0].mxu0 %v955
    %v1023 = vpop.f32.mrb[0].mxu0
    %v1024 = vadd.f32 0.0, %v1023
    %v1025 = vpop.f32.mrb[0].mxu0
    %v1026 = vadd.f32 0.0, %v1025
    %1027 = vdwg.mxu0
    %v1030 = vrot.slane %v1024, 2
    %v1031 = vrot.slane %v1026, 2
    %v1034 = vadd.f32 %v145, %v1030
    %v1035 = vadd.f32 %v147, %v1031
    %v1036 = vmul.f32 %v1034, 0.5
    %v1037 = vmul.f32 %v1035, 0.5
    %v1038 = vtanh.pop %v1036
    %v1039 = vtanh.pop %v1037
    %v1040 = vmul.f32 %v1038, 0.5
    %v1041 = vmul.f32 %v1039, 0.5
    %v1042 = vadd.f32 %v1040, 0.5
    %v1043 = vadd.f32 %v1041, 0.5
    %v1044 = vtanh.pop %v1035
    %v1046 = vrot.slane %v952, 6
    %v1048 = vmul.f32 %v1042, %v1046
    %1050 = vrot.lane.b32.xlu0 %v1044, 64
    %v1051 = vpop.permute.xlu0 %1050
    %v1053 = vmul.f32 %v1042, %v1051
    %1055 = vrot.lane.b32.xlu0 %v1053, 64
    %v1056 = vpop.permute.xlu0 %1055
    %v1058 = vadd.f32 %v1048, %v1056
    %v1059 = vtanh.pop %v1058
    %1061 = vrot.lane.b32.xlu0 %v1059, 64
    %v1062 = vpop.permute.xlu0 %1061
    %v1064 = vmul.f32 %v1043, %v1062
    %v1065 = vrot.slane %v951, 6
    %v1067 = vsel %vm718, %v1064, %v1065
    %v1068 = vld [vmem:[%s1] sm:$0xff]
    %v1069 = vld [vmem:[%s1 + $0x8] sm:$0xff]
    %v1070 = vld [vmem:[%s1 + $0x10] sm:$0xff]
    %v1071 = vld [vmem:[%s1 + $0x18] sm:$0xff]
    %v1072 = vld [vmem:[%s1 + $0x20] sm:$0xff]
    %v1073 = vld [vmem:[%s1 + $0x28] sm:$0xff]
    %v1074 = vld [vmem:[%s1 + $0x30] sm:$0xff]
    %v1075 = vld [vmem:[%s1 + $0x38] sm:$0xff]
    %v1076 = vld [vmem:[%s1 + $0x40] sm:$0xff]
    %v1077 = vld [vmem:[%s1 + $0x48] sm:$0xff]
    %v1078 = vld [vmem:[%s1 + $0x50] sm:$0xff]
    %v1079 = vld [vmem:[%s1 + $0x58] sm:$0xff]
    %v1080 = vld [vmem:[%s1 + $0x60] sm:$0xff]
    %v1081 = vld [vmem:[%s1 + $0x68] sm:$0xff]
    %v1082 = vld [vmem:[%s1 + $0x70] sm:$0xff]
    %v1083 = vld [vmem:[%s1 + $0x78] sm:$0xff]
    %v1084 = vld [vmem:[%s1 + $0x80] sm:$0xff]
    %v1085 = vld [vmem:[%s1 + $0x88] sm:$0xff]
    %v1086 = vld [vmem:[%s1 + $0x90] sm:$0xff]
    %v1087 = vld [vmem:[%s1 + $0x98] sm:$0xff]
    %v1088 = vld [vmem:[%s1 + $0xa0] sm:$0xff]
    %v1089 = vld [vmem:[%s1 + $0xa8] sm:$0xff]
    %v1090 = vld [vmem:[%s1 + $0xb0] sm:$0xff]
    %v1091 = vld [vmem:[%s1 + $0xb8] sm:$0xff]
    %v1092 = vld [vmem:[%s1 + $0xc0] sm:$0xff]
    %v1093 = vld [vmem:[%s1 + $0xc8] sm:$0xff]
    %v1094 = vld [vmem:[%s1 + $0xd0] sm:$0xff]
    %v1095 = vld [vmem:[%s1 + $0xd8] sm:$0xff]
    %v1096 = vld [vmem:[%s1 + $0xe0] sm:$0xff]
    %v1097 = vld [vmem:[%s1 + $0xe8] sm:$0xff]
    %v1098 = vld [vmem:[%s1 + $0xf0] sm:$0xff]
    %v1099 = vld [vmem:[%s1 + $0xf8] sm:$0xff]
    %v1100 = vld [vmem:[%s1 + $0x100] sm:$0xff]
    %v1101 = vld [vmem:[%s1 + $0x108] sm:$0xff]
    %v1102 = vld [vmem:[%s1 + $0x110] sm:$0xff]
    %v1103 = vld [vmem:[%s1 + $0x118] sm:$0xff]
    %v1104 = vld [vmem:[%s1 + $0x120] sm:$0xff]
    %v1105 = vld [vmem:[%s1 + $0x128] sm:$0xff]
    %v1106 = vld [vmem:[%s1 + $0x130] sm:$0xff]
    %v1107 = vld [vmem:[%s1 + $0x138] sm:$0xff]
    %v1108 = vld [vmem:[%s1 + $0x140] sm:$0xff]
    %v1109 = vld [vmem:[%s1 + $0x148] sm:$0xff]
    %v1110 = vld [vmem:[%s1 + $0x150] sm:$0xff]
    %v1111 = vld [vmem:[%s1 + $0x158] sm:$0xff]
    %v1112 = vld [vmem:[%s1 + $0x160] sm:$0xff]
    %v1113 = vld [vmem:[%s1 + $0x168] sm:$0xff]
    %v1114 = vld [vmem:[%s1 + $0x170] sm:$0xff]
    %v1115 = vld [vmem:[%s1 + $0x178] sm:$0xff]
    %v1116 = vld [vmem:[%s1 + $0x180] sm:$0xff]
    %v1117 = vld [vmem:[%s1 + $0x188] sm:$0xff]
    %v1118 = vld [vmem:[%s1 + $0x190] sm:$0xff]
    %v1119 = vld [vmem:[%s1 + $0x198] sm:$0xff]
    %v1120 = vld [vmem:[%s1 + $0x1a0] sm:$0xff]
    %v1121 = vld [vmem:[%s1 + $0x1a8] sm:$0xff]
    %v1122 = vld [vmem:[%s1 + $0x1b0] sm:$0xff]
    %v1123 = vld [vmem:[%s1 + $0x1b8] sm:$0xff]
    %v1124 = vld [vmem:[%s1 + $0x1c0] sm:$0xff]
    %v1125 = vld [vmem:[%s1 + $0x1c8] sm:$0xff]
    %v1126 = vld [vmem:[%s1 + $0x1d0] sm:$0xff]
    %v1127 = vld [vmem:[%s1 + $0x1d8] sm:$0xff]
    %v1128 = vld [vmem:[%s1 + $0x1e0] sm:$0xff]
    %v1129 = vld [vmem:[%s1 + $0x1e8] sm:$0xff]
    %v1130 = vld [vmem:[%s1 + $0x1f0] sm:$0xff]
    %v1131 = vld [vmem:[%s1 + $0x1f8] sm:$0xff]
    %v1132 = vld [vmem:[%s1 + $0x200] sm:$0xff]
    %v1133 = vld [vmem:[%s1 + $0x208] sm:$0xff]
    %v1134 = vld [vmem:[%s1 + $0x210] sm:$0xff]
    %v1135 = vld [vmem:[%s1 + $0x218] sm:$0xff]
    %v1136 = vld [vmem:[%s1 + $0x220] sm:$0xff]
    %v1137 = vld [vmem:[%s1 + $0x228] sm:$0xff]
    %v1138 = vld [vmem:[%s1 + $0x230] sm:$0xff]
    %v1139 = vld [vmem:[%s1 + $0x238] sm:$0xff]
    %v1140 = vld [vmem:[%s1 + $0x240] sm:$0xff]
    %v1141 = vld [vmem:[%s1 + $0x248] sm:$0xff]
    %v1142 = vld [vmem:[%s1 + $0x250] sm:$0xff]
    %v1143 = vld [vmem:[%s1 + $0x258] sm:$0xff]
    %v1144 = vld [vmem:[%s1 + $0x260] sm:$0xff]
    %v1145 = vld [vmem:[%s1 + $0x268] sm:$0xff]
    %v1146 = vld [vmem:[%s1 + $0x270] sm:$0xff]
    %v1147 = vld [vmem:[%s1 + $0x278] sm:$0xff]
    %v1148 = vld [vmem:[%s1 + $0x280] sm:$0xff]
    %v1149 = vld [vmem:[%s1 + $0x288] sm:$0xff]
    %v1150 = vld [vmem:[%s1 + $0x290] sm:$0xff]
    %v1151 = vld [vmem:[%s1 + $0x298] sm:$0xff]
    %v1152 = vld [vmem:[%s1 + $0x2a0] sm:$0xff]
    %v1153 = vld [vmem:[%s1 + $0x2a8] sm:$0xff]
    %v1154 = vld [vmem:[%s1 + $0x2b0] sm:$0xff]
    %v1155 = vld [vmem:[%s1 + $0x2b8] sm:$0xff]
    %v1156 = vld [vmem:[%s1 + $0x2c0] sm:$0xff]
    %v1157 = vld [vmem:[%s1 + $0x2c8] sm:$0xff]
    %v1158 = vld [vmem:[%s1 + $0x2d0] sm:$0xff]
    %v1159 = vld [vmem:[%s1 + $0x2d8] sm:$0xff]
    %v1160 = vld [vmem:[%s1 + $0x2e0] sm:$0xff]
    %v1161 = vld [vmem:[%s1 + $0x2e8] sm:$0xff]
    %v1162 = vld [vmem:[%s1 + $0x2f0] sm:$0xff]
    %v1163 = vld [vmem:[%s1 + $0x2f8] sm:$0xff]
    %v1164 = vld [vmem:[%s1 + $0x300] sm:$0xff]
    %v1165 = vld [vmem:[%s1 + $0x308] sm:$0xff]
    %v1166 = vld [vmem:[%s1 + $0x310] sm:$0xff]
    %v1167 = vld [vmem:[%s1 + $0x318] sm:$0xff]
    %v1168 = vld [vmem:[%s3] sm:$0xff]
    %v1169 = vld [vmem:[%s3 + $0x8] sm:$0xff]
    %v1170 = vld [vmem:[%s3 + $0x10] sm:$0xff]
    %v1171 = vld [vmem:[%s3 + $0x18] sm:$0xff]
    %v1172 = vld [vmem:[%s3 + $0x20] sm:$0xff]
    %v1173 = vld [vmem:[%s3 + $0x28] sm:$0xff]
    %v1174 = vld [vmem:[%s3 + $0x30] sm:$0xff]
    %v1175 = vld [vmem:[%s3 + $0x38] sm:$0xff]
    %v1176 = vld [vmem:[%s3 + $0x40] sm:$0xff]
    %v1177 = vld [vmem:[%s3 + $0x48] sm:$0xff]
    %v1178 = vld [vmem:[%s3 + $0x50] sm:$0xff]
    %v1179 = vld [vmem:[%s3 + $0x58] sm:$0xff]
    %v1180 = vld [vmem:[%s3 + $0x60] sm:$0xf]
    %v1181 = vld [vmem:[%s3 + $0x68] sm:$0x1]
    %v1182 = vlaneseq
    %v1183 = vshrl.u32 %v1182, 7
    %v1184 = vsub.s32 0, %v1183
    %v1185 = vrot.slane %v1181, %v1184
    %vm1186 = vcmask 818176
    %v1188 = vsel %vm1186, %v1068, 0
    %v1191 = vsel %vm1186, %v1069, 0
    %v1194 = vsel %vm1186, %v1070, 0
    %v1197 = vsel %vm1186, %v1071, 0
    %v1200 = vsel %vm1186, %v1072, 0
    %v1203 = vsel %vm1186, %v1073, 0
    %v1206 = vsel %vm1186, %v1074, 0
    %v1209 = vsel %vm1186, %v1075, 0
    %v1212 = vsel %vm1186, %v1076, 0
    %v1215 = vsel %vm1186, %v1077, 0
    %v1218 = vsel %vm1186, %v1078, 0
    %v1221 = vsel %vm1186, %v1079, 0
    %v1224 = vsel %vm1186, %v1080, 0
    %v1227 = vsel %vm1186, %v1081, 0
    %v1230 = vsel %vm1186, %v1082, 0
    %v1233 = vsel %vm1186, %v1083, 0
    %v1236 = vsel %vm1186, %v1084, 0
    %v1239 = vsel %vm1186, %v1085, 0
    %v1242 = vsel %vm1186, %v1086, 0
    %v1245 = vsel %vm1186, %v1087, 0
    %v1248 = vsel %vm1186, %v1088, 0
    %v1251 = vsel %vm1186, %v1089, 0
    %v1254 = vsel %vm1186, %v1090, 0
    %v1257 = vsel %vm1186, %v1091, 0
    %v1260 = vsel %vm1186, %v1092, 0
    %v1263 = vsel %vm1186, %v1093, 0
    %v1266 = vsel %vm1186, %v1094, 0
    %v1269 = vsel %vm1186, %v1095, 0
    %v1272 = vsel %vm1186, %v1096, 0
    %v1275 = vsel %vm1186, %v1097, 0
    %v1278 = vsel %vm1186, %v1098, 0
    %v1281 = vsel %vm1186, %v1099, 0
    %v1284 = vsel %vm1186, %v1100, 0
    %v1287 = vsel %vm1186, %v1101, 0
    %v1290 = vsel %vm1186, %v1102, 0
    %v1293 = vsel %vm1186, %v1103, 0
    %v1296 = vsel %vm1186, %v1104, 0
    %v1299 = vsel %vm1186, %v1105, 0
    %v1302 = vsel %vm1186, %v1106, 0
    %v1305 = vsel %vm1186, %v1107, 0
    %v1308 = vsel %vm1186, %v1108, 0
    %v1311 = vsel %vm1186, %v1109, 0
    %v1314 = vsel %vm1186, %v1110, 0
    %v1317 = vsel %vm1186, %v1111, 0
    %v1320 = vsel %vm1186, %v1112, 0
    %v1323 = vsel %vm1186, %v1113, 0
    %v1326 = vsel %vm1186, %v1114, 0
    %v1329 = vsel %vm1186, %v1115, 0
    %v1332 = vsel %vm1186, %v1116, 0
    %v1335 = vsel %vm1186, %v1117, 0
    %v1338 = vsel %vm1186, %v1118, 0
    %v1341 = vsel %vm1186, %v1119, 0
    %v1344 = vsel %vm1186, %v1120, 0
    %v1347 = vsel %vm1186, %v1121, 0
    %v1350 = vsel %vm1186, %v1122, 0
    %v1353 = vsel %vm1186, %v1123, 0
    %v1356 = vsel %vm1186, %v1124, 0
    %v1359 = vsel %vm1186, %v1125, 0
    %v1362 = vsel %vm1186, %v1126, 0
    %v1365 = vsel %vm1186, %v1127, 0
    %v1368 = vsel %vm1186, %v1128, 0
    %v1371 = vsel %vm1186, %v1129, 0
    %v1374 = vsel %vm1186, %v1130, 0
    %v1377 = vsel %vm1186, %v1131, 0
    %v1380 = vsel %vm1186, %v1132, 0
    %v1383 = vsel %vm1186, %v1133, 0
    %v1386 = vsel %vm1186, %v1134, 0
    %v1389 = vsel %vm1186, %v1135, 0
    %v1392 = vsel %vm1186, %v1136, 0
    %v1395 = vsel %vm1186, %v1137, 0
    %v1398 = vsel %vm1186, %v1138, 0
    %v1401 = vsel %vm1186, %v1139, 0
    %v1404 = vsel %vm1186, %v1140, 0
    %v1407 = vsel %vm1186, %v1141, 0
    %v1410 = vsel %vm1186, %v1142, 0
    %v1413 = vsel %vm1186, %v1143, 0
    %v1416 = vsel %vm1186, %v1144, 0
    %v1419 = vsel %vm1186, %v1145, 0
    %v1422 = vsel %vm1186, %v1146, 0
    %v1425 = vsel %vm1186, %v1147, 0
    %v1428 = vsel %vm1186, %v1148, 0
    %v1431 = vsel %vm1186, %v1149, 0
    %v1434 = vsel %vm1186, %v1150, 0
    %v1437 = vsel %vm1186, %v1151, 0
    %v1440 = vsel %vm1186, %v1152, 0
    %v1443 = vsel %vm1186, %v1153, 0
    %v1446 = vsel %vm1186, %v1154, 0
    %v1449 = vsel %vm1186, %v1155, 0
    %v1452 = vsel %vm1186, %v1156, 0
    %v1455 = vsel %vm1186, %v1157, 0
    %v1458 = vsel %vm1186, %v1158, 0
    %v1461 = vsel %vm1186, %v1159, 0
    %v1464 = vsel %vm1186, %v1160, 0
    %v1467 = vsel %vm1186, %v1161, 0
    %v1470 = vsel %vm1186, %v1162, 0
    %v1473 = vsel %vm1186, %v1163, 0
    %v1476 = vsel %vm1186, %v1164, 0
    %v1479 = vsel %vm1186, %v1165, 0
    %v1482 = vsel %vm1186, %v1166, 0
    %v1485 = vsel %vm1186, %v1167, 0
    %vm1487 = vcmask 1043456
    %v1489 = vsel %vm1487, %v1180, 0
    %1491 = vmatprep.subr.mxu0 0.0
    %1492 = vmatpush1.msra.mxu0 %v1168
    %1493 = vmatprep.subr.mxu0 0.0
    %1494 = vmatpush1.msra.mxu0 %v1169
    %1495 = vmatprep.subr.mxu0 0.0
    %1496 = vmatpush1.msra.mxu0 %v1170
    %1497 = vmatprep.subr.mxu0 0.0
    %1498 = vmatpush1.msra.mxu0 %v1171
    %1499 = vmatprep.subr.mxu0 0.0
    %1500 = vmatpush1.msra.mxu0 %v1172
    %1501 = vmatprep.subr.mxu0 0.0
    %1502 = vmatpush1.msra.mxu0 %v1173
    %1503 = vmatprep.subr.mxu0 0.0
    %1504 = vmatpush1.msra.mxu0 %v1174
    %1505 = vmatprep.subr.mxu0 0.0
    %1506 = vmatpush1.msra.mxu0 %v1175
    %1507 = vmatprep.subr.mxu0 0.0
    %1508 = vmatpush1.msra.mxu0 %v1176
    %1509 = vmatprep.subr.mxu0 0.0
    %1510 = vmatpush1.msra.mxu0 %v1177
    %1511 = vmatprep.subr.mxu0 0.0
    %1512 = vmatpush1.msra.mxu0 %v1178
    %1513 = vmatprep.subr.mxu0 0.0
    %1514 = vmatpush1.msra.mxu0 %v1179
    %1515 = vmatprep.subr.mxu0 0.0
    %1516 = vmatpush1.msra.mxu0 %v1489
    %1517 = vmatprep.subr.mxu0 0.0
    %1518 = vmatpush1.msra.mxu0 0.0
    %1519 = vmatprep.subr.mxu0 0.0
    %1520 = vmatpush1.msra.mxu0 0.0
    %1521 = vmatprep.subr.mxu0 0.0
    %1522 = vmatpush1.msra.mxu0 0.0
    %1523 = vmatprep.subr.mxu0 0.0
    %1524 = vmatpush1.msra.mxu0 0.0
    %1525 = vmatprep.subr.mxu0 0.0
    %1526 = vmatpush1.msra.mxu0 0.0
    %1527 = vmatprep.subr.mxu0 0.0
    %1528 = vmatpush1.msra.mxu0 0.0
    %1529 = vmatprep.subr.mxu0 0.0
    %1530 = vmatpush1.msra.mxu0 0.0
    %1531 = vmatprep.subr.mxu0 0.0
    %1532 = vmatpush1.msra.mxu0 0.0
    %1533 = vmatprep.subr.mxu0 0.0
    %1534 = vmatpush1.msra.mxu0 0.0
    %1535 = vmatprep.subr.mxu0 0.0
    %1536 = vmatpush1.msra.mxu0 0.0
    %1537 = vmatprep.subr.mxu0 0.0
    %1538 = vmatpush1.msra.mxu0 0.0
    %1539 = vmatprep.subr.mxu0 0.0
    %1540 = vmatpush1.msra.mxu0 0.0
    %1541 = vmatprep.subr.mxu0 0.0
    %1542 = vmatpush1.msra.mxu0 0.0
    %1543 = vmatprep.subr.mxu0 0.0
    %1544 = vmatpush1.msra.mxu0 0.0
    %1545 = vmatprep.subr.mxu0 0.0
    %1546 = vmatpush1.msra.mxu0 0.0
    %1547 = vmatprep.subr.mxu0 0.0
    %1548 = vmatpush1.msra.mxu0 0.0
    %1549 = vmatprep.subr.mxu0 0.0
    %1550 = vmatpush1.msra.mxu0 0.0
    %1551 = vmatprep.subr.mxu0 0.0
    %1552 = vmatpush1.msra.mxu0 0.0
    %1553 = vmatprep.subr.mxu0 0.0
    %1554 = vmatpush1.msra.mxu0 0.0
    %1555 = vmatprep.mubr.f32.mxu0 0.0
    %1556 = vmatmul.mubr.f32.gmra.mrb[0].mxu0 %v1188
    %v1557 = vpop.f32.mrb[0].mxu0
    %v1558 = vadd.f32 %v1185, %v1557
    %v1559 = vpop.f32.mrb[0].mxu0
    %1560 = vmatprep.mubr.f32.mxu0 0.0
    %1561 = vmatmul.mubr.f32.gmra.mrb[0].mxu0 %v1191
    %v1562 = vpop.f32.mrb[0].mxu0
    %v1563 = vadd.f32 %v1185, %v1562
    %v1564 = vpop.f32.mrb[0].mxu0
    %1565 = vmatprep.mubr.f32.mxu0 0.0
    %1566 = vmatmul.mubr.f32.gmra.mrb[0].mxu0 %v1194
    %v1567 = vpop.f32.mrb[0].mxu0
    %v1568 = vadd.f32 %v1185, %v1567
    %v1569 = vpop.f32.mrb[0].mxu0
    %1570 = vmatprep.mubr.f32.mxu0 0.0
    %1571 = vmatmul.mubr.f32.gmra.mrb[0].mxu0 %v1197
    %v1572 = vpop.f32.mrb[0].mxu0
    %v1573 = vadd.f32 %v1185, %v1572
    %v1574 = vpop.f32.mrb[0].mxu0
    %1575 = vmatprep.mubr.f32.mxu0 0.0
    %1576 = vmatmul.mubr.f32.gmra.mrb[0].mxu0 %v1200
    %v1577 = vpop.f32.mrb[0].mxu0
    %v1578 = vadd.f32 %v1185, %v1577
    %v1579 = vpop.f32.mrb[0].mxu0
    %1580 = vmatprep.mubr.f32.mxu0 0.0
    %1581 = vmatmul.mubr.f32.gmra.mrb[0].mxu0 %v1203
    %v1582 = vpop.f32.mrb[0].mxu0
    %v1583 = vadd.f32 %v1185, %v1582
    %v1584 = vpop.f32.mrb[0].mxu0
    %1585 = vmatprep.mubr.f32.mxu0 0.0
    %1586 = vmatmul.mubr.f32.gmra.mrb[0].mxu0 %v1206
    %v1587 = vpop.f32.mrb[0].mxu0
    %v1588 = vadd.f32 %v1185, %v1587
    %v1589 = vpop.f32.mrb[0].mxu0
    %1590 = vmatprep.mubr.f32.mxu0 0.0
    %1591 = vmatmul.mubr.f32.gmra.mrb[0].mxu0 %v1209
    %v1592 = vpop.f32.mrb[0].mxu0
    %v1593 = vadd.f32 %v1185, %v1592
    %v1594 = vpop.f32.mrb[0].mxu0
    %1595 = vmatprep.mubr.f32.mxu0 0.0
    %1596 = vmatmul.mubr.f32.gmra.mrb[0].mxu0 %v1212
    %v1597 = vpop.f32.mrb[0].mxu0
    %v1598 = vadd.f32 %v1185, %v1597
    %v1599 = vpop.f32.mrb[0].mxu0
    %1600 = vmatprep.mubr.f32.mxu0 0.0
    %1601 = vmatmul.mubr.f32.gmra.mrb[0].mxu0 %v1215
    %v1602 = vpop.f32.mrb[0].mxu0
    %v1603 = vadd.f32 %v1185, %v1602
    %v1604 = vpop.f32.mrb[0].mxu0
    %1605 = vmatprep.mubr.f32.mxu0 0.0
    %1606 = vmatmul.mubr.f32.gmra.mrb[0].mxu0 %v1218
    %v1607 = vpop.f32.mrb[0].mxu0
    %v1608 = vadd.f32 %v1185, %v1607
    %v1609 = vpop.f32.mrb[0].mxu0
    %1610 = vmatprep.mubr.f32.mxu0 0.0
    %1611 = vmatmul.mubr.f32.gmra.mrb[0].mxu0 %v1221
    %v1612 = vpop.f32.mrb[0].mxu0
    %v1613 = vadd.f32 %v1185, %v1612
    %v1614 = vpop.f32.mrb[0].mxu0
    %1615 = vmatprep.mubr.f32.mxu0 0.0
    %1616 = vmatmul.mubr.f32.gmra.mrb[0].mxu0 %v1224
    %v1617 = vpop.f32.mrb[0].mxu0
    %v1618 = vadd.f32 %v1185, %v1617
    %v1619 = vpop.f32.mrb[0].mxu0
    %1620 = vmatprep.mubr.f32.mxu0 0.0
    %1621 = vmatmul.mubr.f32.gmra.mrb[0].mxu0 %v1227
    %v1622 = vpop.f32.mrb[0].mxu0
    %v1623 = vadd.f32 %v1185, %v1622
    %v1624 = vpop.f32.mrb[0].mxu0
    %1625 = vmatprep.mubr.f32.mxu0 0.0
    %1626 = vmatmul.mubr.f32.gmra.mrb[0].mxu0 %v1230
    %v1627 = vpop.f32.mrb[0].mxu0
    %v1628 = vadd.f32 %v1185, %v1627
    %v1629 = vpop.f32.mrb[0].mxu0
    %1630 = vmatprep.mubr.f32.mxu0 0.0
    %1631 = vmatmul.mubr.f32.gmra.mrb[0].mxu0 %v1233
    %v1632 = vpop.f32.mrb[0].mxu0
    %v1633 = vadd.f32 %v1185, %v1632
    %v1634 = vpop.f32.mrb[0].mxu0
    %1635 = vmatprep.mubr.f32.mxu0 0.0
    %1636 = vmatmul.mubr.f32.gmra.mrb[0].mxu0 %v1236
    %v1637 = vpop.f32.mrb[0].mxu0
    %v1638 = vadd.f32 %v1185, %v1637
    %v1639 = vpop.f32.mrb[0].mxu0
    %1640 = vmatprep.mubr.f32.mxu0 0.0
    %1641 = vmatmul.mubr.f32.gmra.mrb[0].mxu0 %v1239
    %v1642 = vpop.f32.mrb[0].mxu0
    %v1643 = vadd.f32 %v1185, %v1642
    %v1644 = vpop.f32.mrb[0].mxu0
    %1645 = vmatprep.mubr.f32.mxu0 0.0
    %1646 = vmatmul.mubr.f32.gmra.mrb[0].mxu0 %v1242
    %v1647 = vpop.f32.mrb[0].mxu0
    %v1648 = vadd.f32 %v1185, %v1647
    %v1649 = vpop.f32.mrb[0].mxu0
    %1650 = vmatprep.mubr.f32.mxu0 0.0
    %1651 = vmatmul.mubr.f32.gmra.mrb[0].mxu0 %v1245
    %v1652 = vpop.f32.mrb[0].mxu0
    %v1653 = vadd.f32 %v1185, %v1652
    %v1654 = vpop.f32.mrb[0].mxu0
    %1655 = vmatprep.mubr.f32.mxu0 0.0
    %1656 = vmatmul.mubr.f32.gmra.mrb[0].mxu0 %v1248
    %v1657 = vpop.f32.mrb[0].mxu0
    %v1658 = vadd.f32 %v1185, %v1657
    %v1659 = vpop.f32.mrb[0].mxu0
    %1660 = vmatprep.mubr.f32.mxu0 0.0
    %1661 = vmatmul.mubr.f32.gmra.mrb[0].mxu0 %v1251
    %v1662 = vpop.f32.mrb[0].mxu0
    %v1663 = vadd.f32 %v1185, %v1662
    %v1664 = vpop.f32.mrb[0].mxu0
    %1665 = vmatprep.mubr.f32.mxu0 0.0
    %1666 = vmatmul.mubr.f32.gmra.mrb[0].mxu0 %v1254
    %v1667 = vpop.f32.mrb[0].mxu0
    %v1668 = vadd.f32 %v1185, %v1667
    %v1669 = vpop.f32.mrb[0].mxu0
    %1670 = vmatprep.mubr.f32.mxu0 0.0
    %1671 = vmatmul.mubr.f32.gmra.mrb[0].mxu0 %v1257
    %v1672 = vpop.f32.mrb[0].mxu0
    %v1673 = vadd.f32 %v1185, %v1672
    %v1674 = vpop.f32.mrb[0].mxu0
    %1675 = vmatprep.mubr.f32.mxu0 0.0
    %1676 = vmatmul.mubr.f32.gmra.mrb[0].mxu0 %v1260
    %v1677 = vpop.f32.mrb[0].mxu0
    %v1678 = vadd.f32 %v1185, %v1677
    %v1679 = vpop.f32.mrb[0].mxu0
    %1680 = vmatprep.mubr.f32.mxu0 0.0
    %1681 = vmatmul.mubr.f32.gmra.mrb[0].mxu0 %v1263
    %v1682 = vpop.f32.mrb[0].mxu0
    %v1683 = vadd.f32 %v1185, %v1682
    %v1684 = vpop.f32.mrb[0].mxu0
    %1685 = vmatprep.mubr.f32.mxu0 0.0
    %1686 = vmatmul.mubr.f32.gmra.mrb[0].mxu0 %v1266
    %v1687 = vpop.f32.mrb[0].mxu0
    %v1688 = vadd.f32 %v1185, %v1687
    %v1689 = vpop.f32.mrb[0].mxu0
    %1690 = vmatprep.mubr.f32.mxu0 0.0
    %1691 = vmatmul.mubr.f32.gmra.mrb[0].mxu0 %v1269
    %v1692 = vpop.f32.mrb[0].mxu0
    %v1693 = vadd.f32 %v1185, %v1692
    %v1694 = vpop.f32.mrb[0].mxu0
    %1695 = vmatprep.mubr.f32.mxu0 0.0
    %1696 = vmatmul.mubr.f32.gmra.mrb[0].mxu0 %v1272
    %v1697 = vpop.f32.mrb[0].mxu0
    %v1698 = vadd.f32 %v1185, %v1697
    %v1699 = vpop.f32.mrb[0].mxu0
    %1700 = vmatprep.mubr.f32.mxu0 0.0
    %1701 = vmatmul.mubr.f32.gmra.mrb[0].mxu0 %v1275
    %v1702 = vpop.f32.mrb[0].mxu0
    %v1703 = vadd.f32 %v1185, %v1702
    %v1704 = vpop.f32.mrb[0].mxu0
    %1705 = vmatprep.mubr.f32.mxu0 0.0
    %1706 = vmatmul.mubr.f32.gmra.mrb[0].mxu0 %v1278
    %v1707 = vpop.f32.mrb[0].mxu0
    %v1708 = vadd.f32 %v1185, %v1707
    %v1709 = vpop.f32.mrb[0].mxu0
    %1710 = vmatprep.mubr.f32.mxu0 0.0
    %1711 = vmatmul.mubr.f32.gmra.mrb[0].mxu0 %v1281
    %v1712 = vpop.f32.mrb[0].mxu0
    %v1713 = vadd.f32 %v1185, %v1712
    %v1714 = vpop.f32.mrb[0].mxu0
    %1715 = vmatprep.mubr.f32.mxu0 0.0
    %1716 = vmatmul.mubr.f32.gmra.mrb[0].mxu0 %v1284
    %v1717 = vpop.f32.mrb[0].mxu0
    %v1718 = vadd.f32 %v1185, %v1717
    %v1719 = vpop.f32.mrb[0].mxu0
    %1720 = vmatprep.mubr.f32.mxu0 0.0
    %1721 = vmatmul.mubr.f32.gmra.mrb[0].mxu0 %v1287
    %v1722 = vpop.f32.mrb[0].mxu0
    %v1723 = vadd.f32 %v1185, %v1722
    %v1724 = vpop.f32.mrb[0].mxu0
    %1725 = vmatprep.mubr.f32.mxu0 0.0
    %1726 = vmatmul.mubr.f32.gmra.mrb[0].mxu0 %v1290
    %v1727 = vpop.f32.mrb[0].mxu0
    %v1728 = vadd.f32 %v1185, %v1727
    %v1729 = vpop.f32.mrb[0].mxu0
    %1730 = vmatprep.mubr.f32.mxu0 0.0
    %1731 = vmatmul.mubr.f32.gmra.mrb[0].mxu0 %v1293
    %v1732 = vpop.f32.mrb[0].mxu0
    %v1733 = vadd.f32 %v1185, %v1732
    %v1734 = vpop.f32.mrb[0].mxu0
    %1735 = vmatprep.mubr.f32.mxu0 0.0
    %1736 = vmatmul.mubr.f32.gmra.mrb[0].mxu0 %v1296
    %v1737 = vpop.f32.mrb[0].mxu0
    %v1738 = vadd.f32 %v1185, %v1737
    %v1739 = vpop.f32.mrb[0].mxu0
    %1740 = vmatprep.mubr.f32.mxu0 0.0
    %1741 = vmatmul.mubr.f32.gmra.mrb[0].mxu0 %v1299
    %v1742 = vpop.f32.mrb[0].mxu0
    %v1743 = vadd.f32 %v1185, %v1742
    %v1744 = vpop.f32.mrb[0].mxu0
    %1745 = vmatprep.mubr.f32.mxu0 0.0
    %1746 = vmatmul.mubr.f32.gmra.mrb[0].mxu0 %v1302
    %v1747 = vpop.f32.mrb[0].mxu0
    %v1748 = vadd.f32 %v1185, %v1747
    %v1749 = vpop.f32.mrb[0].mxu0
    %1750 = vmatprep.mubr.f32.mxu0 0.0
    %1751 = vmatmul.mubr.f32.gmra.mrb[0].mxu0 %v1305
    %v1752 = vpop.f32.mrb[0].mxu0
    %v1753 = vadd.f32 %v1185, %v1752
    %v1754 = vpop.f32.mrb[0].mxu0
    %1755 = vmatprep.mubr.f32.mxu0 0.0
    %1756 = vmatmul.mubr.f32.gmra.mrb[0].mxu0 %v1308
    %v1757 = vpop.f32.mrb[0].mxu0
    %v1758 = vadd.f32 %v1185, %v1757
    %v1759 = vpop.f32.mrb[0].mxu0
    %1760 = vmatprep.mubr.f32.mxu0 0.0
    %1761 = vmatmul.mubr.f32.gmra.mrb[0].mxu0 %v1311
    %v1762 = vpop.f32.mrb[0].mxu0
    %v1763 = vadd.f32 %v1185, %v1762
    %v1764 = vpop.f32.mrb[0].mxu0
    %1765 = vmatprep.mubr.f32.mxu0 0.0
    %1766 = vmatmul.mubr.f32.gmra.mrb[0].mxu0 %v1314
    %v1767 = vpop.f32.mrb[0].mxu0
    %v1768 = vadd.f32 %v1185, %v1767
    %v1769 = vpop.f32.mrb[0].mxu0
    %1770 = vmatprep.mubr.f32.mxu0 0.0
    %1771 = vmatmul.mubr.f32.gmra.mrb[0].mxu0 %v1317
    %v1772 = vpop.f32.mrb[0].mxu0
    %v1773 = vadd.f32 %v1185, %v1772
    %v1774 = vpop.f32.mrb[0].mxu0
    %1775 = vmatprep.mubr.f32.mxu0 0.0
    %1776 = vmatmul.mubr.f32.gmra.mrb[0].mxu0 %v1320
    %v1777 = vpop.f32.mrb[0].mxu0
    %v1778 = vadd.f32 %v1185, %v1777
    %v1779 = vpop.f32.mrb[0].mxu0
    %1780 = vmatprep.mubr.f32.mxu0 0.0
    %1781 = vmatmul.mubr.f32.gmra.mrb[0].mxu0 %v1323
    %v1782 = vpop.f32.mrb[0].mxu0
    %v1783 = vadd.f32 %v1185, %v1782
    %v1784 = vpop.f32.mrb[0].mxu0
    %1785 = vmatprep.mubr.f32.mxu0 0.0
    %1786 = vmatmul.mubr.f32.gmra.mrb[0].mxu0 %v1326
    %v1787 = vpop.f32.mrb[0].mxu0
    %v1788 = vadd.f32 %v1185, %v1787
    %v1789 = vpop.f32.mrb[0].mxu0
    %1790 = vmatprep.mubr.f32.mxu0 0.0
    %1791 = vmatmul.mubr.f32.gmra.mrb[0].mxu0 %v1329
    %v1792 = vpop.f32.mrb[0].mxu0
    %v1793 = vadd.f32 %v1185, %v1792
    %v1794 = vpop.f32.mrb[0].mxu0
    %1795 = vmatprep.mubr.f32.mxu0 0.0
    %1796 = vmatmul.mubr.f32.gmra.mrb[0].mxu0 %v1332
    %v1797 = vpop.f32.mrb[0].mxu0
    %v1798 = vadd.f32 %v1185, %v1797
    %v1799 = vpop.f32.mrb[0].mxu0
    %1800 = vmatprep.mubr.f32.mxu0 0.0
    %1801 = vmatmul.mubr.f32.gmra.mrb[0].mxu0 %v1335
    %v1802 = vpop.f32.mrb[0].mxu0
    %v1803 = vadd.f32 %v1185, %v1802
    %v1804 = vpop.f32.mrb[0].mxu0
    %1805 = vmatprep.mubr.f32.mxu0 0.0
    %1806 = vmatmul.mubr.f32.gmra.mrb[0].mxu0 %v1338
    %v1807 = vpop.f32.mrb[0].mxu0
    %v1808 = vadd.f32 %v1185, %v1807
    %v1809 = vpop.f32.mrb[0].mxu0
    %1810 = vmatprep.mubr.f32.mxu0 0.0
    %1811 = vmatmul.mubr.f32.gmra.mrb[0].mxu0 %v1341
    %v1812 = vpop.f32.mrb[0].mxu0
    %v1813 = vadd.f32 %v1185, %v1812
    %v1814 = vpop.f32.mrb[0].mxu0
    %1815 = vmatprep.mubr.f32.mxu0 0.0
    %1816 = vmatmul.mubr.f32.gmra.mrb[0].mxu0 %v1344
    %v1817 = vpop.f32.mrb[0].mxu0
    %v1818 = vadd.f32 %v1185, %v1817
    %v1819 = vpop.f32.mrb[0].mxu0
    %1820 = vmatprep.mubr.f32.mxu0 0.0
    %1821 = vmatmul.mubr.f32.gmra.mrb[0].mxu0 %v1347
    %v1822 = vpop.f32.mrb[0].mxu0
    %v1823 = vadd.f32 %v1185, %v1822
    %v1824 = vpop.f32.mrb[0].mxu0
    %1825 = vmatprep.mubr.f32.mxu0 0.0
    %1826 = vmatmul.mubr.f32.gmra.mrb[0].mxu0 %v1350
    %v1827 = vpop.f32.mrb[0].mxu0
    %v1828 = vadd.f32 %v1185, %v1827
    %v1829 = vpop.f32.mrb[0].mxu0
    %1830 = vmatprep.mubr.f32.mxu0 0.0
    %1831 = vmatmul.mubr.f32.gmra.mrb[0].mxu0 %v1353
    %v1832 = vpop.f32.mrb[0].mxu0
    %v1833 = vadd.f32 %v1185, %v1832
    %v1834 = vpop.f32.mrb[0].mxu0
    %1835 = vmatprep.mubr.f32.mxu0 0.0
    %1836 = vmatmul.mubr.f32.gmra.mrb[0].mxu0 %v1356
    %v1837 = vpop.f32.mrb[0].mxu0
    %v1838 = vadd.f32 %v1185, %v1837
    %v1839 = vpop.f32.mrb[0].mxu0
    %1840 = vmatprep.mubr.f32.mxu0 0.0
    %1841 = vmatmul.mubr.f32.gmra.mrb[0].mxu0 %v1359
    %v1842 = vpop.f32.mrb[0].mxu0
    %v1843 = vadd.f32 %v1185, %v1842
    %v1844 = vpop.f32.mrb[0].mxu0
    %1845 = vmatprep.mubr.f32.mxu0 0.0
    %1846 = vmatmul.mubr.f32.gmra.mrb[0].mxu0 %v1362
    %v1847 = vpop.f32.mrb[0].mxu0
    %v1848 = vadd.f32 %v1185, %v1847
    %v1849 = vpop.f32.mrb[0].mxu0
    %1850 = vmatprep.mubr.f32.mxu0 0.0
    %1851 = vmatmul.mubr.f32.gmra.mrb[0].mxu0 %v1365
    %v1852 = vpop.f32.mrb[0].mxu0
    %v1853 = vadd.f32 %v1185, %v1852
    %v1854 = vpop.f32.mrb[0].mxu0
    %1855 = vmatprep.mubr.f32.mxu0 0.0
    %1856 = vmatmul.mubr.f32.gmra.mrb[0].mxu0 %v1368
    %v1857 = vpop.f32.mrb[0].mxu0
    %v1858 = vadd.f32 %v1185, %v1857
    %v1859 = vpop.f32.mrb[0].mxu0
    %1860 = vmatprep.mubr.f32.mxu0 0.0
    %1861 = vmatmul.mubr.f32.gmra.mrb[0].mxu0 %v1371
    %v1862 = vpop.f32.mrb[0].mxu0
    %v1863 = vadd.f32 %v1185, %v1862
    %v1864 = vpop.f32.mrb[0].mxu0
    %1865 = vmatprep.mubr.f32.mxu0 0.0
    %1866 = vmatmul.mubr.f32.gmra.mrb[0].mxu0 %v1374
    %v1867 = vpop.f32.mrb[0].mxu0
    %v1868 = vadd.f32 %v1185, %v1867
    %v1869 = vpop.f32.mrb[0].mxu0
    %1870 = vmatprep.mubr.f32.mxu0 0.0
    %1871 = vmatmul.mubr.f32.gmra.mrb[0].mxu0 %v1377
    %v1872 = vpop.f32.mrb[0].mxu0
    %v1873 = vadd.f32 %v1185, %v1872
    %v1874 = vpop.f32.mrb[0].mxu0
    %1875 = vmatprep.mubr.f32.mxu0 0.0
    %1876 = vmatmul.mubr.f32.gmra.mrb[0].mxu0 %v1380
    %v1877 = vpop.f32.mrb[0].mxu0
    %v1878 = vadd.f32 %v1185, %v1877
    %v1879 = vpop.f32.mrb[0].mxu0
    %1880 = vmatprep.mubr.f32.mxu0 0.0
    %1881 = vmatmul.mubr.f32.gmra.mrb[0].mxu0 %v1383
    %v1882 = vpop.f32.mrb[0].mxu0
    %v1883 = vadd.f32 %v1185, %v1882
    %v1884 = vpop.f32.mrb[0].mxu0
    %1885 = vmatprep.mubr.f32.mxu0 0.0
    %1886 = vmatmul.mubr.f32.gmra.mrb[0].mxu0 %v1386
    %v1887 = vpop.f32.mrb[0].mxu0
    %v1888 = vadd.f32 %v1185, %v1887
    %v1889 = vpop.f32.mrb[0].mxu0
    %1890 = vmatprep.mubr.f32.mxu0 0.0
    %1891 = vmatmul.mubr.f32.gmra.mrb[0].mxu0 %v1389
    %v1892 = vpop.f32.mrb[0].mxu0
    %v1893 = vadd.f32 %v1185, %v1892
    %v1894 = vpop.f32.mrb[0].mxu0
    %1895 = vmatprep.mubr.f32.mxu0 0.0
    %1896 = vmatmul.mubr.f32.gmra.mrb[0].mxu0 %v1392
    %v1897 = vpop.f32.mrb[0].mxu0
    %v1898 = vadd.f32 %v1185, %v1897
    %v1899 = vpop.f32.mrb[0].mxu0
    %1900 = vmatprep.mubr.f32.mxu0 0.0
    %1901 = vmatmul.mubr.f32.gmra.mrb[0].mxu0 %v1395
    %v1902 = vpop.f32.mrb[0].mxu0
    %v1903 = vadd.f32 %v1185, %v1902
    %v1904 = vpop.f32.mrb[0].mxu0
    %1905 = vmatprep.mubr.f32.mxu0 0.0
    %1906 = vmatmul.mubr.f32.gmra.mrb[0].mxu0 %v1398
    %v1907 = vpop.f32.mrb[0].mxu0
    %v1908 = vadd.f32 %v1185, %v1907
    %v1909 = vpop.f32.mrb[0].mxu0
    %1910 = vmatprep.mubr.f32.mxu0 0.0
    %1911 = vmatmul.mubr.f32.gmra.mrb[0].mxu0 %v1401
    %v1912 = vpop.f32.mrb[0].mxu0
    %v1913 = vadd.f32 %v1185, %v1912
    %v1914 = vpop.f32.mrb[0].mxu0
    %1915 = vmatprep.mubr.f32.mxu0 0.0
    %1916 = vmatmul.mubr.f32.gmra.mrb[0].mxu0 %v1404
    %v1917 = vpop.f32.mrb[0].mxu0
    %v1918 = vadd.f32 %v1185, %v1917
    %v1919 = vpop.f32.mrb[0].mxu0
    %1920 = vmatprep.mubr.f32.mxu0 0.0
    %1921 = vmatmul.mubr.f32.gmra.mrb[0].mxu0 %v1407
    %v1922 = vpop.f32.mrb[0].mxu0
    %v1923 = vadd.f32 %v1185, %v1922
    %v1924 = vpop.f32.mrb[0].mxu0
    %1925 = vmatprep.mubr.f32.mxu0 0.0
    %1926 = vmatmul.mubr.f32.gmra.mrb[0].mxu0 %v1410
    %v1927 = vpop.f32.mrb[0].mxu0
    %v1928 = vadd.f32 %v1185, %v1927
    %v1929 = vpop.f32.mrb[0].mxu0
    %1930 = vmatprep.mubr.f32.mxu0 0.0
    %1931 = vmatmul.mubr.f32.gmra.mrb[0].mxu0 %v1413
    %v1932 = vpop.f32.mrb[0].mxu0
    %v1933 = vadd.f32 %v1185, %v1932
    %v1934 = vpop.f32.mrb[0].mxu0
    %1935 = vmatprep.mubr.f32.mxu0 0.0
    %1936 = vmatmul.mubr.f32.gmra.mrb[0].mxu0 %v1416
    %v1937 = vpop.f32.mrb[0].mxu0
    %v1938 = vadd.f32 %v1185, %v1937
    %v1939 = vpop.f32.mrb[0].mxu0
    %1940 = vmatprep.mubr.f32.mxu0 0.0
    %1941 = vmatmul.mubr.f32.gmra.mrb[0].mxu0 %v1419
    %v1942 = vpop.f32.mrb[0].mxu0
    %v1943 = vadd.f32 %v1185, %v1942
    %v1944 = vpop.f32.mrb[0].mxu0
    %1945 = vmatprep.mubr.f32.mxu0 0.0
    %1946 = vmatmul.mubr.f32.gmra.mrb[0].mxu0 %v1422
    %v1947 = vpop.f32.mrb[0].mxu0
    %v1948 = vadd.f32 %v1185, %v1947
    %v1949 = vpop.f32.mrb[0].mxu0
    %1950 = vmatprep.mubr.f32.mxu0 0.0
    %1951 = vmatmul.mubr.f32.gmra.mrb[0].mxu0 %v1425
    %v1952 = vpop.f32.mrb[0].mxu0
    %v1953 = vadd.f32 %v1185, %v1952
    %v1954 = vpop.f32.mrb[0].mxu0
    %1955 = vmatprep.mubr.f32.mxu0 0.0
    %1956 = vmatmul.mubr.f32.gmra.mrb[0].mxu0 %v1428
    %v1957 = vpop.f32.mrb[0].mxu0
    %v1958 = vadd.f32 %v1185, %v1957
    %v1959 = vpop.f32.mrb[0].mxu0
    %1960 = vmatprep.mubr.f32.mxu0 0.0
    %1961 = vmatmul.mubr.f32.gmra.mrb[0].mxu0 %v1431
    %v1962 = vpop.f32.mrb[0].mxu0
    %v1963 = vadd.f32 %v1185, %v1962
    %v1964 = vpop.f32.mrb[0].mxu0
    %1965 = vmatprep.mubr.f32.mxu0 0.0
    %1966 = vmatmul.mubr.f32.gmra.mrb[0].mxu0 %v1434
    %v1967 = vpop.f32.mrb[0].mxu0
    %v1968 = vadd.f32 %v1185, %v1967
    %v1969 = vpop.f32.mrb[0].mxu0
    %1970 = vmatprep.mubr.f32.mxu0 0.0
    %1971 = vmatmul.mubr.f32.gmra.mrb[0].mxu0 %v1437
    %v1972 = vpop.f32.mrb[0].mxu0
    %v1973 = vadd.f32 %v1185, %v1972
    %v1974 = vpop.f32.mrb[0].mxu0
    %1975 = vmatprep.mubr.f32.mxu0 0.0
    %1976 = vmatmul.mubr.f32.gmra.mrb[0].mxu0 %v1440
    %v1977 = vpop.f32.mrb[0].mxu0
    %v1978 = vadd.f32 %v1185, %v1977
    %v1979 = vpop.f32.mrb[0].mxu0
    %1980 = vmatprep.mubr.f32.mxu0 0.0
    %1981 = vmatmul.mubr.f32.gmra.mrb[0].mxu0 %v1443
    %v1982 = vpop.f32.mrb[0].mxu0
    %v1983 = vadd.f32 %v1185, %v1982
    %v1984 = vpop.f32.mrb[0].mxu0
    %1985 = vmatprep.mubr.f32.mxu0 0.0
    %1986 = vmatmul.mubr.f32.gmra.mrb[0].mxu0 %v1446
    %v1987 = vpop.f32.mrb[0].mxu0
    %v1988 = vadd.f32 %v1185, %v1987
    %v1989 = vpop.f32.mrb[0].mxu0
    %1990 = vmatprep.mubr.f32.mxu0 0.0
    %1991 = vmatmul.mubr.f32.gmra.mrb[0].mxu0 %v1449
    %v1992 = vpop.f32.mrb[0].mxu0
    %v1993 = vadd.f32 %v1185, %v1992
    %v1994 = vpop.f32.mrb[0].mxu0
    %1995 = vmatprep.mubr.f32.mxu0 0.0
    %1996 = vmatmul.mubr.f32.gmra.mrb[0].mxu0 %v1452
    %v1997 = vpop.f32.mrb[0].mxu0
    %v1998 = vadd.f32 %v1185, %v1997
    %v1999 = vpop.f32.mrb[0].mxu0
    %2000 = vmatprep.mubr.f32.mxu0 0.0
    %2001 = vmatmul.mubr.f32.gmra.mrb[0].mxu0 %v1455
    %v2002 = vpop.f32.mrb[0].mxu0
    %v2003 = vadd.f32 %v1185, %v2002
    %v2004 = vpop.f32.mrb[0].mxu0
    %2005 = vmatprep.mubr.f32.mxu0 0.0
    %2006 = vmatmul.mubr.f32.gmra.mrb[0].mxu0 %v1458
    %v2007 = vpop.f32.mrb[0].mxu0
    %v2008 = vadd.f32 %v1185, %v2007
    %v2009 = vpop.f32.mrb[0].mxu0
    %2010 = vmatprep.mubr.f32.mxu0 0.0
    %2011 = vmatmul.mubr.f32.gmra.mrb[0].mxu0 %v1461
    %v2012 = vpop.f32.mrb[0].mxu0
    %v2013 = vadd.f32 %v1185, %v2012
    %v2014 = vpop.f32.mrb[0].mxu0
    %2015 = vmatprep.mubr.f32.mxu0 0.0
    %2016 = vmatmul.mubr.f32.gmra.mrb[0].mxu0 %v1464
    %v2017 = vpop.f32.mrb[0].mxu0
    %v2018 = vadd.f32 %v1185, %v2017
    %v2019 = vpop.f32.mrb[0].mxu0
    %2020 = vmatprep.mubr.f32.mxu0 0.0
    %2021 = vmatmul.mubr.f32.gmra.mrb[0].mxu0 %v1467
    %v2022 = vpop.f32.mrb[0].mxu0
    %v2023 = vadd.f32 %v1185, %v2022
    %v2024 = vpop.f32.mrb[0].mxu0
    %2025 = vmatprep.mubr.f32.mxu0 0.0
    %2026 = vmatmul.mubr.f32.gmra.mrb[0].mxu0 %v1470
    %v2027 = vpop.f32.mrb[0].mxu0
    %v2028 = vadd.f32 %v1185, %v2027
    %v2029 = vpop.f32.mrb[0].mxu0
    %2030 = vmatprep.mubr.f32.mxu0 0.0
    %2031 = vmatmul.mubr.f32.gmra.mrb[0].mxu0 %v1473
    %v2032 = vpop.f32.mrb[0].mxu0
    %v2033 = vadd.f32 %v1185, %v2032
    %v2034 = vpop.f32.mrb[0].mxu0
    %2035 = vmatprep.mubr.f32.mxu0 0.0
    %2036 = vmatmul.mubr.f32.gmra.mrb[0].mxu0 %v1476
    %v2037 = vpop.f32.mrb[0].mxu0
    %v2038 = vadd.f32 %v1185, %v2037
    %v2039 = vpop.f32.mrb[0].mxu0
    %2040 = vmatprep.mubr.f32.mxu0 0.0
    %2041 = vmatmul.mubr.f32.gmra.mrb[0].mxu0 %v1479
    %v2042 = vpop.f32.mrb[0].mxu0
    %v2043 = vadd.f32 %v1185, %v2042
    %v2044 = vpop.f32.mrb[0].mxu0
    %2045 = vmatprep.mubr.f32.mxu0 0.0
    %2046 = vmatmul.mubr.f32.gmra.mrb[0].mxu0 %v1482
    %v2047 = vpop.f32.mrb[0].mxu0
    %v2048 = vadd.f32 %v1185, %v2047
    %v2049 = vpop.f32.mrb[0].mxu0
    %2050 = vmatprep.mubr.f32.mxu0 0.0
    %2051 = vmatmul.mubr.f32.gmra.mrb[0].mxu0 %v1485
    %v2052 = vpop.f32.mrb[0].mxu0
    %v2053 = vadd.f32 %v1185, %v2052
    %v2054 = vpop.f32.mrb[0].mxu0
    %2055 = vdwg.mxu0
    %v2056 = vmax.f32 %v1558, 0.0
    %v2057 = vmax.f32 %v1563, 0.0
    %v2058 = vmax.f32 %v1568, 0.0
    %v2059 = vmax.f32 %v1573, 0.0
    %v2060 = vmax.f32 %v1578, 0.0
    %v2061 = vmax.f32 %v1583, 0.0
    %v2062 = vmax.f32 %v1588, 0.0
    %v2063 = vmax.f32 %v1593, 0.0
    %v2064 = vmax.f32 %v1598, 0.0
    %v2065 = vmax.f32 %v1603, 0.0
    %v2066 = vmax.f32 %v1608, 0.0
    %v2067 = vmax.f32 %v1613, 0.0
    %v2068 = vmax.f32 %v1618, 0.0
    %v2069 = vmax.f32 %v1623, 0.0
    %v2070 = vmax.f32 %v1628, 0.0
    %v2071 = vmax.f32 %v1633, 0.0
    %v2072 = vmax.f32 %v1638, 0.0
    %v2073 = vmax.f32 %v1643, 0.0
    %v2074 = vmax.f32 %v1648, 0.0
    %v2075 = vmax.f32 %v1653, 0.0
    %v2076 = vmax.f32 %v1658, 0.0
    %v2077 = vmax.f32 %v1663, 0.0
    %v2078 = vmax.f32 %v1668, 0.0
    %v2079 = vmax.f32 %v1673, 0.0
    %v2080 = vmax.f32 %v1678, 0.0
    %v2081 = vmax.f32 %v1683, 0.0
    %v2082 = vmax.f32 %v1688, 0.0
    %v2083 = vmax.f32 %v1693, 0.0
    %v2084 = vmax.f32 %v1698, 0.0
    %v2085 = vmax.f32 %v1703, 0.0
    %v2086 = vmax.f32 %v1708, 0.0
    %v2087 = vmax.f32 %v1713, 0.0
    %v2088 = vmax.f32 %v1718, 0.0
    %v2089 = vmax.f32 %v1723, 0.0
    %v2090 = vmax.f32 %v1728, 0.0
    %v2091 = vmax.f32 %v1733, 0.0
    %v2092 = vmax.f32 %v1738, 0.0
    %v2093 = vmax.f32 %v1743, 0.0
    %v2094 = vmax.f32 %v1748, 0.0
    %v2095 = vmax.f32 %v1753, 0.0
    %v2096 = vmax.f32 %v1758, 0.0
    %v2097 = vmax.f32 %v1763, 0.0
    %v2098 = vmax.f32 %v1768, 0.0
    %v2099 = vmax.f32 %v1773, 0.0
    %v2100 = vmax.f32 %v1778, 0.0
    %v2101 = vmax.f32 %v1783, 0.0
    %v2102 = vmax.f32 %v1788, 0.0
    %v2103 = vmax.f32 %v1793, 0.0
    %v2104 = vmax.f32 %v1798, 0.0
    %v2105 = vmax.f32 %v1803, 0.0
    %v2106 = vmax.f32 %v1808, 0.0
    %v2107 = vmax.f32 %v1813, 0.0
    %v2108 = vmax.f32 %v1818, 0.0
    %v2109 = vmax.f32 %v1823, 0.0
    %v2110 = vmax.f32 %v1828, 0.0
    %v2111 = vmax.f32 %v1833, 0.0
    %v2112 = vmax.f32 %v1838, 0.0
    %v2113 = vmax.f32 %v1843, 0.0
    %v2114 = vmax.f32 %v1848, 0.0
    %v2115 = vmax.f32 %v1853, 0.0
    %v2116 = vmax.f32 %v1858, 0.0
    %v2117 = vmax.f32 %v1863, 0.0
    %v2118 = vmax.f32 %v1868, 0.0
    %v2119 = vmax.f32 %v1873, 0.0
    %v2120 = vmax.f32 %v1878, 0.0
    %v2121 = vmax.f32 %v1883, 0.0
    %v2122 = vmax.f32 %v1888, 0.0
    %v2123 = vmax.f32 %v1893, 0.0
    %v2124 = vmax.f32 %v1898, 0.0
    %v2125 = vmax.f32 %v1903, 0.0
    %v2126 = vmax.f32 %v1908, 0.0
    %v2127 = vmax.f32 %v1913, 0.0
    %v2128 = vmax.f32 %v1918, 0.0
    %v2129 = vmax.f32 %v1923, 0.0
    %v2130 = vmax.f32 %v1928, 0.0
    %v2131 = vmax.f32 %v1933, 0.0
    %v2132 = vmax.f32 %v1938, 0.0
    %v2133 = vmax.f32 %v1943, 0.0
    %v2134 = vmax.f32 %v1948, 0.0
    %v2135 = vmax.f32 %v1953, 0.0
    %v2136 = vmax.f32 %v1958, 0.0
    %v2137 = vmax.f32 %v1963, 0.0
    %v2138 = vmax.f32 %v1968, 0.0
    %v2139 = vmax.f32 %v1973, 0.0
    %v2140 = vmax.f32 %v1978, 0.0
    %v2141 = vmax.f32 %v1983, 0.0
    %v2142 = vmax.f32 %v1988, 0.0
    %v2143 = vmax.f32 %v1993, 0.0
    %v2144 = vmax.f32 %v1998, 0.0
    %v2145 = vmax.f32 %v2003, 0.0
    %v2146 = vmax.f32 %v2008, 0.0
    %v2147 = vmax.f32 %v2013, 0.0
    %v2148 = vmax.f32 %v2018, 0.0
    %v2149 = vmax.f32 %v2023, 0.0
    %v2150 = vmax.f32 %v2028, 0.0
    %v2151 = vmax.f32 %v2033, 0.0
    %v2152 = vmax.f32 %v2038, 0.0
    %v2153 = vmax.f32 %v2043, 0.0
    %v2154 = vmax.f32 %v2048, 0.0
    %v2155 = vmax.f32 %v2053, 0.0
    %v2156 = vmax.f32 %v2056, %v2081
    %v2157 = vmax.f32 %v2057, %v2082
    %v2158 = vmax.f32 %v2058, %v2083
    %v2159 = vmax.f32 %v2059, %v2084
    %v2160 = vmax.f32 %v2060, %v2085
    %v2161 = vmax.f32 %v2061, %v2086
    %v2162 = vmax.f32 %v2062, %v2087
    %v2163 = vmax.f32 %v2063, %v2088
    %v2164 = vmax.f32 %v2064, %v2089
    %v2165 = vmax.f32 %v2065, %v2090
    %v2166 = vmax.f32 %v2066, %v2091
    %v2167 = vmax.f32 %v2067, %v2092
    %v2168 = vmax.f32 %v2068, %v2093
    %v2169 = vmax.f32 %v2069, %v2094
    %v2170 = vmax.f32 %v2070, %v2095
    %v2171 = vmax.f32 %v2071, %v2096
    %v2172 = vmax.f32 %v2072, %v2097
    %v2173 = vmax.f32 %v2073, %v2098
    %v2174 = vmax.f32 %v2074, %v2099
    %v2175 = vmax.f32 %v2075, %v2100
    %v2176 = vmax.f32 %v2076, %v2101
    %v2177 = vmax.f32 %v2077, %v2102
    %v2178 = vmax.f32 %v2078, %v2103
    %v2179 = vmax.f32 %v2079, %v2104
    %v2180 = vmax.f32 %v2080, %v2105
    %v2181 = vmax.f32 %v2106, %v2131
    %v2182 = vmax.f32 %v2107, %v2132
    %v2183 = vmax.f32 %v2108, %v2133
    %v2184 = vmax.f32 %v2109, %v2134
    %v2185 = vmax.f32 %v2110, %v2135
    %v2186 = vmax.f32 %v2111, %v2136
    %v2187 = vmax.f32 %v2112, %v2137
    %v2188 = vmax.f32 %v2113, %v2138
    %v2189 = vmax.f32 %v2114, %v2139
    %v2190 = vmax.f32 %v2115, %v2140
    %v2191 = vmax.f32 %v2116, %v2141
    %v2192 = vmax.f32 %v2117, %v2142
    %v2193 = vmax.f32 %v2118, %v2143
    %v2194 = vmax.f32 %v2119, %v2144
    %v2195 = vmax.f32 %v2120, %v2145
    %v2196 = vmax.f32 %v2121, %v2146
    %v2197 = vmax.f32 %v2122, %v2147
    %v2198 = vmax.f32 %v2123, %v2148
    %v2199 = vmax.f32 %v2124, %v2149
    %v2200 = vmax.f32 %v2125, %v2150
    %v2201 = vmax.f32 %v2126, %v2151
    %v2202 = vmax.f32 %v2127, %v2152
    %v2203 = vmax.f32 %v2128, %v2153
    %v2204 = vmax.f32 %v2129, %v2154
    %v2205 = vmax.f32 %v2130, %v2155
    %v2206 = vmax.f32 %v2156, %v2181
    %v2207 = vmax.f32 %v2157, %v2182
    %v2208 = vmax.f32 %v2158, %v2183
    %v2209 = vmax.f32 %v2159, %v2184
    %v2210 = vmax.f32 %v2160, %v2185
    %v2211 = vmax.f32 %v2161, %v2186
    %v2212 = vmax.f32 %v2162, %v2187
    %v2213 = vmax.f32 %v2163, %v2188
    %v2214 = vmax.f32 %v2164, %v2189
    %v2215 = vmax.f32 %v2165, %v2190
    %v2216 = vmax.f32 %v2166, %v2191
    %v2217 = vmax.f32 %v2167, %v2192
    %v2218 = vmax.f32 %v2168, %v2193
    %v2219 = vmax.f32 %v2169, %v2194
    %v2220 = vmax.f32 %v2170, %v2195
    %v2221 = vmax.f32 %v2171, %v2196
    %v2222 = vmax.f32 %v2172, %v2197
    %v2223 = vmax.f32 %v2173, %v2198
    %v2224 = vmax.f32 %v2174, %v2199
    %v2225 = vmax.f32 %v2175, %v2200
    %v2226 = vmax.f32 %v2176, %v2201
    %v2227 = vmax.f32 %v2177, %v2202
    %v2228 = vmax.f32 %v2178, %v2203
    %v2229 = vmax.f32 %v2179, %v2204
    %v2230 = vmax.f32 %v2180, %v2205
    %v2231 = vld [vmem:[%s4] sm:$0xff]
    %v2232 = vld [vmem:[%s4 + $0x8] sm:$0xff]
    %v2233 = vld [vmem:[%s4 + $0x10] sm:$0xf]
    %v2234 = vld [vmem:[%s4 + $0x18] sm:$0xff]
    %v2235 = vld [vmem:[%s4 + $0x20] sm:$0xff]
    %v2236 = vld [vmem:[%s4 + $0x28] sm:$0xf]
    %vm2237 = vcmask 162816
    %v2239 = vsel %vm2237, %v2207, 0
    %v2242 = vsel %vm1487, %v2236, 0
    %2244 = vmatprep.subr.mxu0 0.0
    %2245 = vmatpush1.msra.mxu0 %v2234
    %2246 = vmatprep.subr.mxu0 0.0
    %2247 = vmatpush1.msra.mxu0 %v2235
    %2248 = vmatprep.subr.mxu0 0.0
    %2249 = vmatpush1.msra.mxu0 %v2242
    %2250 = vmatprep.subr.mxu0 0.0
    %2251 = vmatpush1.msra.mxu0 0.0
    %2252 = vmatprep.subr.mxu0 0.0
    %2253 = vmatpush1.msra.mxu0 0.0
    %2254 = vmatprep.subr.mxu0 0.0
    %2255 = vmatpush1.msra.mxu0 0.0
    %2256 = vmatprep.subr.mxu0 0.0
    %2257 = vmatpush1.msra.mxu0 0.0
    %2258 = vmatprep.subr.mxu0 0.0
    %2259 = vmatpush1.msra.mxu0 0.0
    %2260 = vmatprep.subr.mxu0 0.0
    %2261 = vmatpush1.msra.mxu0 0.0
    %2262 = vmatprep.subr.mxu0 0.0
    %2263 = vmatpush1.msra.mxu0 0.0
    %2264 = vmatprep.subr.mxu0 0.0
    %2265 = vmatpush1.msra.mxu0 0.0
    %2266 = vmatprep.subr.mxu0 0.0
    %2267 = vmatpush1.msra.mxu0 0.0
    %2268 = vmatprep.subr.mxu0 0.0
    %2269 = vmatpush1.msra.mxu0 0.0
    %2270 = vmatprep.subr.mxu0 0.0
    %2271 = vmatpush1.msra.mxu0 0.0
    %2272 = vmatprep.subr.mxu0 0.0
    %2273 = vmatpush1.msra.mxu0 0.0
    %2274 = vmatprep.subr.mxu0 0.0
    %2275 = vmatpush1.msra.mxu0 0.0
    %2276 = vmatprep.subr.mxu0 0.0
    %2277 = vmatpush1.msra.mxu0 0.0
    %2278 = vmatprep.subr.mxu0 0.0
    %2279 = vmatpush1.msra.mxu0 0.0
    %2280 = vmatprep.subr.mxu0 0.0
    %2281 = vmatpush1.msra.mxu0 0.0
    %2282 = vmatprep.subr.mxu0 0.0
    %2283 = vmatpush1.msra.mxu0 0.0
    %2284 = vmatprep.subr.mxu0 0.0
    %2285 = vmatpush1.msra.mxu0 0.0
    %2286 = vmatprep.subr.mxu0 0.0
    %2287 = vmatpush1.msra.mxu0 0.0
    %2288 = vmatprep.subr.mxu0 0.0
    %2289 = vmatpush1.msra.mxu0 0.0
    %2290 = vmatprep.subr.mxu0 0.0
    %2291 = vmatpush1.msra.mxu0 0.0
    %2292 = vmatprep.subr.mxu0 0.0
    %2293 = vmatpush1.msra.mxu0 0.0
    %2294 = vmatprep.subr.mxu0 0.0
    %2295 = vmatpush1.msra.mxu0 0.0
    %2296 = vmatprep.subr.mxu0 0.0
    %2297 = vmatpush1.msra.mxu0 0.0
    %2298 = vmatprep.subr.mxu0 0.0
    %2299 = vmatpush1.msra.mxu0 0.0
    %2300 = vmatprep.subr.mxu0 0.0
    %2301 = vmatpush1.msra.mxu0 0.0
    %2302 = vmatprep.subr.mxu0 0.0
    %2303 = vmatpush1.msra.mxu0 0.0
    %2304 = vmatprep.subr.mxu0 0.0
    %2305 = vmatpush1.msra.mxu0 0.0
    %2306 = vmatprep.subr.mxu0 0.0
    %2307 = vmatpush1.msra.mxu0 0.0
    %2308 = vmatprep.mubr.f32.mxu0 0.0
    %2309 = vmatmul.mubr.f32.gmra.mrb[0].mxu0 %v2239
    %v2310 = vpop.f32.mrb[0].mxu0
    %v2311 = vadd.f32 0.0, %v2310
    %v2312 = vpop.f32.mrb[0].mxu0
    %2313 = vdwg.mxu0
    %v2314 = vld [vmem:[%s4 + $0x30] sm:$0xff]
    %v2315 = vld [vmem:[%s4 + $0x38] sm:$0xff]
    %v2316 = vld [vmem:[%s4 + $0x40] sm:$0xf]
    %v2317 = vld [vmem:[%s4 + $0x48] sm:$0xff]
    %v2318 = vld [vmem:[%s4 + $0x50] sm:$0xff]
    %v2319 = vld [vmem:[%s4 + $0x58] sm:$0xf]
    %v2321 = vsel %vm2237, %v2209, 0
    %v2324 = vsel %vm1487, %v2319, 0
    %2326 = vmatprep.subr.mxu0 0.0
    %2327 = vmatpush1.msra.mxu0 %v2317
    %2328 = vmatprep.subr.mxu0 0.0
    %2329 = vmatpush1.msra.mxu0 %v2318
    %2330 = vmatprep.subr.mxu0 0.0
    %2331 = vmatpush1.msra.mxu0 %v2324
    %2332 = vmatprep.subr.mxu0 0.0
    %2333 = vmatpush1.msra.mxu0 0.0
    %2334 = vmatprep.subr.mxu0 0.0
    %2335 = vmatpush1.msra.mxu0 0.0
    %2336 = vmatprep.subr.mxu0 0.0
    %2337 = vmatpush1.msra.mxu0 0.0
    %2338 = vmatprep.subr.mxu0 0.0
    %2339 = vmatpush1.msra.mxu0 0.0
    %2340 = vmatprep.subr.mxu0 0.0
    %2341 = vmatpush1.msra.mxu0 0.0
    %2342 = vmatprep.subr.mxu0 0.0
    %2343 = vmatpush1.msra.mxu0 0.0
    %2344 = vmatprep.subr.mxu0 0.0
    %2345 = vmatpush1.msra.mxu0 0.0
    %2346 = vmatprep.subr.mxu0 0.0
    %2347 = vmatpush1.msra.mxu0 0.0
    %2348 = vmatprep.subr.mxu0 0.0
    %2349 = vmatpush1.msra.mxu0 0.0
    %2350 = vmatprep.subr.mxu0 0.0
    %2351 = vmatpush1.msra.mxu0 0.0
    %2352 = vmatprep.subr.mxu0 0.0
    %2353 = vmatpush1.msra.mxu0 0.0
    %2354 = vmatprep.subr.mxu0 0.0
    %2355 = vmatpush1.msra.mxu0 0.0
    %2356 = vmatprep.subr.mxu0 0.0
    %2357 = vmatpush1.msra.mxu0 0.0
    %2358 = vmatprep.subr.mxu0 0.0
    %2359 = vmatpush1.msra.mxu0 0.0
    %2360 = vmatprep.subr.mxu0 0.0
    %2361 = vmatpush1.msra.mxu0 0.0
    %2362 = vmatprep.subr.mxu0 0.0
    %2363 = vmatpush1.msra.mxu0 0.0
    %2364 = vmatprep.subr.mxu0 0.0
    %2365 = vmatpush1.msra.mxu0 0.0
    %2366 = vmatprep.subr.mxu0 0.0
    %2367 = vmatpush1.msra.mxu0 0.0
    %2368 = vmatprep.subr.mxu0 0.0
    %2369 = vmatpush1.msra.mxu0 0.0
    %2370 = vmatprep.subr.mxu0 0.0
    %2371 = vmatpush1.msra.mxu0 0.0
    %2372 = vmatprep.subr.mxu0 0.0
    %2373 = vmatpush1.msra.mxu0 0.0
    %2374 = vmatprep.subr.mxu0 0.0
    %2375 = vmatpush1.msra.mxu0 0.0
    %2376 = vmatprep.subr.mxu0 0.0
    %2377 = vmatpush1.msra.mxu0 0.0
    %2378 = vmatprep.subr.mxu0 0.0
    %2379 = vmatpush1.msra.mxu0 0.0
    %2380 = vmatprep.subr.mxu0 0.0
    %2381 = vmatpush1.msra.mxu0 0.0
    %2382 = vmatprep.subr.mxu0 0.0
    %2383 = vmatpush1.msra.mxu0 0.0
    %2384 = vmatprep.subr.mxu0 0.0
    %2385 = vmatpush1.msra.mxu0 0.0
    %2386 = vmatprep.subr.mxu0 0.0
    %2387 = vmatpush1.msra.mxu0 0.0
    %2388 = vmatprep.subr.mxu0 0.0
    %2389 = vmatpush1.msra.mxu0 0.0
    %2390 = vmatprep.mubr.f32.mxu0 0.0
    %2391 = vmatmul.mubr.f32.gmra.mrb[0].mxu0 %v2321
    %v2392 = vpop.f32.mrb[0].mxu0
    %v2393 = vadd.f32 0.0, %v2392
    %v2394 = vpop.f32.mrb[0].mxu0
    %2395 = vdwg.mxu0
    %v2396 = vld [vmem:[%s4 + $0x60] sm:$0xff]
    %v2397 = vld [vmem:[%s4 + $0x68] sm:$0xff]
    %v2398 = vld [vmem:[%s4 + $0x70] sm:$0xf]
    %v2399 = vld [vmem:[%s4 + $0x78] sm:$0xff]
    %v2400 = vld [vmem:[%s4 + $0x80] sm:$0xff]
    %v2401 = vld [vmem:[%s4 + $0x88] sm:$0xf]
    %v2403 = vsel %vm2237, %v2211, 0
    %v2406 = vsel %vm1487, %v2401, 0
    %2408 = vmatprep.subr.mxu0 0.0
    %2409 = vmatpush1.msra.mxu0 %v2399
    %2410 = vmatprep.subr.mxu0 0.0
    %2411 = vmatpush1.msra.mxu0 %v2400
    %2412 = vmatprep.subr.mxu0 0.0
    %2413 = vmatpush1.msra.mxu0 %v2406
    %2414 = vmatprep.subr.mxu0 0.0
    %2415 = vmatpush1.msra.mxu0 0.0
    %2416 = vmatprep.subr.mxu0 0.0
    %2417 = vmatpush1.msra.mxu0 0.0
    %2418 = vmatprep.subr.mxu0 0.0
    %2419 = vmatpush1.msra.mxu0 0.0
    %2420 = vmatprep.subr.mxu0 0.0
    %2421 = vmatpush1.msra.mxu0 0.0
    %2422 = vmatprep.subr.mxu0 0.0
    %2423 = vmatpush1.msra.mxu0 0.0
    %2424 = vmatprep.subr.mxu0 0.0
    %2425 = vmatpush1.msra.mxu0 0.0
    %2426 = vmatprep.subr.mxu0 0.0
    %2427 = vmatpush1.msra.mxu0 0.0
    %2428 = vmatprep.subr.mxu0 0.0
    %2429 = vmatpush1.msra.mxu0 0.0
    %2430 = vmatprep.subr.mxu0 0.0
    %2431 = vmatpush1.msra.mxu0 0.0
    %2432 = vmatprep.subr.mxu0 0.0
    %2433 = vmatpush1.msra.mxu0 0.0
    %2434 = vmatprep.subr.mxu0 0.0
    %2435 = vmatpush1.msra.mxu0 0.0
    %2436 = vmatprep.subr.mxu0 0.0
    %2437 = vmatpush1.msra.mxu0 0.0
    %2438 = vmatprep.subr.mxu0 0.0
    %2439 = vmatpush1.msra.mxu0 0.0
    %2440 = vmatprep.subr.mxu0 0.0
    %2441 = vmatpush1.msra.mxu0 0.0
    %2442 = vmatprep.subr.mxu0 0.0
    %2443 = vmatpush1.msra.mxu0 0.0
    %2444 = vmatprep.subr.mxu0 0.0
    %2445 = vmatpush1.msra.mxu0 0.0
    %2446 = vmatprep.subr.mxu0 0.0
    %2447 = vmatpush1.msra.mxu0 0.0
    %2448 = vmatprep.subr.mxu0 0.0
    %2449 = vmatpush1.msra.mxu0 0.0
    %2450 = vmatprep.subr.mxu0 0.0
    %2451 = vmatpush1.msra.mxu0 0.0
    %2452 = vmatprep.subr.mxu0 0.0
    %2453 = vmatpush1.msra.mxu0 0.0
    %2454 = vmatprep.subr.mxu0 0.0
    %2455 = vmatpush1.msra.mxu0 0.0
    %2456 = vmatprep.subr.mxu0 0.0
    %2457 = vmatpush1.msra.mxu0 0.0
    %2458 = vmatprep.subr.mxu0 0.0
    %2459 = vmatpush1.msra.mxu0 0.0
    %2460 = vmatprep.subr.mxu0 0.0
    %2461 = vmatpush1.msra.mxu0 0.0
    %2462 = vmatprep.subr.mxu0 0.0
    %2463 = vmatpush1.msra.mxu0 0.0
    %2464 = vmatprep.subr.mxu0 0.0
    %2465 = vmatpush1.msra.mxu0 0.0
    %2466 = vmatprep.subr.mxu0 0.0
    %2467 = vmatpush1.msra.mxu0 0.0
    %2468 = vmatprep.subr.mxu0 0.0
    %2469 = vmatpush1.msra.mxu0 0.0
    %2470 = vmatprep.subr.mxu0 0.0
    %2471 = vmatpush1.msra.mxu0 0.0
    %2472 = vmatprep.mubr.f32.mxu0 0.0
    %2473 = vmatmul.mubr.f32.gmra.mrb[0].mxu0 %v2403
    %v2474 = vpop.f32.mrb[0].mxu0
    %v2475 = vadd.f32 0.0, %v2474
    %v2476 = vpop.f32.mrb[0].mxu0
    %2477 = vdwg.mxu0
    %v2478 = vld [vmem:[%s4 + $0x90] sm:$0xff]
    %v2479 = vld [vmem:[%s4 + $0x98] sm:$0xff]
    %v2480 = vld [vmem:[%s4 + $0xa0] sm:$0xf]
    %v2481 = vld [vmem:[%s4 + $0xa8] sm:$0xff]
    %v2482 = vld [vmem:[%s4 + $0xb0] sm:$0xff]
    %v2483 = vld [vmem:[%s4 + $0xb8] sm:$0xf]
    %v2485 = vsel %vm2237, %v2213, 0
    %v2488 = vsel %vm1487, %v2483, 0
    %2490 = vmatprep.subr.mxu0 0.0
    %2491 = vmatpush1.msra.mxu0 %v2481
    %2492 = vmatprep.subr.mxu0 0.0
    %2493 = vmatpush1.msra.mxu0 %v2482
    %2494 = vmatprep.subr.mxu0 0.0
    %2495 = vmatpush1.msra.mxu0 %v2488
    %2496 = vmatprep.subr.mxu0 0.0
    %2497 = vmatpush1.msra.mxu0 0.0
    %2498 = vmatprep.subr.mxu0 0.0
    %2499 = vmatpush1.msra.mxu0 0.0
    %2500 = vmatprep.subr.mxu0 0.0
    %2501 = vmatpush1.msra.mxu0 0.0
    %2502 = vmatprep.subr.mxu0 0.0
    %2503 = vmatpush1.msra.mxu0 0.0
    %2504 = vmatprep.subr.mxu0 0.0
    %2505 = vmatpush1.msra.mxu0 0.0
    %2506 = vmatprep.subr.mxu0 0.0
    %2507 = vmatpush1.msra.mxu0 0.0
    %2508 = vmatprep.subr.mxu0 0.0
    %2509 = vmatpush1.msra.mxu0 0.0
    %2510 = vmatprep.subr.mxu0 0.0
    %2511 = vmatpush1.msra.mxu0 0.0
    %2512 = vmatprep.subr.mxu0 0.0
    %2513 = vmatpush1.msra.mxu0 0.0
    %2514 = vmatprep.subr.mxu0 0.0
    %2515 = vmatpush1.msra.mxu0 0.0
    %2516 = vmatprep.subr.mxu0 0.0
    %2517 = vmatpush1.msra.mxu0 0.0
    %2518 = vmatprep.subr.mxu0 0.0
    %2519 = vmatpush1.msra.mxu0 0.0
    %2520 = vmatprep.subr.mxu0 0.0
    %2521 = vmatpush1.msra.mxu0 0.0
    %2522 = vmatprep.subr.mxu0 0.0
    %2523 = vmatpush1.msra.mxu0 0.0
    %2524 = vmatprep.subr.mxu0 0.0
    %2525 = vmatpush1.msra.mxu0 0.0
    %2526 = vmatprep.subr.mxu0 0.0
    %2527 = vmatpush1.msra.mxu0 0.0
    %2528 = vmatprep.subr.mxu0 0.0
    %2529 = vmatpush1.msra.mxu0 0.0
    %2530 = vmatprep.subr.mxu0 0.0
    %2531 = vmatpush1.msra.mxu0 0.0
    %2532 = vmatprep.subr.mxu0 0.0
    %2533 = vmatpush1.msra.mxu0 0.0
    %2534 = vmatprep.subr.mxu0 0.0
    %2535 = vmatpush1.msra.mxu0 0.0
    %2536 = vmatprep.subr.mxu0 0.0
    %2537 = vmatpush1.msra.mxu0 0.0
    %2538 = vmatprep.subr.mxu0 0.0
    %2539 = vmatpush1.msra.mxu0 0.0
    %2540 = vmatprep.subr.mxu0 0.0
    %2541 = vmatpush1.msra.mxu0 0.0
    %2542 = vmatprep.subr.mxu0 0.0
    %2543 = vmatpush1.msra.mxu0 0.0
    %2544 = vmatprep.subr.mxu0 0.0
    %2545 = vmatpush1.msra.mxu0 0.0
    %2546 = vmatprep.subr.mxu0 0.0
    %2547 = vmatpush1.msra.mxu0 0.0
    %2548 = vmatprep.subr.mxu0 0.0
    %2549 = vmatpush1.msra.mxu0 0.0
    %2550 = vmatprep.subr.mxu0 0.0
    %2551 = vmatpush1.msra.mxu0 0.0
    %2552 = vmatprep.subr.mxu0 0.0
    %2553 = vmatpush1.msra.mxu0 0.0
    %2554 = vmatprep.mubr.f32.mxu0 0.0
    %2555 = vmatmul.mubr.f32.gmra.mrb[0].mxu0 %v2485
    %v2556 = vpop.f32.mrb[0].mxu0
    %v2557 = vadd.f32 0.0, %v2556
    %v2558 = vpop.f32.mrb[0].mxu0
    %2559 = vdwg.mxu0
    %v2560 = vld [vmem:[%s4 + $0xc0] sm:$0xff]
    %v2561 = vld [vmem:[%s4 + $0xc8] sm:$0xff]
    %v2562 = vld [vmem:[%s4 + $0xd0] sm:$0xf]
    %v2563 = vld [vmem:[%s4 + $0xd8] sm:$0xff]
    %v2564 = vld [vmem:[%s4 + $0xe0] sm:$0xff]
    %v2565 = vld [vmem:[%s4 + $0xe8] sm:$0xf]
    %v2567 = vsel %vm2237, %v2215, 0
    %v2570 = vsel %vm1487, %v2565, 0
    %2572 = vmatprep.subr.mxu0 0.0
    %2573 = vmatpush1.msra.mxu0 %v2563
    %2574 = vmatprep.subr.mxu0 0.0
    %2575 = vmatpush1.msra.mxu0 %v2564
    %2576 = vmatprep.subr.mxu0 0.0
    %2577 = vmatpush1.msra.mxu0 %v2570
    %2578 = vmatprep.subr.mxu0 0.0
    %2579 = vmatpush1.msra.mxu0 0.0
    %2580 = vmatprep.subr.mxu0 0.0
    %2581 = vmatpush1.msra.mxu0 0.0
    %2582 = vmatprep.subr.mxu0 0.0
    %2583 = vmatpush1.msra.mxu0 0.0
    %2584 = vmatprep.subr.mxu0 0.0
    %2585 = vmatpush1.msra.mxu0 0.0
    %2586 = vmatprep.subr.mxu0 0.0
    %2587 = vmatpush1.msra.mxu0 0.0
    %2588 = vmatprep.subr.mxu0 0.0
    %2589 = vmatpush1.msra.mxu0 0.0
    %2590 = vmatprep.subr.mxu0 0.0
    %2591 = vmatpush1.msra.mxu0 0.0
    %2592 = vmatprep.subr.mxu0 0.0
    %2593 = vmatpush1.msra.mxu0 0.0
    %2594 = vmatprep.subr.mxu0 0.0
    %2595 = vmatpush1.msra.mxu0 0.0
    %2596 = vmatprep.subr.mxu0 0.0
    %2597 = vmatpush1.msra.mxu0 0.0
    %2598 = vmatprep.subr.mxu0 0.0
    %2599 = vmatpush1.msra.mxu0 0.0
    %2600 = vmatprep.subr.mxu0 0.0
    %2601 = vmatpush1.msra.mxu0 0.0
    %2602 = vmatprep.subr.mxu0 0.0
    %2603 = vmatpush1.msra.mxu0 0.0
    %2604 = vmatprep.subr.mxu0 0.0
    %2605 = vmatpush1.msra.mxu0 0.0
    %2606 = vmatprep.subr.mxu0 0.0
    %2607 = vmatpush1.msra.mxu0 0.0
    %2608 = vmatprep.subr.mxu0 0.0
    %2609 = vmatpush1.msra.mxu0 0.0
    %2610 = vmatprep.subr.mxu0 0.0
    %2611 = vmatpush1.msra.mxu0 0.0
    %2612 = vmatprep.subr.mxu0 0.0
    %2613 = vmatpush1.msra.mxu0 0.0
    %2614 = vmatprep.subr.mxu0 0.0
    %2615 = vmatpush1.msra.mxu0 0.0
    %2616 = vmatprep.subr.mxu0 0.0
    %2617 = vmatpush1.msra.mxu0 0.0
    %2618 = vmatprep.subr.mxu0 0.0
    %2619 = vmatpush1.msra.mxu0 0.0
    %2620 = vmatprep.subr.mxu0 0.0
    %2621 = vmatpush1.msra.mxu0 0.0
    %2622 = vmatprep.subr.mxu0 0.0
    %2623 = vmatpush1.msra.mxu0 0.0
    %2624 = vmatprep.subr.mxu0 0.0
    %2625 = vmatpush1.msra.mxu0 0.0
    %2626 = vmatprep.subr.mxu0 0.0
    %2627 = vmatpush1.msra.mxu0 0.0
    %2628 = vmatprep.subr.mxu0 0.0
    %2629 = vmatpush1.msra.mxu0 0.0
    %2630 = vmatprep.subr.mxu0 0.0
    %2631 = vmatpush1.msra.mxu0 0.0
    %2632 = vmatprep.subr.mxu0 0.0
    %2633 = vmatpush1.msra.mxu0 0.0
    %2634 = vmatprep.subr.mxu0 0.0
    %2635 = vmatpush1.msra.mxu0 0.0
    %2636 = vmatprep.mubr.f32.mxu0 0.0
    %2637 = vmatmul.mubr.f32.gmra.mrb[0].mxu0 %v2567
    %v2638 = vpop.f32.mrb[0].mxu0
    %v2639 = vadd.f32 0.0, %v2638
    %v2640 = vpop.f32.mrb[0].mxu0
    %2641 = vdwg.mxu0
    %v2642 = vld [vmem:[%s4 + $0xf0] sm:$0xff]
    %v2643 = vld [vmem:[%s4 + $0xf8] sm:$0xff]
    %v2644 = vld [vmem:[%s4 + $0x100] sm:$0xf]
    %v2645 = vld [vmem:[%s4 + $0x108] sm:$0xff]
    %v2646 = vld [vmem:[%s4 + $0x110] sm:$0xff]
    %v2647 = vld [vmem:[%s4 + $0x118] sm:$0xf]
    %v2649 = vsel %vm2237, %v2217, 0
    %v2652 = vsel %vm1487, %v2647, 0
    %2654 = vmatprep.subr.mxu0 0.0
    %2655 = vmatpush1.msra.mxu0 %v2645
    %2656 = vmatprep.subr.mxu0 0.0
    %2657 = vmatpush1.msra.mxu0 %v2646
    %2658 = vmatprep.subr.mxu0 0.0
    %2659 = vmatpush1.msra.mxu0 %v2652
    %2660 = vmatprep.subr.mxu0 0.0
    %2661 = vmatpush1.msra.mxu0 0.0
    %2662 = vmatprep.subr.mxu0 0.0
    %2663 = vmatpush1.msra.mxu0 0.0
    %2664 = vmatprep.subr.mxu0 0.0
    %2665 = vmatpush1.msra.mxu0 0.0
    %2666 = vmatprep.subr.mxu0 0.0
    %2667 = vmatpush1.msra.mxu0 0.0
    %2668 = vmatprep.subr.mxu0 0.0
    %2669 = vmatpush1.msra.mxu0 0.0
    %2670 = vmatprep.subr.mxu0 0.0
    %2671 = vmatpush1.msra.mxu0 0.0
    %2672 = vmatprep.subr.mxu0 0.0
    %2673 = vmatpush1.msra.mxu0 0.0
    %2674 = vmatprep.subr.mxu0 0.0
    %2675 = vmatpush1.msra.mxu0 0.0
    %2676 = vmatprep.subr.mxu0 0.0
    %2677 = vmatpush1.msra.mxu0 0.0
    %2678 = vmatprep.subr.mxu0 0.0
    %2679 = vmatpush1.msra.mxu0 0.0
    %2680 = vmatprep.subr.mxu0 0.0
    %2681 = vmatpush1.msra.mxu0 0.0
    %2682 = vmatprep.subr.mxu0 0.0
    %2683 = vmatpush1.msra.mxu0 0.0
    %2684 = vmatprep.subr.mxu0 0.0
    %2685 = vmatpush1.msra.mxu0 0.0
    %2686 = vmatprep.subr.mxu0 0.0
    %2687 = vmatpush1.msra.mxu0 0.0
    %2688 = vmatprep.subr.mxu0 0.0
    %2689 = vmatpush1.msra.mxu0 0.0
    %2690 = vmatprep.subr.mxu0 0.0
    %2691 = vmatpush1.msra.mxu0 0.0
    %2692 = vmatprep.subr.mxu0 0.0
    %2693 = vmatpush1.msra.mxu0 0.0
    %2694 = vmatprep.subr.mxu0 0.0
    %2695 = vmatpush1.msra.mxu0 0.0
    %2696 = vmatprep.subr.mxu0 0.0
    %2697 = vmatpush1.msra.mxu0 0.0
    %2698 = vmatprep.subr.mxu0 0.0
    %2699 = vmatpush1.msra.mxu0 0.0
    %2700 = vmatprep.subr.mxu0 0.0
    %2701 = vmatpush1.msra.mxu0 0.0
    %2702 = vmatprep.subr.mxu0 0.0
    %2703 = vmatpush1.msra.mxu0 0.0
    %2704 = vmatprep.subr.mxu0 0.0
    %2705 = vmatpush1.msra.mxu0 0.0
    %2706 = vmatprep.subr.mxu0 0.0
    %2707 = vmatpush1.msra.mxu0 0.0
    %2708 = vmatprep.subr.mxu0 0.0
    %2709 = vmatpush1.msra.mxu0 0.0
    %2710 = vmatprep.subr.mxu0 0.0
    %2711 = vmatpush1.msra.mxu0 0.0
    %2712 = vmatprep.subr.mxu0 0.0
    %2713 = vmatpush1.msra.mxu0 0.0
    %2714 = vmatprep.subr.mxu0 0.0
    %2715 = vmatpush1.msra.mxu0 0.0
    %2716 = vmatprep.subr.mxu0 0.0
    %2717 = vmatpush1.msra.mxu0 0.0
    %2718 = vmatprep.mubr.f32.mxu0 0.0
    %2719 = vmatmul.mubr.f32.gmra.mrb[0].mxu0 %v2649
    %v2720 = vpop.f32.mrb[0].mxu0
    %v2721 = vadd.f32 0.0, %v2720
    %v2722 = vpop.f32.mrb[0].mxu0
    %2723 = vdwg.mxu0
    %v2724 = vld [vmem:[%s4 + $0x120] sm:$0xff]
    %v2725 = vld [vmem:[%s4 + $0x128] sm:$0xff]
    %v2726 = vld [vmem:[%s4 + $0x130] sm:$0xf]
    %v2727 = vld [vmem:[%s4 + $0x138] sm:$0xff]
    %v2728 = vld [vmem:[%s4 + $0x140] sm:$0xff]
    %v2729 = vld [vmem:[%s4 + $0x148] sm:$0xf]
    %v2731 = vsel %vm2237, %v2219, 0
    %v2734 = vsel %vm1487, %v2729, 0
    %2736 = vmatprep.subr.mxu0 0.0
    %2737 = vmatpush1.msra.mxu0 %v2727
    %2738 = vmatprep.subr.mxu0 0.0
    %2739 = vmatpush1.msra.mxu0 %v2728
    %2740 = vmatprep.subr.mxu0 0.0
    %2741 = vmatpush1.msra.mxu0 %v2734
    %2742 = vmatprep.subr.mxu0 0.0
    %2743 = vmatpush1.msra.mxu0 0.0
    %2744 = vmatprep.subr.mxu0 0.0
    %2745 = vmatpush1.msra.mxu0 0.0
    %2746 = vmatprep.subr.mxu0 0.0
    %2747 = vmatpush1.msra.mxu0 0.0
    %2748 = vmatprep.subr.mxu0 0.0
    %2749 = vmatpush1.msra.mxu0 0.0
    %2750 = vmatprep.subr.mxu0 0.0
    %2751 = vmatpush1.msra.mxu0 0.0
    %2752 = vmatprep.subr.mxu0 0.0
    %2753 = vmatpush1.msra.mxu0 0.0
    %2754 = vmatprep.subr.mxu0 0.0
    %2755 = vmatpush1.msra.mxu0 0.0
    %2756 = vmatprep.subr.mxu0 0.0
    %2757 = vmatpush1.msra.mxu0 0.0
    %2758 = vmatprep.subr.mxu0 0.0
    %2759 = vmatpush1.msra.mxu0 0.0
    %2760 = vmatprep.subr.mxu0 0.0
    %2761 = vmatpush1.msra.mxu0 0.0
    %2762 = vmatprep.subr.mxu0 0.0
    %2763 = vmatpush1.msra.mxu0 0.0
    %2764 = vmatprep.subr.mxu0 0.0
    %2765 = vmatpush1.msra.mxu0 0.0
    %2766 = vmatprep.subr.mxu0 0.0
    %2767 = vmatpush1.msra.mxu0 0.0
    %2768 = vmatprep.subr.mxu0 0.0
    %2769 = vmatpush1.msra.mxu0 0.0
    %2770 = vmatprep.subr.mxu0 0.0
    %2771 = vmatpush1.msra.mxu0 0.0
    %2772 = vmatprep.subr.mxu0 0.0
    %2773 = vmatpush1.msra.mxu0 0.0
    %2774 = vmatprep.subr.mxu0 0.0
    %2775 = vmatpush1.msra.mxu0 0.0
    %2776 = vmatprep.subr.mxu0 0.0
    %2777 = vmatpush1.msra.mxu0 0.0
    %2778 = vmatprep.subr.mxu0 0.0
    %2779 = vmatpush1.msra.mxu0 0.0
    %2780 = vmatprep.subr.mxu0 0.0
    %2781 = vmatpush1.msra.mxu0 0.0
    %2782 = vmatprep.subr.mxu0 0.0
    %2783 = vmatpush1.msra.mxu0 0.0
    %2784 = vmatprep.subr.mxu0 0.0
    %2785 = vmatpush1.msra.mxu0 0.0
    %2786 = vmatprep.subr.mxu0 0.0
    %2787 = vmatpush1.msra.mxu0 0.0
    %2788 = vmatprep.subr.mxu0 0.0
    %2789 = vmatpush1.msra.mxu0 0.0
    %2790 = vmatprep.subr.mxu0 0.0
    %2791 = vmatpush1.msra.mxu0 0.0
    %2792 = vmatprep.subr.mxu0 0.0
    %2793 = vmatpush1.msra.mxu0 0.0
    %2794 = vmatprep.subr.mxu0 0.0
    %2795 = vmatpush1.msra.mxu0 0.0
    %2796 = vmatprep.subr.mxu0 0.0
    %2797 = vmatpush1.msra.mxu0 0.0
    %2798 = vmatprep.subr.mxu0 0.0
    %2799 = vmatpush1.msra.mxu0 0.0
    %2800 = vmatprep.mubr.f32.mxu0 0.0
    %2801 = vmatmul.mubr.f32.gmra.mrb[0].mxu0 %v2731
    %v2802 = vpop.f32.mrb[0].mxu0
    %v2803 = vadd.f32 0.0, %v2802
    %v2804 = vpop.f32.mrb[0].mxu0
    %2805 = vdwg.mxu0
    %v2806 = vld [vmem:[%s4 + $0x150] sm:$0xff]
    %v2807 = vld [vmem:[%s4 + $0x158] sm:$0xff]
    %v2808 = vld [vmem:[%s4 + $0x160] sm:$0xf]
    %v2809 = vld [vmem:[%s4 + $0x168] sm:$0xff]
    %v2810 = vld [vmem:[%s4 + $0x170] sm:$0xff]
    %v2811 = vld [vmem:[%s4 + $0x178] sm:$0xf]
    %v2813 = vsel %vm2237, %v2221, 0
    %v2816 = vsel %vm1487, %v2811, 0
    %2818 = vmatprep.subr.mxu0 0.0
    %2819 = vmatpush1.msra.mxu0 %v2809
    %2820 = vmatprep.subr.mxu0 0.0
    %2821 = vmatpush1.msra.mxu0 %v2810
    %2822 = vmatprep.subr.mxu0 0.0
    %2823 = vmatpush1.msra.mxu0 %v2816
    %2824 = vmatprep.subr.mxu0 0.0
    %2825 = vmatpush1.msra.mxu0 0.0
    %2826 = vmatprep.subr.mxu0 0.0
    %2827 = vmatpush1.msra.mxu0 0.0
    %2828 = vmatprep.subr.mxu0 0.0
    %2829 = vmatpush1.msra.mxu0 0.0
    %2830 = vmatprep.subr.mxu0 0.0
    %2831 = vmatpush1.msra.mxu0 0.0
    %2832 = vmatprep.subr.mxu0 0.0
    %2833 = vmatpush1.msra.mxu0 0.0
    %2834 = vmatprep.subr.mxu0 0.0
    %2835 = vmatpush1.msra.mxu0 0.0
    %2836 = vmatprep.subr.mxu0 0.0
    %2837 = vmatpush1.msra.mxu0 0.0
    %2838 = vmatprep.subr.mxu0 0.0
    %2839 = vmatpush1.msra.mxu0 0.0
    %2840 = vmatprep.subr.mxu0 0.0
    %2841 = vmatpush1.msra.mxu0 0.0
    %2842 = vmatprep.subr.mxu0 0.0
    %2843 = vmatpush1.msra.mxu0 0.0
    %2844 = vmatprep.subr.mxu0 0.0
    %2845 = vmatpush1.msra.mxu0 0.0
    %2846 = vmatprep.subr.mxu0 0.0
    %2847 = vmatpush1.msra.mxu0 0.0
    %2848 = vmatprep.subr.mxu0 0.0
    %2849 = vmatpush1.msra.mxu0 0.0
    %2850 = vmatprep.subr.mxu0 0.0
    %2851 = vmatpush1.msra.mxu0 0.0
    %2852 = vmatprep.subr.mxu0 0.0
    %2853 = vmatpush1.msra.mxu0 0.0
    %2854 = vmatprep.subr.mxu0 0.0
    %2855 = vmatpush1.msra.mxu0 0.0
    %2856 = vmatprep.subr.mxu0 0.0
    %2857 = vmatpush1.msra.mxu0 0.0
    %2858 = vmatprep.subr.mxu0 0.0
    %2859 = vmatpush1.msra.mxu0 0.0
    %2860 = vmatprep.subr.mxu0 0.0
    %2861 = vmatpush1.msra.mxu0 0.0
    %2862 = vmatprep.subr.mxu0 0.0
    %2863 = vmatpush1.msra.mxu0 0.0
    %2864 = vmatprep.subr.mxu0 0.0
    %2865 = vmatpush1.msra.mxu0 0.0
    %2866 = vmatprep.subr.mxu0 0.0
    %2867 = vmatpush1.msra.mxu0 0.0
    %2868 = vmatprep.subr.mxu0 0.0
    %2869 = vmatpush1.msra.mxu0 0.0
    %2870 = vmatprep.subr.mxu0 0.0
    %2871 = vmatpush1.msra.mxu0 0.0
    %2872 = vmatprep.subr.mxu0 0.0
    %2873 = vmatpush1.msra.mxu0 0.0
    %2874 = vmatprep.subr.mxu0 0.0
    %2875 = vmatpush1.msra.mxu0 0.0
    %2876 = vmatprep.subr.mxu0 0.0
    %2877 = vmatpush1.msra.mxu0 0.0
    %2878 = vmatprep.subr.mxu0 0.0
    %2879 = vmatpush1.msra.mxu0 0.0
    %2880 = vmatprep.subr.mxu0 0.0
    %2881 = vmatpush1.msra.mxu0 0.0
    %2882 = vmatprep.mubr.f32.mxu0 0.0
    %2883 = vmatmul.mubr.f32.gmra.mrb[0].mxu0 %v2813
    %v2884 = vpop.f32.mrb[0].mxu0
    %v2885 = vadd.f32 0.0, %v2884
    %v2886 = vpop.f32.mrb[0].mxu0
    %2887 = vdwg.mxu0
    %v2888 = vld [vmem:[%s4 + $0x180] sm:$0xff]
    %v2889 = vld [vmem:[%s4 + $0x188] sm:$0xff]
    %v2890 = vld [vmem:[%s4 + $0x190] sm:$0xf]
    %v2891 = vld [vmem:[%s4 + $0x198] sm:$0xff]
    %v2892 = vld [vmem:[%s4 + $0x1a0] sm:$0xff]
    %v2893 = vld [vmem:[%s4 + $0x1a8] sm:$0xf]
    %v2895 = vsel %vm2237, %v2223, 0
    %v2898 = vsel %vm1487, %v2893, 0
    %2900 = vmatprep.subr.mxu0 0.0
    %2901 = vmatpush1.msra.mxu0 %v2891
    %2902 = vmatprep.subr.mxu0 0.0
    %2903 = vmatpush1.msra.mxu0 %v2892
    %2904 = vmatprep.subr.mxu0 0.0
    %2905 = vmatpush1.msra.mxu0 %v2898
    %2906 = vmatprep.subr.mxu0 0.0
    %2907 = vmatpush1.msra.mxu0 0.0
    %2908 = vmatprep.subr.mxu0 0.0
    %2909 = vmatpush1.msra.mxu0 0.0
    %2910 = vmatprep.subr.mxu0 0.0
    %2911 = vmatpush1.msra.mxu0 0.0
    %2912 = vmatprep.subr.mxu0 0.0
    %2913 = vmatpush1.msra.mxu0 0.0
    %2914 = vmatprep.subr.mxu0 0.0
    %2915 = vmatpush1.msra.mxu0 0.0
    %2916 = vmatprep.subr.mxu0 0.0
    %2917 = vmatpush1.msra.mxu0 0.0
    %2918 = vmatprep.subr.mxu0 0.0
    %2919 = vmatpush1.msra.mxu0 0.0
    %2920 = vmatprep.subr.mxu0 0.0
    %2921 = vmatpush1.msra.mxu0 0.0
    %2922 = vmatprep.subr.mxu0 0.0
    %2923 = vmatpush1.msra.mxu0 0.0
    %2924 = vmatprep.subr.mxu0 0.0
    %2925 = vmatpush1.msra.mxu0 0.0
    %2926 = vmatprep.subr.mxu0 0.0
    %2927 = vmatpush1.msra.mxu0 0.0
    %2928 = vmatprep.subr.mxu0 0.0
    %2929 = vmatpush1.msra.mxu0 0.0
    %2930 = vmatprep.subr.mxu0 0.0
    %2931 = vmatpush1.msra.mxu0 0.0
    %2932 = vmatprep.subr.mxu0 0.0
    %2933 = vmatpush1.msra.mxu0 0.0
    %2934 = vmatprep.subr.mxu0 0.0
    %2935 = vmatpush1.msra.mxu0 0.0
    %2936 = vmatprep.subr.mxu0 0.0
    %2937 = vmatpush1.msra.mxu0 0.0
    %2938 = vmatprep.subr.mxu0 0.0
    %2939 = vmatpush1.msra.mxu0 0.0
    %2940 = vmatprep.subr.mxu0 0.0
    %2941 = vmatpush1.msra.mxu0 0.0
    %2942 = vmatprep.subr.mxu0 0.0
    %2943 = vmatpush1.msra.mxu0 0.0
    %2944 = vmatprep.subr.mxu0 0.0
    %2945 = vmatpush1.msra.mxu0 0.0
    %2946 = vmatprep.subr.mxu0 0.0
    %2947 = vmatpush1.msra.mxu0 0.0
    %2948 = vmatprep.subr.mxu0 0.0
    %2949 = vmatpush1.msra.mxu0 0.0
    %2950 = vmatprep.subr.mxu0 0.0
    %2951 = vmatpush1.msra.mxu0 0.0
    %2952 = vmatprep.subr.mxu0 0.0
    %2953 = vmatpush1.msra.mxu0 0.0
    %2954 = vmatprep.subr.mxu0 0.0
    %2955 = vmatpush1.msra.mxu0 0.0
    %2956 = vmatprep.subr.mxu0 0.0
    %2957 = vmatpush1.msra.mxu0 0.0
    %2958 = vmatprep.subr.mxu0 0.0
    %2959 = vmatpush1.msra.mxu0 0.0
    %2960 = vmatprep.subr.mxu0 0.0
    %2961 = vmatpush1.msra.mxu0 0.0
    %2962 = vmatprep.subr.mxu0 0.0
    %2963 = vmatpush1.msra.mxu0 0.0
    %2964 = vmatprep.mubr.f32.mxu0 0.0
    %2965 = vmatmul.mubr.f32.gmra.mrb[0].mxu0 %v2895
    %v2966 = vpop.f32.mrb[0].mxu0
    %v2967 = vadd.f32 0.0, %v2966
    %v2968 = vpop.f32.mrb[0].mxu0
    %2969 = vdwg.mxu0
    %v2970 = vld [vmem:[%s4 + $0x1b0] sm:$0xff]
    %v2971 = vld [vmem:[%s4 + $0x1b8] sm:$0xff]
    %v2972 = vld [vmem:[%s4 + $0x1c0] sm:$0xf]
    %v2973 = vld [vmem:[%s4 + $0x1c8] sm:$0xff]
    %v2974 = vld [vmem:[%s4 + $0x1d0] sm:$0xff]
    %v2975 = vld [vmem:[%s4 + $0x1d8] sm:$0xf]
    %v2977 = vsel %vm2237, %v2225, 0
    %v2980 = vsel %vm1487, %v2975, 0
    %2982 = vmatprep.subr.mxu0 0.0
    %2983 = vmatpush1.msra.mxu0 %v2973
    %2984 = vmatprep.subr.mxu0 0.0
    %2985 = vmatpush1.msra.mxu0 %v2974
    %2986 = vmatprep.subr.mxu0 0.0
    %2987 = vmatpush1.msra.mxu0 %v2980
    %2988 = vmatprep.subr.mxu0 0.0
    %2989 = vmatpush1.msra.mxu0 0.0
    %2990 = vmatprep.subr.mxu0 0.0
    %2991 = vmatpush1.msra.mxu0 0.0
    %2992 = vmatprep.subr.mxu0 0.0
    %2993 = vmatpush1.msra.mxu0 0.0
    %2994 = vmatprep.subr.mxu0 0.0
    %2995 = vmatpush1.msra.mxu0 0.0
    %2996 = vmatprep.subr.mxu0 0.0
    %2997 = vmatpush1.msra.mxu0 0.0
    %2998 = vmatprep.subr.mxu0 0.0
    %2999 = vmatpush1.msra.mxu0 0.0
    %3000 = vmatprep.subr.mxu0 0.0
    %3001 = vmatpush1.msra.mxu0 0.0
    %3002 = vmatprep.subr.mxu0 0.0
    %3003 = vmatpush1.msra.mxu0 0.0
    %3004 = vmatprep.subr.mxu0 0.0
    %3005 = vmatpush1.msra.mxu0 0.0
    %3006 = vmatprep.subr.mxu0 0.0
    %3007 = vmatpush1.msra.mxu0 0.0
    %3008 = vmatprep.subr.mxu0 0.0
    %3009 = vmatpush1.msra.mxu0 0.0
    %3010 = vmatprep.subr.mxu0 0.0
    %3011 = vmatpush1.msra.mxu0 0.0
    %3012 = vmatprep.subr.mxu0 0.0
    %3013 = vmatpush1.msra.mxu0 0.0
    %3014 = vmatprep.subr.mxu0 0.0
    %3015 = vmatpush1.msra.mxu0 0.0
    %3016 = vmatprep.subr.mxu0 0.0
    %3017 = vmatpush1.msra.mxu0 0.0
    %3018 = vmatprep.subr.mxu0 0.0
    %3019 = vmatpush1.msra.mxu0 0.0
    %3020 = vmatprep.subr.mxu0 0.0
    %3021 = vmatpush1.msra.mxu0 0.0
    %3022 = vmatprep.subr.mxu0 0.0
    %3023 = vmatpush1.msra.mxu0 0.0
    %3024 = vmatprep.subr.mxu0 0.0
    %3025 = vmatpush1.msra.mxu0 0.0
    %3026 = vmatprep.subr.mxu0 0.0
    %3027 = vmatpush1.msra.mxu0 0.0
    %3028 = vmatprep.subr.mxu0 0.0
    %3029 = vmatpush1.msra.mxu0 0.0
    %3030 = vmatprep.subr.mxu0 0.0
    %3031 = vmatpush1.msra.mxu0 0.0
    %3032 = vmatprep.subr.mxu0 0.0
    %3033 = vmatpush1.msra.mxu0 0.0
    %3034 = vmatprep.subr.mxu0 0.0
    %3035 = vmatpush1.msra.mxu0 0.0
    %3036 = vmatprep.subr.mxu0 0.0
    %3037 = vmatpush1.msra.mxu0 0.0
    %3038 = vmatprep.subr.mxu0 0.0
    %3039 = vmatpush1.msra.mxu0 0.0
    %3040 = vmatprep.subr.mxu0 0.0
    %3041 = vmatpush1.msra.mxu0 0.0
    %3042 = vmatprep.subr.mxu0 0.0
    %3043 = vmatpush1.msra.mxu0 0.0
    %3044 = vmatprep.subr.mxu0 0.0
    %3045 = vmatpush1.msra.mxu0 0.0
    %3046 = vmatprep.mubr.f32.mxu0 0.0
    %3047 = vmatmul.mubr.f32.gmra.mrb[0].mxu0 %v2977
    %v3048 = vpop.f32.mrb[0].mxu0
    %v3049 = vadd.f32 0.0, %v3048
    %v3050 = vpop.f32.mrb[0].mxu0
    %3051 = vdwg.mxu0
    %v3052 = vld [vmem:[%s4 + $0x1e0] sm:$0xff]
    %v3053 = vld [vmem:[%s4 + $0x1e8] sm:$0xff]
    %v3054 = vld [vmem:[%s4 + $0x1f0] sm:$0xf]
    %v3055 = vld [vmem:[%s4 + $0x1f8] sm:$0xff]
    %v3056 = vld [vmem:[%s4 + $0x200] sm:$0xff]
    %v3057 = vld [vmem:[%s4 + $0x208] sm:$0xf]
    %v3059 = vsel %vm2237, %v2227, 0
    %v3062 = vsel %vm1487, %v3057, 0
    %3064 = vmatprep.subr.mxu0 0.0
    %3065 = vmatpush1.msra.mxu0 %v3055
    %3066 = vmatprep.subr.mxu0 0.0
    %3067 = vmatpush1.msra.mxu0 %v3056
    %3068 = vmatprep.subr.mxu0 0.0
    %3069 = vmatpush1.msra.mxu0 %v3062
    %3070 = vmatprep.subr.mxu0 0.0
    %3071 = vmatpush1.msra.mxu0 0.0
    %3072 = vmatprep.subr.mxu0 0.0
    %3073 = vmatpush1.msra.mxu0 0.0
    %3074 = vmatprep.subr.mxu0 0.0
    %3075 = vmatpush1.msra.mxu0 0.0
    %3076 = vmatprep.subr.mxu0 0.0
    %3077 = vmatpush1.msra.mxu0 0.0
    %3078 = vmatprep.subr.mxu0 0.0
    %3079 = vmatpush1.msra.mxu0 0.0
    %3080 = vmatprep.subr.mxu0 0.0
    %3081 = vmatpush1.msra.mxu0 0.0
    %3082 = vmatprep.subr.mxu0 0.0
    %3083 = vmatpush1.msra.mxu0 0.0
    %3084 = vmatprep.subr.mxu0 0.0
    %3085 = vmatpush1.msra.mxu0 0.0
    %3086 = vmatprep.subr.mxu0 0.0
    %3087 = vmatpush1.msra.mxu0 0.0
    %3088 = vmatprep.subr.mxu0 0.0
    %3089 = vmatpush1.msra.mxu0 0.0
    %3090 = vmatprep.subr.mxu0 0.0
    %3091 = vmatpush1.msra.mxu0 0.0
    %3092 = vmatprep.subr.mxu0 0.0
    %3093 = vmatpush1.msra.mxu0 0.0
    %3094 = vmatprep.subr.mxu0 0.0
    %3095 = vmatpush1.msra.mxu0 0.0
    %3096 = vmatprep.subr.mxu0 0.0
    %3097 = vmatpush1.msra.mxu0 0.0
    %3098 = vmatprep.subr.mxu0 0.0
    %3099 = vmatpush1.msra.mxu0 0.0
    %3100 = vmatprep.subr.mxu0 0.0
    %3101 = vmatpush1.msra.mxu0 0.0
    %3102 = vmatprep.subr.mxu0 0.0
    %3103 = vmatpush1.msra.mxu0 0.0
    %3104 = vmatprep.subr.mxu0 0.0
    %3105 = vmatpush1.msra.mxu0 0.0
    %3106 = vmatprep.subr.mxu0 0.0
    %3107 = vmatpush1.msra.mxu0 0.0
    %3108 = vmatprep.subr.mxu0 0.0
    %3109 = vmatpush1.msra.mxu0 0.0
    %3110 = vmatprep.subr.mxu0 0.0
    %3111 = vmatpush1.msra.mxu0 0.0
    %3112 = vmatprep.subr.mxu0 0.0
    %3113 = vmatpush1.msra.mxu0 0.0
    %3114 = vmatprep.subr.mxu0 0.0
    %3115 = vmatpush1.msra.mxu0 0.0
    %3116 = vmatprep.subr.mxu0 0.0
    %3117 = vmatpush1.msra.mxu0 0.0
    %3118 = vmatprep.subr.mxu0 0.0
    %3119 = vmatpush1.msra.mxu0 0.0
    %3120 = vmatprep.subr.mxu0 0.0
    %3121 = vmatpush1.msra.mxu0 0.0
    %3122 = vmatprep.subr.mxu0 0.0
    %3123 = vmatpush1.msra.mxu0 0.0
    %3124 = vmatprep.subr.mxu0 0.0
    %3125 = vmatpush1.msra.mxu0 0.0
    %3126 = vmatprep.subr.mxu0 0.0
    %3127 = vmatpush1.msra.mxu0 0.0
    %3128 = vmatprep.mubr.f32.mxu0 0.0
    %3129 = vmatmul.mubr.f32.gmra.mrb[0].mxu0 %v3059
    %v3130 = vpop.f32.mrb[0].mxu0
    %v3131 = vadd.f32 0.0, %v3130
    %v3132 = vpop.f32.mrb[0].mxu0
    %3133 = vdwg.mxu0
    %v3134 = vld [vmem:[%s4 + $0x210] sm:$0xff]
    %v3135 = vld [vmem:[%s4 + $0x218] sm:$0xff]
    %v3136 = vld [vmem:[%s4 + $0x220] sm:$0xf]
    %v3137 = vld [vmem:[%s4 + $0x228] sm:$0xff]
    %v3138 = vld [vmem:[%s4 + $0x230] sm:$0xff]
    %v3139 = vld [vmem:[%s4 + $0x238] sm:$0xf]
    %v3141 = vsel %vm2237, %v2229, 0
    %v3144 = vsel %vm1487, %v3139, 0
    %3146 = vmatprep.subr.mxu0 0.0
    %3147 = vmatpush1.msra.mxu0 %v3137
    %3148 = vmatprep.subr.mxu0 0.0
    %3149 = vmatpush1.msra.mxu0 %v3138
    %3150 = vmatprep.subr.mxu0 0.0
    %3151 = vmatpush1.msra.mxu0 %v3144
    %3152 = vmatprep.subr.mxu0 0.0
    %3153 = vmatpush1.msra.mxu0 0.0
    %3154 = vmatprep.subr.mxu0 0.0
    %3155 = vmatpush1.msra.mxu0 0.0
    %3156 = vmatprep.subr.mxu0 0.0
    %3157 = vmatpush1.msra.mxu0 0.0
    %3158 = vmatprep.subr.mxu0 0.0
    %3159 = vmatpush1.msra.mxu0 0.0
    %3160 = vmatprep.subr.mxu0 0.0
    %3161 = vmatpush1.msra.mxu0 0.0
    %3162 = vmatprep.subr.mxu0 0.0
    %3163 = vmatpush1.msra.mxu0 0.0
    %3164 = vmatprep.subr.mxu0 0.0
    %3165 = vmatpush1.msra.mxu0 0.0
    %3166 = vmatprep.subr.mxu0 0.0
    %3167 = vmatpush1.msra.mxu0 0.0
    %3168 = vmatprep.subr.mxu0 0.0
    %3169 = vmatpush1.msra.mxu0 0.0
    %3170 = vmatprep.subr.mxu0 0.0
    %3171 = vmatpush1.msra.mxu0 0.0
    %3172 = vmatprep.subr.mxu0 0.0
    %3173 = vmatpush1.msra.mxu0 0.0
    %3174 = vmatprep.subr.mxu0 0.0
    %3175 = vmatpush1.msra.mxu0 0.0
    %3176 = vmatprep.subr.mxu0 0.0
    %3177 = vmatpush1.msra.mxu0 0.0
    %3178 = vmatprep.subr.mxu0 0.0
    %3179 = vmatpush1.msra.mxu0 0.0
    %3180 = vmatprep.subr.mxu0 0.0
    %3181 = vmatpush1.msra.mxu0 0.0
    %3182 = vmatprep.subr.mxu0 0.0
    %3183 = vmatpush1.msra.mxu0 0.0
    %3184 = vmatprep.subr.mxu0 0.0
    %3185 = vmatpush1.msra.mxu0 0.0
    %3186 = vmatprep.subr.mxu0 0.0
    %3187 = vmatpush1.msra.mxu0 0.0
    %3188 = vmatprep.subr.mxu0 0.0
    %3189 = vmatpush1.msra.mxu0 0.0
    %3190 = vmatprep.subr.mxu0 0.0
    %3191 = vmatpush1.msra.mxu0 0.0
    %3192 = vmatprep.subr.mxu0 0.0
    %3193 = vmatpush1.msra.mxu0 0.0
    %3194 = vmatprep.subr.mxu0 0.0
    %3195 = vmatpush1.msra.mxu0 0.0
    %3196 = vmatprep.subr.mxu0 0.0
    %3197 = vmatpush1.msra.mxu0 0.0
    %3198 = vmatprep.subr.mxu0 0.0
    %3199 = vmatpush1.msra.mxu0 0.0
    %3200 = vmatprep.subr.mxu0 0.0
    %3201 = vmatpush1.msra.mxu0 0.0
    %3202 = vmatprep.subr.mxu0 0.0
    %3203 = vmatpush1.msra.mxu0 0.0
    %3204 = vmatprep.subr.mxu0 0.0
    %3205 = vmatpush1.msra.mxu0 0.0
    %3206 = vmatprep.subr.mxu0 0.0
    %3207 = vmatpush1.msra.mxu0 0.0
    %3208 = vmatprep.subr.mxu0 0.0
    %3209 = vmatpush1.msra.mxu0 0.0
    %3210 = vmatprep.mubr.f32.mxu0 0.0
    %3211 = vmatmul.mubr.f32.gmra.mrb[0].mxu0 %v3141
    %v3212 = vpop.f32.mrb[0].mxu0
    %v3213 = vadd.f32 0.0, %v3212
    %v3214 = vpop.f32.mrb[0].mxu0
    %3215 = vdwg.mxu0
    %v3216 = vld [vmem:[%s4 + $0x240] sm:$0xff]
    %v3217 = vld [vmem:[%s4 + $0x248] sm:$0xff]
    %v3218 = vld [vmem:[%s4 + $0x250] sm:$0xf]
    %v3220 = vsel %vm2237, %v2230, 0
    %v3223 = vsel %vm1487, %v3218, 0
    %3225 = vmatprep.subr.mxu0 0.0
    %3226 = vmatpush1.msra.mxu0 %v3216
    %3227 = vmatprep.subr.mxu0 0.0
    %3228 = vmatpush1.msra.mxu0 %v3217
    %3229 = vmatprep.subr.mxu0 0.0
    %3230 = vmatpush1.msra.mxu0 %v3223
    %3231 = vmatprep.subr.mxu0 0.0
    %3232 = vmatpush1.msra.mxu0 0.0
    %3233 = vmatprep.subr.mxu0 0.0
    %3234 = vmatpush1.msra.mxu0 0.0
    %3235 = vmatprep.subr.mxu0 0.0
    %3236 = vmatpush1.msra.mxu0 0.0
    %3237 = vmatprep.subr.mxu0 0.0
    %3238 = vmatpush1.msra.mxu0 0.0
    %3239 = vmatprep.subr.mxu0 0.0
    %3240 = vmatpush1.msra.mxu0 0.0
    %3241 = vmatprep.subr.mxu0 0.0
    %3242 = vmatpush1.msra.mxu0 0.0
    %3243 = vmatprep.subr.mxu0 0.0
    %3244 = vmatpush1.msra.mxu0 0.0
    %3245 = vmatprep.subr.mxu0 0.0
    %3246 = vmatpush1.msra.mxu0 0.0
    %3247 = vmatprep.subr.mxu0 0.0
    %3248 = vmatpush1.msra.mxu0 0.0
    %3249 = vmatprep.subr.mxu0 0.0
    %3250 = vmatpush1.msra.mxu0 0.0
    %3251 = vmatprep.subr.mxu0 0.0
    %3252 = vmatpush1.msra.mxu0 0.0
    %3253 = vmatprep.subr.mxu0 0.0
    %3254 = vmatpush1.msra.mxu0 0.0
    %3255 = vmatprep.subr.mxu0 0.0
    %3256 = vmatpush1.msra.mxu0 0.0
    %3257 = vmatprep.subr.mxu0 0.0
    %3258 = vmatpush1.msra.mxu0 0.0
    %3259 = vmatprep.subr.mxu0 0.0
    %3260 = vmatpush1.msra.mxu0 0.0
    %3261 = vmatprep.subr.mxu0 0.0
    %3262 = vmatpush1.msra.mxu0 0.0
    %3263 = vmatprep.subr.mxu0 0.0
    %3264 = vmatpush1.msra.mxu0 0.0
    %3265 = vmatprep.subr.mxu0 0.0
    %3266 = vmatpush1.msra.mxu0 0.0
    %3267 = vmatprep.subr.mxu0 0.0
    %3268 = vmatpush1.msra.mxu0 0.0
    %3269 = vmatprep.subr.mxu0 0.0
    %3270 = vmatpush1.msra.mxu0 0.0
    %3271 = vmatprep.subr.mxu0 0.0
    %3272 = vmatpush1.msra.mxu0 0.0
    %3273 = vmatprep.subr.mxu0 0.0
    %3274 = vmatpush1.msra.mxu0 0.0
    %3275 = vmatprep.subr.mxu0 0.0
    %3276 = vmatpush1.msra.mxu0 0.0
    %3277 = vmatprep.subr.mxu0 0.0
    %3278 = vmatpush1.msra.mxu0 0.0
    %3279 = vmatprep.subr.mxu0 0.0
    %3280 = vmatpush1.msra.mxu0 0.0
    %3281 = vmatprep.subr.mxu0 0.0
    %3282 = vmatpush1.msra.mxu0 0.0
    %3283 = vmatprep.subr.mxu0 0.0
    %3284 = vmatpush1.msra.mxu0 0.0
    %3285 = vmatprep.subr.mxu0 0.0
    %3286 = vmatpush1.msra.mxu0 0.0
    %3287 = vmatprep.subr.mxu0 0.0
    %3288 = vmatpush1.msra.mxu0 0.0
    %3289 = vmatprep.mubr.f32.mxu0 0.0
    %3290 = vmatmul.mubr.f32.gmra.mrb[0].mxu0 %v3220
    %v3291 = vpop.f32.mrb[0].mxu0
    %v3292 = vadd.f32 0.0, %v3291
    %v3293 = vpop.f32.mrb[0].mxu0
    %3294 = vdwg.mxu0
    %v3296 = vsel %vm2237, %v2206, 0
    %v3299 = vsel %vm1487, %v2233, 0
    %3301 = vmatprep.subr.mxu0 0.0
    %3302 = vmatpush1.msra.mxu0 %v2231
    %3303 = vmatprep.subr.mxu0 0.0
    %3304 = vmatpush1.msra.mxu0 %v2232
    %3305 = vmatprep.subr.mxu0 0.0
    %3306 = vmatpush1.msra.mxu0 %v3299
    %3307 = vmatprep.subr.mxu0 0.0
    %3308 = vmatpush1.msra.mxu0 0.0
    %3309 = vmatprep.subr.mxu0 0.0
    %3310 = vmatpush1.msra.mxu0 0.0
    %3311 = vmatprep.subr.mxu0 0.0
    %3312 = vmatpush1.msra.mxu0 0.0
    %3313 = vmatprep.subr.mxu0 0.0
    %3314 = vmatpush1.msra.mxu0 0.0
    %3315 = vmatprep.subr.mxu0 0.0
    %3316 = vmatpush1.msra.mxu0 0.0
    %3317 = vmatprep.subr.mxu0 0.0
    %3318 = vmatpush1.msra.mxu0 0.0
    %3319 = vmatprep.subr.mxu0 0.0
    %3320 = vmatpush1.msra.mxu0 0.0
    %3321 = vmatprep.subr.mxu0 0.0
    %3322 = vmatpush1.msra.mxu0 0.0
    %3323 = vmatprep.subr.mxu0 0.0
    %3324 = vmatpush1.msra.mxu0 0.0
    %3325 = vmatprep.subr.mxu0 0.0
    %3326 = vmatpush1.msra.mxu0 0.0
    %3327 = vmatprep.subr.mxu0 0.0
    %3328 = vmatpush1.msra.mxu0 0.0
    %3329 = vmatprep.subr.mxu0 0.0
    %3330 = vmatpush1.msra.mxu0 0.0
    %3331 = vmatprep.subr.mxu0 0.0
    %3332 = vmatpush1.msra.mxu0 0.0
    %3333 = vmatprep.subr.mxu0 0.0
    %3334 = vmatpush1.msra.mxu0 0.0
    %3335 = vmatprep.subr.mxu0 0.0
    %3336 = vmatpush1.msra.mxu0 0.0
    %3337 = vmatprep.subr.mxu0 0.0
    %3338 = vmatpush1.msra.mxu0 0.0
    %3339 = vmatprep.subr.mxu0 0.0
    %3340 = vmatpush1.msra.mxu0 0.0
    %3341 = vmatprep.subr.mxu0 0.0
    %3342 = vmatpush1.msra.mxu0 0.0
    %3343 = vmatprep.subr.mxu0 0.0
    %3344 = vmatpush1.msra.mxu0 0.0
    %3345 = vmatprep.subr.mxu0 0.0
    %3346 = vmatpush1.msra.mxu0 0.0
    %3347 = vmatprep.subr.mxu0 0.0
    %3348 = vmatpush1.msra.mxu0 0.0
    %3349 = vmatprep.subr.mxu0 0.0
    %3350 = vmatpush1.msra.mxu0 0.0
    %3351 = vmatprep.subr.mxu0 0.0
    %3352 = vmatpush1.msra.mxu0 0.0
    %3353 = vmatprep.subr.mxu0 0.0
    %3354 = vmatpush1.msra.mxu0 0.0
    %3355 = vmatprep.subr.mxu0 0.0
    %3356 = vmatpush1.msra.mxu0 0.0
    %3357 = vmatprep.subr.mxu0 0.0
    %3358 = vmatpush1.msra.mxu0 0.0
    %3359 = vmatprep.subr.mxu0 0.0
    %3360 = vmatpush1.msra.mxu0 0.0
    %3361 = vmatprep.subr.mxu0 0.0
    %3362 = vmatpush1.msra.mxu0 0.0
    %3363 = vmatprep.subr.mxu0 0.0
    %3364 = vmatpush1.msra.mxu0 0.0
    %3365 = vmatprep.mubr.f32.mxu0 0.0
    %3366 = vmatmul.mubr.f32.gmra.mrb[0].mxu0 %v3296
    %v3367 = vpop.f32.mrb[0].mxu0
    %v3368 = vadd.f32 %v2311, %v3367
    %v3369 = vpop.f32.mrb[0].mxu0
    %3370 = vdwg.mxu0
    %v3372 = vsel %vm2237, %v2208, 0
    %v3375 = vsel %vm1487, %v2316, 0
    %3377 = vmatprep.subr.mxu0 0.0
    %3378 = vmatpush1.msra.mxu0 %v2314
    %3379 = vmatprep.subr.mxu0 0.0
    %3380 = vmatpush1.msra.mxu0 %v2315
    %3381 = vmatprep.subr.mxu0 0.0
    %3382 = vmatpush1.msra.mxu0 %v3375
    %3383 = vmatprep.subr.mxu0 0.0
    %3384 = vmatpush1.msra.mxu0 0.0
    %3385 = vmatprep.subr.mxu0 0.0
    %3386 = vmatpush1.msra.mxu0 0.0
    %3387 = vmatprep.subr.mxu0 0.0
    %3388 = vmatpush1.msra.mxu0 0.0
    %3389 = vmatprep.subr.mxu0 0.0
    %3390 = vmatpush1.msra.mxu0 0.0
    %3391 = vmatprep.subr.mxu0 0.0
    %3392 = vmatpush1.msra.mxu0 0.0
    %3393 = vmatprep.subr.mxu0 0.0
    %3394 = vmatpush1.msra.mxu0 0.0
    %3395 = vmatprep.subr.mxu0 0.0
    %3396 = vmatpush1.msra.mxu0 0.0
    %3397 = vmatprep.subr.mxu0 0.0
    %3398 = vmatpush1.msra.mxu0 0.0
    %3399 = vmatprep.subr.mxu0 0.0
    %3400 = vmatpush1.msra.mxu0 0.0
    %3401 = vmatprep.subr.mxu0 0.0
    %3402 = vmatpush1.msra.mxu0 0.0
    %3403 = vmatprep.subr.mxu0 0.0
    %3404 = vmatpush1.msra.mxu0 0.0
    %3405 = vmatprep.subr.mxu0 0.0
    %3406 = vmatpush1.msra.mxu0 0.0
    %3407 = vmatprep.subr.mxu0 0.0
    %3408 = vmatpush1.msra.mxu0 0.0
    %3409 = vmatprep.subr.mxu0 0.0
    %3410 = vmatpush1.msra.mxu0 0.0
    %3411 = vmatprep.subr.mxu0 0.0
    %3412 = vmatpush1.msra.mxu0 0.0
    %3413 = vmatprep.subr.mxu0 0.0
    %3414 = vmatpush1.msra.mxu0 0.0
    %3415 = vmatprep.subr.mxu0 0.0
    %3416 = vmatpush1.msra.mxu0 0.0
    %3417 = vmatprep.subr.mxu0 0.0
    %3418 = vmatpush1.msra.mxu0 0.0
    %3419 = vmatprep.subr.mxu0 0.0
    %3420 = vmatpush1.msra.mxu0 0.0
    %3421 = vmatprep.subr.mxu0 0.0
    %3422 = vmatpush1.msra.mxu0 0.0
    %3423 = vmatprep.subr.mxu0 0.0
    %3424 = vmatpush1.msra.mxu0 0.0
    %3425 = vmatprep.subr.mxu0 0.0
    %3426 = vmatpush1.msra.mxu0 0.0
    %3427 = vmatprep.subr.mxu0 0.0
    %3428 = vmatpush1.msra.mxu0 0.0
    %3429 = vmatprep.subr.mxu0 0.0
    %3430 = vmatpush1.msra.mxu0 0.0
    %3431 = vmatprep.subr.mxu0 0.0
    %3432 = vmatpush1.msra.mxu0 0.0
    %3433 = vmatprep.subr.mxu0 0.0
    %3434 = vmatpush1.msra.mxu0 0.0
    %3435 = vmatprep.subr.mxu0 0.0
    %3436 = vmatpush1.msra.mxu0 0.0
    %3437 = vmatprep.subr.mxu0 0.0
    %3438 = vmatpush1.msra.mxu0 0.0
    %3439 = vmatprep.subr.mxu0 0.0
    %3440 = vmatpush1.msra.mxu0 0.0
    %3441 = vmatprep.mubr.f32.mxu0 0.0
    %3442 = vmatmul.mubr.f32.gmra.mrb[0].mxu0 %v3372
    %v3443 = vpop.f32.mrb[0].mxu0
    %v3444 = vadd.f32 %v2393, %v3443
    %v3445 = vpop.f32.mrb[0].mxu0
    %3446 = vdwg.mxu0
    %v3448 = vsel %vm2237, %v2210, 0
    %v3451 = vsel %vm1487, %v2398, 0
    %3453 = vmatprep.subr.mxu0 0.0
    %3454 = vmatpush1.msra.mxu0 %v2396
    %3455 = vmatprep.subr.mxu0 0.0
    %3456 = vmatpush1.msra.mxu0 %v2397
    %3457 = vmatprep.subr.mxu0 0.0
    %3458 = vmatpush1.msra.mxu0 %v3451
    %3459 = vmatprep.subr.mxu0 0.0
    %3460 = vmatpush1.msra.mxu0 0.0
    %3461 = vmatprep.subr.mxu0 0.0
    %3462 = vmatpush1.msra.mxu0 0.0
    %3463 = vmatprep.subr.mxu0 0.0
    %3464 = vmatpush1.msra.mxu0 0.0
    %3465 = vmatprep.subr.mxu0 0.0
    %3466 = vmatpush1.msra.mxu0 0.0
    %3467 = vmatprep.subr.mxu0 0.0
    %3468 = vmatpush1.msra.mxu0 0.0
    %3469 = vmatprep.subr.mxu0 0.0
    %3470 = vmatpush1.msra.mxu0 0.0
    %3471 = vmatprep.subr.mxu0 0.0
    %3472 = vmatpush1.msra.mxu0 0.0
    %3473 = vmatprep.subr.mxu0 0.0
    %3474 = vmatpush1.msra.mxu0 0.0
    %3475 = vmatprep.subr.mxu0 0.0
    %3476 = vmatpush1.msra.mxu0 0.0
    %3477 = vmatprep.subr.mxu0 0.0
    %3478 = vmatpush1.msra.mxu0 0.0
    %3479 = vmatprep.subr.mxu0 0.0
    %3480 = vmatpush1.msra.mxu0 0.0
    %3481 = vmatprep.subr.mxu0 0.0
    %3482 = vmatpush1.msra.mxu0 0.0
    %3483 = vmatprep.subr.mxu0 0.0
    %3484 = vmatpush1.msra.mxu0 0.0
    %3485 = vmatprep.subr.mxu0 0.0
    %3486 = vmatpush1.msra.mxu0 0.0
    %3487 = vmatprep.subr.mxu0 0.0
    %3488 = vmatpush1.msra.mxu0 0.0
    %3489 = vmatprep.subr.mxu0 0.0
    %3490 = vmatpush1.msra.mxu0 0.0
    %3491 = vmatprep.subr.mxu0 0.0
    %3492 = vmatpush1.msra.mxu0 0.0
    %3493 = vmatprep.subr.mxu0 0.0
    %3494 = vmatpush1.msra.mxu0 0.0
    %3495 = vmatprep.subr.mxu0 0.0
    %3496 = vmatpush1.msra.mxu0 0.0
    %3497 = vmatprep.subr.mxu0 0.0
    %3498 = vmatpush1.msra.mxu0 0.0
    %3499 = vmatprep.subr.mxu0 0.0
    %3500 = vmatpush1.msra.mxu0 0.0
    %3501 = vmatprep.subr.mxu0 0.0
    %3502 = vmatpush1.msra.mxu0 0.0
    %3503 = vmatprep.subr.mxu0 0.0
    %3504 = vmatpush1.msra.mxu0 0.0
    %3505 = vmatprep.subr.mxu0 0.0
    %3506 = vmatpush1.msra.mxu0 0.0
    %3507 = vmatprep.subr.mxu0 0.0
    %3508 = vmatpush1.msra.mxu0 0.0
    %3509 = vmatprep.subr.mxu0 0.0
    %3510 = vmatpush1.msra.mxu0 0.0
    %3511 = vmatprep.subr.mxu0 0.0
    %3512 = vmatpush1.msra.mxu0 0.0
    %3513 = vmatprep.subr.mxu0 0.0
    %3514 = vmatpush1.msra.mxu0 0.0
    %3515 = vmatprep.subr.mxu0 0.0
    %3516 = vmatpush1.msra.mxu0 0.0
    %3517 = vmatprep.mubr.f32.mxu0 0.0
    %3518 = vmatmul.mubr.f32.gmra.mrb[0].mxu0 %v3448
    %v3519 = vpop.f32.mrb[0].mxu0
    %v3520 = vadd.f32 %v2475, %v3519
    %v3521 = vpop.f32.mrb[0].mxu0
    %3522 = vdwg.mxu0
    %v3524 = vsel %vm2237, %v2212, 0
    %v3527 = vsel %vm1487, %v2480, 0
    %3529 = vmatprep.subr.mxu0 0.0
    %3530 = vmatpush1.msra.mxu0 %v2478
    %3531 = vmatprep.subr.mxu0 0.0
    %3532 = vmatpush1.msra.mxu0 %v2479
    %3533 = vmatprep.subr.mxu0 0.0
    %3534 = vmatpush1.msra.mxu0 %v3527
    %3535 = vmatprep.subr.mxu0 0.0
    %3536 = vmatpush1.msra.mxu0 0.0
    %3537 = vmatprep.subr.mxu0 0.0
    %3538 = vmatpush1.msra.mxu0 0.0
    %3539 = vmatprep.subr.mxu0 0.0
    %3540 = vmatpush1.msra.mxu0 0.0
    %3541 = vmatprep.subr.mxu0 0.0
    %3542 = vmatpush1.msra.mxu0 0.0
    %3543 = vmatprep.subr.mxu0 0.0
    %3544 = vmatpush1.msra.mxu0 0.0
    %3545 = vmatprep.subr.mxu0 0.0
    %3546 = vmatpush1.msra.mxu0 0.0
    %3547 = vmatprep.subr.mxu0 0.0
    %3548 = vmatpush1.msra.mxu0 0.0
    %3549 = vmatprep.subr.mxu0 0.0
    %3550 = vmatpush1.msra.mxu0 0.0
    %3551 = vmatprep.subr.mxu0 0.0
    %3552 = vmatpush1.msra.mxu0 0.0
    %3553 = vmatprep.subr.mxu0 0.0
    %3554 = vmatpush1.msra.mxu0 0.0
    %3555 = vmatprep.subr.mxu0 0.0
    %3556 = vmatpush1.msra.mxu0 0.0
    %3557 = vmatprep.subr.mxu0 0.0
    %3558 = vmatpush1.msra.mxu0 0.0
    %3559 = vmatprep.subr.mxu0 0.0
    %3560 = vmatpush1.msra.mxu0 0.0
    %3561 = vmatprep.subr.mxu0 0.0
    %3562 = vmatpush1.msra.mxu0 0.0
    %3563 = vmatprep.subr.mxu0 0.0
    %3564 = vmatpush1.msra.mxu0 0.0
    %3565 = vmatprep.subr.mxu0 0.0
    %3566 = vmatpush1.msra.mxu0 0.0
    %3567 = vmatprep.subr.mxu0 0.0
    %3568 = vmatpush1.msra.mxu0 0.0
    %3569 = vmatprep.subr.mxu0 0.0
    %3570 = vmatpush1.msra.mxu0 0.0
    %3571 = vmatprep.subr.mxu0 0.0
    %3572 = vmatpush1.msra.mxu0 0.0
    %3573 = vmatprep.subr.mxu0 0.0
    %3574 = vmatpush1.msra.mxu0 0.0
    %3575 = vmatprep.subr.mxu0 0.0
    %3576 = vmatpush1.msra.mxu0 0.0
    %3577 = vmatprep.subr.mxu0 0.0
    %3578 = vmatpush1.msra.mxu0 0.0
    %3579 = vmatprep.subr.mxu0 0.0
    %3580 = vmatpush1.msra.mxu0 0.0
    %3581 = vmatprep.subr.mxu0 0.0
    %3582 = vmatpush1.msra.mxu0 0.0
    %3583 = vmatprep.subr.mxu0 0.0
    %3584 = vmatpush1.msra.mxu0 0.0
    %3585 = vmatprep.subr.mxu0 0.0
    %3586 = vmatpush1.msra.mxu0 0.0
    %3587 = vmatprep.subr.mxu0 0.0
    %3588 = vmatpush1.msra.mxu0 0.0
    %3589 = vmatprep.subr.mxu0 0.0
    %3590 = vmatpush1.msra.mxu0 0.0
    %3591 = vmatprep.subr.mxu0 0.0
    %3592 = vmatpush1.msra.mxu0 0.0
    %3593 = vmatprep.mubr.f32.mxu0 0.0
    %3594 = vmatmul.mubr.f32.gmra.mrb[0].mxu0 %v3524
    %v3595 = vpop.f32.mrb[0].mxu0
    %v3596 = vadd.f32 %v2557, %v3595
    %v3597 = vpop.f32.mrb[0].mxu0
    %3598 = vdwg.mxu0
    %v3600 = vsel %vm2237, %v2214, 0
    %v3603 = vsel %vm1487, %v2562, 0
    %3605 = vmatprep.subr.mxu0 0.0
    %3606 = vmatpush1.msra.mxu0 %v2560
    %3607 = vmatprep.subr.mxu0 0.0
    %3608 = vmatpush1.msra.mxu0 %v2561
    %3609 = vmatprep.subr.mxu0 0.0
    %3610 = vmatpush1.msra.mxu0 %v3603
    %3611 = vmatprep.subr.mxu0 0.0
    %3612 = vmatpush1.msra.mxu0 0.0
    %3613 = vmatprep.subr.mxu0 0.0
    %3614 = vmatpush1.msra.mxu0 0.0
    %3615 = vmatprep.subr.mxu0 0.0
    %3616 = vmatpush1.msra.mxu0 0.0
    %3617 = vmatprep.subr.mxu0 0.0
    %3618 = vmatpush1.msra.mxu0 0.0
    %3619 = vmatprep.subr.mxu0 0.0
    %3620 = vmatpush1.msra.mxu0 0.0
    %3621 = vmatprep.subr.mxu0 0.0
    %3622 = vmatpush1.msra.mxu0 0.0
    %3623 = vmatprep.subr.mxu0 0.0
    %3624 = vmatpush1.msra.mxu0 0.0
    %3625 = vmatprep.subr.mxu0 0.0
    %3626 = vmatpush1.msra.mxu0 0.0
    %3627 = vmatprep.subr.mxu0 0.0
    %3628 = vmatpush1.msra.mxu0 0.0
    %3629 = vmatprep.subr.mxu0 0.0
    %3630 = vmatpush1.msra.mxu0 0.0
    %3631 = vmatprep.subr.mxu0 0.0
    %3632 = vmatpush1.msra.mxu0 0.0
    %3633 = vmatprep.subr.mxu0 0.0
    %3634 = vmatpush1.msra.mxu0 0.0
    %3635 = vmatprep.subr.mxu0 0.0
    %3636 = vmatpush1.msra.mxu0 0.0
    %3637 = vmatprep.subr.mxu0 0.0
    %3638 = vmatpush1.msra.mxu0 0.0
    %3639 = vmatprep.subr.mxu0 0.0
    %3640 = vmatpush1.msra.mxu0 0.0
    %3641 = vmatprep.subr.mxu0 0.0
    %3642 = vmatpush1.msra.mxu0 0.0
    %3643 = vmatprep.subr.mxu0 0.0
    %3644 = vmatpush1.msra.mxu0 0.0
    %3645 = vmatprep.subr.mxu0 0.0
    %3646 = vmatpush1.msra.mxu0 0.0
    %3647 = vmatprep.subr.mxu0 0.0
    %3648 = vmatpush1.msra.mxu0 0.0
    %3649 = vmatprep.subr.mxu0 0.0
    %3650 = vmatpush1.msra.mxu0 0.0
    %3651 = vmatprep.subr.mxu0 0.0
    %3652 = vmatpush1.msra.mxu0 0.0
    %3653 = vmatprep.subr.mxu0 0.0
    %3654 = vmatpush1.msra.mxu0 0.0
    %3655 = vmatprep.subr.mxu0 0.0
    %3656 = vmatpush1.msra.mxu0 0.0
    %3657 = vmatprep.subr.mxu0 0.0
    %3658 = vmatpush1.msra.mxu0 0.0
    %3659 = vmatprep.subr.mxu0 0.0
    %3660 = vmatpush1.msra.mxu0 0.0
    %3661 = vmatprep.subr.mxu0 0.0
    %3662 = vmatpush1.msra.mxu0 0.0
    %3663 = vmatprep.subr.mxu0 0.0
    %3664 = vmatpush1.msra.mxu0 0.0
    %3665 = vmatprep.subr.mxu0 0.0
    %3666 = vmatpush1.msra.mxu0 0.0
    %3667 = vmatprep.subr.mxu0 0.0
    %3668 = vmatpush1.msra.mxu0 0.0
    %3669 = vmatprep.mubr.f32.mxu0 0.0
    %3670 = vmatmul.mubr.f32.gmra.mrb[0].mxu0 %v3600
    %v3671 = vpop.f32.mrb[0].mxu0
    %v3672 = vadd.f32 %v2639, %v3671
    %v3673 = vpop.f32.mrb[0].mxu0
    %3674 = vdwg.mxu0
    %v3676 = vsel %vm2237, %v2216, 0
    %v3679 = vsel %vm1487, %v2644, 0
    %3681 = vmatprep.subr.mxu0 0.0
    %3682 = vmatpush1.msra.mxu0 %v2642
    %3683 = vmatprep.subr.mxu0 0.0
    %3684 = vmatpush1.msra.mxu0 %v2643
    %3685 = vmatprep.subr.mxu0 0.0
    %3686 = vmatpush1.msra.mxu0 %v3679
    %3687 = vmatprep.subr.mxu0 0.0
    %3688 = vmatpush1.msra.mxu0 0.0
    %3689 = vmatprep.subr.mxu0 0.0
    %3690 = vmatpush1.msra.mxu0 0.0
    %3691 = vmatprep.subr.mxu0 0.0
    %3692 = vmatpush1.msra.mxu0 0.0
    %3693 = vmatprep.subr.mxu0 0.0
    %3694 = vmatpush1.msra.mxu0 0.0
    %3695 = vmatprep.subr.mxu0 0.0
    %3696 = vmatpush1.msra.mxu0 0.0
    %3697 = vmatprep.subr.mxu0 0.0
    %3698 = vmatpush1.msra.mxu0 0.0
    %3699 = vmatprep.subr.mxu0 0.0
    %3700 = vmatpush1.msra.mxu0 0.0
    %3701 = vmatprep.subr.mxu0 0.0
    %3702 = vmatpush1.msra.mxu0 0.0
    %3703 = vmatprep.subr.mxu0 0.0
    %3704 = vmatpush1.msra.mxu0 0.0
    %3705 = vmatprep.subr.mxu0 0.0
    %3706 = vmatpush1.msra.mxu0 0.0
    %3707 = vmatprep.subr.mxu0 0.0
    %3708 = vmatpush1.msra.mxu0 0.0
    %3709 = vmatprep.subr.mxu0 0.0
    %3710 = vmatpush1.msra.mxu0 0.0
    %3711 = vmatprep.subr.mxu0 0.0
    %3712 = vmatpush1.msra.mxu0 0.0
    %3713 = vmatprep.subr.mxu0 0.0
    %3714 = vmatpush1.msra.mxu0 0.0
    %3715 = vmatprep.subr.mxu0 0.0
    %3716 = vmatpush1.msra.mxu0 0.0
    %3717 = vmatprep.subr.mxu0 0.0
    %3718 = vmatpush1.msra.mxu0 0.0
    %3719 = vmatprep.subr.mxu0 0.0
    %3720 = vmatpush1.msra.mxu0 0.0
    %3721 = vmatprep.subr.mxu0 0.0
    %3722 = vmatpush1.msra.mxu0 0.0
    %3723 = vmatprep.subr.mxu0 0.0
    %3724 = vmatpush1.msra.mxu0 0.0
    %3725 = vmatprep.subr.mxu0 0.0
    %3726 = vmatpush1.msra.mxu0 0.0
    %3727 = vmatprep.subr.mxu0 0.0
    %3728 = vmatpush1.msra.mxu0 0.0
    %3729 = vmatprep.subr.mxu0 0.0
    %3730 = vmatpush1.msra.mxu0 0.0
    %3731 = vmatprep.subr.mxu0 0.0
    %3732 = vmatpush1.msra.mxu0 0.0
    %3733 = vmatprep.subr.mxu0 0.0
    %3734 = vmatpush1.msra.mxu0 0.0
    %3735 = vmatprep.subr.mxu0 0.0
    %3736 = vmatpush1.msra.mxu0 0.0
    %3737 = vmatprep.subr.mxu0 0.0
    %3738 = vmatpush1.msra.mxu0 0.0
    %3739 = vmatprep.subr.mxu0 0.0
    %3740 = vmatpush1.msra.mxu0 0.0
    %3741 = vmatprep.subr.mxu0 0.0
    %3742 = vmatpush1.msra.mxu0 0.0
    %3743 = vmatprep.subr.mxu0 0.0
    %3744 = vmatpush1.msra.mxu0 0.0
    %3745 = vmatprep.mubr.f32.mxu0 0.0
    %3746 = vmatmul.mubr.f32.gmra.mrb[0].mxu0 %v3676
    %v3747 = vpop.f32.mrb[0].mxu0
    %v3748 = vadd.f32 %v2721, %v3747
    %v3749 = vpop.f32.mrb[0].mxu0
    %3750 = vdwg.mxu0
    %v3752 = vsel %vm2237, %v2218, 0
    %v3755 = vsel %vm1487, %v2726, 0
    %3757 = vmatprep.subr.mxu0 0.0
    %3758 = vmatpush1.msra.mxu0 %v2724
    %3759 = vmatprep.subr.mxu0 0.0
    %3760 = vmatpush1.msra.mxu0 %v2725
    %3761 = vmatprep.subr.mxu0 0.0
    %3762 = vmatpush1.msra.mxu0 %v3755
    %3763 = vmatprep.subr.mxu0 0.0
    %3764 = vmatpush1.msra.mxu0 0.0
    %3765 = vmatprep.subr.mxu0 0.0
    %3766 = vmatpush1.msra.mxu0 0.0
    %3767 = vmatprep.subr.mxu0 0.0
    %3768 = vmatpush1.msra.mxu0 0.0
    %3769 = vmatprep.subr.mxu0 0.0
    %3770 = vmatpush1.msra.mxu0 0.0
    %3771 = vmatprep.subr.mxu0 0.0
    %3772 = vmatpush1.msra.mxu0 0.0
    %3773 = vmatprep.subr.mxu0 0.0
    %3774 = vmatpush1.msra.mxu0 0.0
    %3775 = vmatprep.subr.mxu0 0.0
    %3776 = vmatpush1.msra.mxu0 0.0
    %3777 = vmatprep.subr.mxu0 0.0
    %3778 = vmatpush1.msra.mxu0 0.0
    %3779 = vmatprep.subr.mxu0 0.0
    %3780 = vmatpush1.msra.mxu0 0.0
    %3781 = vmatprep.subr.mxu0 0.0
    %3782 = vmatpush1.msra.mxu0 0.0
    %3783 = vmatprep.subr.mxu0 0.0
    %3784 = vmatpush1.msra.mxu0 0.0
    %3785 = vmatprep.subr.mxu0 0.0
    %3786 = vmatpush1.msra.mxu0 0.0
    %3787 = vmatprep.subr.mxu0 0.0
    %3788 = vmatpush1.msra.mxu0 0.0
    %3789 = vmatprep.subr.mxu0 0.0
    %3790 = vmatpush1.msra.mxu0 0.0
    %3791 = vmatprep.subr.mxu0 0.0
    %3792 = vmatpush1.msra.mxu0 0.0
    %3793 = vmatprep.subr.mxu0 0.0
    %3794 = vmatpush1.msra.mxu0 0.0
    %3795 = vmatprep.subr.mxu0 0.0
    %3796 = vmatpush1.msra.mxu0 0.0
    %3797 = vmatprep.subr.mxu0 0.0
    %3798 = vmatpush1.msra.mxu0 0.0
    %3799 = vmatprep.subr.mxu0 0.0
    %3800 = vmatpush1.msra.mxu0 0.0
    %3801 = vmatprep.subr.mxu0 0.0
    %3802 = vmatpush1.msra.mxu0 0.0
    %3803 = vmatprep.subr.mxu0 0.0
    %3804 = vmatpush1.msra.mxu0 0.0
    %3805 = vmatprep.subr.mxu0 0.0
    %3806 = vmatpush1.msra.mxu0 0.0
    %3807 = vmatprep.subr.mxu0 0.0
    %3808 = vmatpush1.msra.mxu0 0.0
    %3809 = vmatprep.subr.mxu0 0.0
    %3810 = vmatpush1.msra.mxu0 0.0
    %3811 = vmatprep.subr.mxu0 0.0
    %3812 = vmatpush1.msra.mxu0 0.0
    %3813 = vmatprep.subr.mxu0 0.0
    %3814 = vmatpush1.msra.mxu0 0.0
    %3815 = vmatprep.subr.mxu0 0.0
    %3816 = vmatpush1.msra.mxu0 0.0
    %3817 = vmatprep.subr.mxu0 0.0
    %3818 = vmatpush1.msra.mxu0 0.0
    %3819 = vmatprep.subr.mxu0 0.0
    %3820 = vmatpush1.msra.mxu0 0.0
    %3821 = vmatprep.mubr.f32.mxu0 0.0
    %3822 = vmatmul.mubr.f32.gmra.mrb[0].mxu0 %v3752
    %v3823 = vpop.f32.mrb[0].mxu0
    %v3824 = vadd.f32 %v2803, %v3823
    %v3825 = vpop.f32.mrb[0].mxu0
    %3826 = vdwg.mxu0
    %v3828 = vsel %vm2237, %v2220, 0
    %v3831 = vsel %vm1487, %v2808, 0
    %3833 = vmatprep.subr.mxu0 0.0
    %3834 = vmatpush1.msra.mxu0 %v2806
    %3835 = vmatprep.subr.mxu0 0.0
    %3836 = vmatpush1.msra.mxu0 %v2807
    %3837 = vmatprep.subr.mxu0 0.0
    %3838 = vmatpush1.msra.mxu0 %v3831
    %3839 = vmatprep.subr.mxu0 0.0
    %3840 = vmatpush1.msra.mxu0 0.0
    %3841 = vmatprep.subr.mxu0 0.0
    %3842 = vmatpush1.msra.mxu0 0.0
    %3843 = vmatprep.subr.mxu0 0.0
    %3844 = vmatpush1.msra.mxu0 0.0
    %3845 = vmatprep.subr.mxu0 0.0
    %3846 = vmatpush1.msra.mxu0 0.0
    %3847 = vmatprep.subr.mxu0 0.0
    %3848 = vmatpush1.msra.mxu0 0.0
    %3849 = vmatprep.subr.mxu0 0.0
    %3850 = vmatpush1.msra.mxu0 0.0
    %3851 = vmatprep.subr.mxu0 0.0
    %3852 = vmatpush1.msra.mxu0 0.0
    %3853 = vmatprep.subr.mxu0 0.0
    %3854 = vmatpush1.msra.mxu0 0.0
    %3855 = vmatprep.subr.mxu0 0.0
    %3856 = vmatpush1.msra.mxu0 0.0
    %3857 = vmatprep.subr.mxu0 0.0
    %3858 = vmatpush1.msra.mxu0 0.0
    %3859 = vmatprep.subr.mxu0 0.0
    %3860 = vmatpush1.msra.mxu0 0.0
    %3861 = vmatprep.subr.mxu0 0.0
    %3862 = vmatpush1.msra.mxu0 0.0
    %3863 = vmatprep.subr.mxu0 0.0
    %3864 = vmatpush1.msra.mxu0 0.0
    %3865 = vmatprep.subr.mxu0 0.0
    %3866 = vmatpush1.msra.mxu0 0.0
    %3867 = vmatprep.subr.mxu0 0.0
    %3868 = vmatpush1.msra.mxu0 0.0
    %3869 = vmatprep.subr.mxu0 0.0
    %3870 = vmatpush1.msra.mxu0 0.0
    %3871 = vmatprep.subr.mxu0 0.0
    %3872 = vmatpush1.msra.mxu0 0.0
    %3873 = vmatprep.subr.mxu0 0.0
    %3874 = vmatpush1.msra.mxu0 0.0
    %3875 = vmatprep.subr.mxu0 0.0
    %3876 = vmatpush1.msra.mxu0 0.0
    %3877 = vmatprep.subr.mxu0 0.0
    %3878 = vmatpush1.msra.mxu0 0.0
    %3879 = vmatprep.subr.mxu0 0.0
    %3880 = vmatpush1.msra.mxu0 0.0
    %3881 = vmatprep.subr.mxu0 0.0
    %3882 = vmatpush1.msra.mxu0 0.0
    %3883 = vmatprep.subr.mxu0 0.0
    %3884 = vmatpush1.msra.mxu0 0.0
    %3885 = vmatprep.subr.mxu0 0.0
    %3886 = vmatpush1.msra.mxu0 0.0
    %3887 = vmatprep.subr.mxu0 0.0
    %3888 = vmatpush1.msra.mxu0 0.0
    %3889 = vmatprep.subr.mxu0 0.0
    %3890 = vmatpush1.msra.mxu0 0.0
    %3891 = vmatprep.subr.mxu0 0.0
    %3892 = vmatpush1.msra.mxu0 0.0
    %3893 = vmatprep.subr.mxu0 0.0
    %3894 = vmatpush1.msra.mxu0 0.0
    %3895 = vmatprep.subr.mxu0 0.0
    %3896 = vmatpush1.msra.mxu0 0.0
    %3897 = vmatprep.mubr.f32.mxu0 0.0
    %3898 = vmatmul.mubr.f32.gmra.mrb[0].mxu0 %v3828
    %v3899 = vpop.f32.mrb[0].mxu0
    %v3900 = vadd.f32 %v2885, %v3899
    %v3901 = vpop.f32.mrb[0].mxu0
    %3902 = vdwg.mxu0
    %v3904 = vsel %vm2237, %v2222, 0
    %v3907 = vsel %vm1487, %v2890, 0
    %3909 = vmatprep.subr.mxu0 0.0
    %3910 = vmatpush1.msra.mxu0 %v2888
    %3911 = vmatprep.subr.mxu0 0.0
    %3912 = vmatpush1.msra.mxu0 %v2889
    %3913 = vmatprep.subr.mxu0 0.0
    %3914 = vmatpush1.msra.mxu0 %v3907
    %3915 = vmatprep.subr.mxu0 0.0
    %3916 = vmatpush1.msra.mxu0 0.0
    %3917 = vmatprep.subr.mxu0 0.0
    %3918 = vmatpush1.msra.mxu0 0.0
    %3919 = vmatprep.subr.mxu0 0.0
    %3920 = vmatpush1.msra.mxu0 0.0
    %3921 = vmatprep.subr.mxu0 0.0
    %3922 = vmatpush1.msra.mxu0 0.0
    %3923 = vmatprep.subr.mxu0 0.0
    %3924 = vmatpush1.msra.mxu0 0.0
    %3925 = vmatprep.subr.mxu0 0.0
    %3926 = vmatpush1.msra.mxu0 0.0
    %3927 = vmatprep.subr.mxu0 0.0
    %3928 = vmatpush1.msra.mxu0 0.0
    %3929 = vmatprep.subr.mxu0 0.0
    %3930 = vmatpush1.msra.mxu0 0.0
    %3931 = vmatprep.subr.mxu0 0.0
    %3932 = vmatpush1.msra.mxu0 0.0
    %3933 = vmatprep.subr.mxu0 0.0
    %3934 = vmatpush1.msra.mxu0 0.0
    %3935 = vmatprep.subr.mxu0 0.0
    %3936 = vmatpush1.msra.mxu0 0.0
    %3937 = vmatprep.subr.mxu0 0.0
    %3938 = vmatpush1.msra.mxu0 0.0
    %3939 = vmatprep.subr.mxu0 0.0
    %3940 = vmatpush1.msra.mxu0 0.0
    %3941 = vmatprep.subr.mxu0 0.0
    %3942 = vmatpush1.msra.mxu0 0.0
    %3943 = vmatprep.subr.mxu0 0.0
    %3944 = vmatpush1.msra.mxu0 0.0
    %3945 = vmatprep.subr.mxu0 0.0
    %3946 = vmatpush1.msra.mxu0 0.0
    %3947 = vmatprep.subr.mxu0 0.0
    %3948 = vmatpush1.msra.mxu0 0.0
    %3949 = vmatprep.subr.mxu0 0.0
    %3950 = vmatpush1.msra.mxu0 0.0
    %3951 = vmatprep.subr.mxu0 0.0
    %3952 = vmatpush1.msra.mxu0 0.0
    %3953 = vmatprep.subr.mxu0 0.0
    %3954 = vmatpush1.msra.mxu0 0.0
    %3955 = vmatprep.subr.mxu0 0.0
    %3956 = vmatpush1.msra.mxu0 0.0
    %3957 = vmatprep.subr.mxu0 0.0
    %3958 = vmatpush1.msra.mxu0 0.0
    %3959 = vmatprep.subr.mxu0 0.0
    %3960 = vmatpush1.msra.mxu0 0.0
    %3961 = vmatprep.subr.mxu0 0.0
    %3962 = vmatpush1.msra.mxu0 0.0
    %3963 = vmatprep.subr.mxu0 0.0
    %3964 = vmatpush1.msra.mxu0 0.0
    %3965 = vmatprep.subr.mxu0 0.0
    %3966 = vmatpush1.msra.mxu0 0.0
    %3967 = vmatprep.subr.mxu0 0.0
    %3968 = vmatpush1.msra.mxu0 0.0
    %3969 = vmatprep.subr.mxu0 0.0
    %3970 = vmatpush1.msra.mxu0 0.0
    %3971 = vmatprep.subr.mxu0 0.0
    %3972 = vmatpush1.msra.mxu0 0.0
    %3973 = vmatprep.mubr.f32.mxu0 0.0
    %3974 = vmatmul.mubr.f32.gmra.mrb[0].mxu0 %v3904
    %v3975 = vpop.f32.mrb[0].mxu0
    %v3976 = vadd.f32 %v2967, %v3975
    %v3977 = vpop.f32.mrb[0].mxu0
    %3978 = vdwg.mxu0
    %v3980 = vsel %vm2237, %v2224, 0
    %v3983 = vsel %vm1487, %v2972, 0
    %3985 = vmatprep.subr.mxu0 0.0
    %3986 = vmatpush1.msra.mxu0 %v2970
    %3987 = vmatprep.subr.mxu0 0.0
    %3988 = vmatpush1.msra.mxu0 %v2971
    %3989 = vmatprep.subr.mxu0 0.0
    %3990 = vmatpush1.msra.mxu0 %v3983
    %3991 = vmatprep.subr.mxu0 0.0
    %3992 = vmatpush1.msra.mxu0 0.0
    %3993 = vmatprep.subr.mxu0 0.0
    %3994 = vmatpush1.msra.mxu0 0.0
    %3995 = vmatprep.subr.mxu0 0.0
    %3996 = vmatpush1.msra.mxu0 0.0
    %3997 = vmatprep.subr.mxu0 0.0
    %3998 = vmatpush1.msra.mxu0 0.0
    %3999 = vmatprep.subr.mxu0 0.0
    %4000 = vmatpush1.msra.mxu0 0.0
    %4001 = vmatprep.subr.mxu0 0.0
    %4002 = vmatpush1.msra.mxu0 0.0
    %4003 = vmatprep.subr.mxu0 0.0
    %4004 = vmatpush1.msra.mxu0 0.0
    %4005 = vmatprep.subr.mxu0 0.0
    %4006 = vmatpush1.msra.mxu0 0.0
    %4007 = vmatprep.subr.mxu0 0.0
    %4008 = vmatpush1.msra.mxu0 0.0
    %4009 = vmatprep.subr.mxu0 0.0
    %4010 = vmatpush1.msra.mxu0 0.0
    %4011 = vmatprep.subr.mxu0 0.0
    %4012 = vmatpush1.msra.mxu0 0.0
    %4013 = vmatprep.subr.mxu0 0.0
    %4014 = vmatpush1.msra.mxu0 0.0
    %4015 = vmatprep.subr.mxu0 0.0
    %4016 = vmatpush1.msra.mxu0 0.0
    %4017 = vmatprep.subr.mxu0 0.0
    %4018 = vmatpush1.msra.mxu0 0.0
    %4019 = vmatprep.subr.mxu0 0.0
    %4020 = vmatpush1.msra.mxu0 0.0
    %4021 = vmatprep.subr.mxu0 0.0
    %4022 = vmatpush1.msra.mxu0 0.0
    %4023 = vmatprep.subr.mxu0 0.0
    %4024 = vmatpush1.msra.mxu0 0.0
    %4025 = vmatprep.subr.mxu0 0.0
    %4026 = vmatpush1.msra.mxu0 0.0
    %4027 = vmatprep.subr.mxu0 0.0
    %4028 = vmatpush1.msra.mxu0 0.0
    %4029 = vmatprep.subr.mxu0 0.0
    %4030 = vmatpush1.msra.mxu0 0.0
    %4031 = vmatprep.subr.mxu0 0.0
    %4032 = vmatpush1.msra.mxu0 0.0
    %4033 = vmatprep.subr.mxu0 0.0
    %4034 = vmatpush1.msra.mxu0 0.0
    %4035 = vmatprep.subr.mxu0 0.0
    %4036 = vmatpush1.msra.mxu0 0.0
    %4037 = vmatprep.subr.mxu0 0.0
    %4038 = vmatpush1.msra.mxu0 0.0
    %4039 = vmatprep.subr.mxu0 0.0
    %4040 = vmatpush1.msra.mxu0 0.0
    %4041 = vmatprep.subr.mxu0 0.0
    %4042 = vmatpush1.msra.mxu0 0.0
    %4043 = vmatprep.subr.mxu0 0.0
    %4044 = vmatpush1.msra.mxu0 0.0
    %4045 = vmatprep.subr.mxu0 0.0
    %4046 = vmatpush1.msra.mxu0 0.0
    %4047 = vmatprep.subr.mxu0 0.0
    %4048 = vmatpush1.msra.mxu0 0.0
    %4049 = vmatprep.mubr.f32.mxu0 0.0
    %4050 = vmatmul.mubr.f32.gmra.mrb[0].mxu0 %v3980
    %v4051 = vpop.f32.mrb[0].mxu0
    %v4052 = vadd.f32 %v3049, %v4051
    %v4053 = vpop.f32.mrb[0].mxu0
    %4054 = vdwg.mxu0
    %v4056 = vsel %vm2237, %v2226, 0
    %v4059 = vsel %vm1487, %v3054, 0
    %4061 = vmatprep.subr.mxu0 0.0
    %4062 = vmatpush1.msra.mxu0 %v3052
    %4063 = vmatprep.subr.mxu0 0.0
    %4064 = vmatpush1.msra.mxu0 %v3053
    %4065 = vmatprep.subr.mxu0 0.0
    %4066 = vmatpush1.msra.mxu0 %v4059
    %4067 = vmatprep.subr.mxu0 0.0
    %4068 = vmatpush1.msra.mxu0 0.0
    %4069 = vmatprep.subr.mxu0 0.0
    %4070 = vmatpush1.msra.mxu0 0.0
    %4071 = vmatprep.subr.mxu0 0.0
    %4072 = vmatpush1.msra.mxu0 0.0
    %4073 = vmatprep.subr.mxu0 0.0
    %4074 = vmatpush1.msra.mxu0 0.0
    %4075 = vmatprep.subr.mxu0 0.0
    %4076 = vmatpush1.msra.mxu0 0.0
    %4077 = vmatprep.subr.mxu0 0.0
    %4078 = vmatpush1.msra.mxu0 0.0
    %4079 = vmatprep.subr.mxu0 0.0
    %4080 = vmatpush1.msra.mxu0 0.0
    %4081 = vmatprep.subr.mxu0 0.0
    %4082 = vmatpush1.msra.mxu0 0.0
    %4083 = vmatprep.subr.mxu0 0.0
    %4084 = vmatpush1.msra.mxu0 0.0
    %4085 = vmatprep.subr.mxu0 0.0
    %4086 = vmatpush1.msra.mxu0 0.0
    %4087 = vmatprep.subr.mxu0 0.0
    %4088 = vmatpush1.msra.mxu0 0.0
    %4089 = vmatprep.subr.mxu0 0.0
    %4090 = vmatpush1.msra.mxu0 0.0
    %4091 = vmatprep.subr.mxu0 0.0
    %4092 = vmatpush1.msra.mxu0 0.0
    %4093 = vmatprep.subr.mxu0 0.0
    %4094 = vmatpush1.msra.mxu0 0.0
    %4095 = vmatprep.subr.mxu0 0.0
    %4096 = vmatpush1.msra.mxu0 0.0
    %4097 = vmatprep.subr.mxu0 0.0
    %4098 = vmatpush1.msra.mxu0 0.0
    %4099 = vmatprep.subr.mxu0 0.0
    %4100 = vmatpush1.msra.mxu0 0.0
    %4101 = vmatprep.subr.mxu0 0.0
    %4102 = vmatpush1.msra.mxu0 0.0
    %4103 = vmatprep.subr.mxu0 0.0
    %4104 = vmatpush1.msra.mxu0 0.0
    %4105 = vmatprep.subr.mxu0 0.0
    %4106 = vmatpush1.msra.mxu0 0.0
    %4107 = vmatprep.subr.mxu0 0.0
    %4108 = vmatpush1.msra.mxu0 0.0
    %4109 = vmatprep.subr.mxu0 0.0
    %4110 = vmatpush1.msra.mxu0 0.0
    %4111 = vmatprep.subr.mxu0 0.0
    %4112 = vmatpush1.msra.mxu0 0.0
    %4113 = vmatprep.subr.mxu0 0.0
    %4114 = vmatpush1.msra.mxu0 0.0
    %4115 = vmatprep.subr.mxu0 0.0
    %4116 = vmatpush1.msra.mxu0 0.0
    %4117 = vmatprep.subr.mxu0 0.0
    %4118 = vmatpush1.msra.mxu0 0.0
    %4119 = vmatprep.subr.mxu0 0.0
    %4120 = vmatpush1.msra.mxu0 0.0
    %4121 = vmatprep.subr.mxu0 0.0
    %4122 = vmatpush1.msra.mxu0 0.0
    %4123 = vmatprep.subr.mxu0 0.0
    %4124 = vmatpush1.msra.mxu0 0.0
    %4125 = vmatprep.mubr.f32.mxu0 0.0
    %4126 = vmatmul.mubr.f32.gmra.mrb[0].mxu0 %v4056
    %v4127 = vpop.f32.mrb[0].mxu0
    %v4128 = vadd.f32 %v3131, %v4127
    %v4129 = vpop.f32.mrb[0].mxu0
    %4130 = vdwg.mxu0
    %v4132 = vsel %vm2237, %v2228, 0
    %v4135 = vsel %vm1487, %v3136, 0
    %4137 = vmatprep.subr.mxu0 0.0
    %4138 = vmatpush1.msra.mxu0 %v3134
    %4139 = vmatprep.subr.mxu0 0.0
    %4140 = vmatpush1.msra.mxu0 %v3135
    %4141 = vmatprep.subr.mxu0 0.0
    %4142 = vmatpush1.msra.mxu0 %v4135
    %4143 = vmatprep.subr.mxu0 0.0
    %4144 = vmatpush1.msra.mxu0 0.0
    %4145 = vmatprep.subr.mxu0 0.0
    %4146 = vmatpush1.msra.mxu0 0.0
    %4147 = vmatprep.subr.mxu0 0.0
    %4148 = vmatpush1.msra.mxu0 0.0
    %4149 = vmatprep.subr.mxu0 0.0
    %4150 = vmatpush1.msra.mxu0 0.0
    %4151 = vmatprep.subr.mxu0 0.0
    %4152 = vmatpush1.msra.mxu0 0.0
    %4153 = vmatprep.subr.mxu0 0.0
    %4154 = vmatpush1.msra.mxu0 0.0
    %4155 = vmatprep.subr.mxu0 0.0
    %4156 = vmatpush1.msra.mxu0 0.0
    %4157 = vmatprep.subr.mxu0 0.0
    %4158 = vmatpush1.msra.mxu0 0.0
    %4159 = vmatprep.subr.mxu0 0.0
    %4160 = vmatpush1.msra.mxu0 0.0
    %4161 = vmatprep.subr.mxu0 0.0
    %4162 = vmatpush1.msra.mxu0 0.0
    %4163 = vmatprep.subr.mxu0 0.0
    %4164 = vmatpush1.msra.mxu0 0.0
    %4165 = vmatprep.subr.mxu0 0.0
    %4166 = vmatpush1.msra.mxu0 0.0
    %4167 = vmatprep.subr.mxu0 0.0
    %4168 = vmatpush1.msra.mxu0 0.0
    %4169 = vmatprep.subr.mxu0 0.0
    %4170 = vmatpush1.msra.mxu0 0.0
    %4171 = vmatprep.subr.mxu0 0.0
    %4172 = vmatpush1.msra.mxu0 0.0
    %4173 = vmatprep.subr.mxu0 0.0
    %4174 = vmatpush1.msra.mxu0 0.0
    %4175 = vmatprep.subr.mxu0 0.0
    %4176 = vmatpush1.msra.mxu0 0.0
    %4177 = vmatprep.subr.mxu0 0.0
    %4178 = vmatpush1.msra.mxu0 0.0
    %4179 = vmatprep.subr.mxu0 0.0
    %4180 = vmatpush1.msra.mxu0 0.0
    %4181 = vmatprep.subr.mxu0 0.0
    %4182 = vmatpush1.msra.mxu0 0.0
    %4183 = vmatprep.subr.mxu0 0.0
    %4184 = vmatpush1.msra.mxu0 0.0
    %4185 = vmatprep.subr.mxu0 0.0
    %4186 = vmatpush1.msra.mxu0 0.0
    %4187 = vmatprep.subr.mxu0 0.0
    %4188 = vmatpush1.msra.mxu0 0.0
    %4189 = vmatprep.subr.mxu0 0.0
    %4190 = vmatpush1.msra.mxu0 0.0
    %4191 = vmatprep.subr.mxu0 0.0
    %4192 = vmatpush1.msra.mxu0 0.0
    %4193 = vmatprep.subr.mxu0 0.0
    %4194 = vmatpush1.msra.mxu0 0.0
    %4195 = vmatprep.subr.mxu0 0.0
    %4196 = vmatpush1.msra.mxu0 0.0
    %4197 = vmatprep.subr.mxu0 0.0
    %4198 = vmatpush1.msra.mxu0 0.0
    %4199 = vmatprep.subr.mxu0 0.0
    %4200 = vmatpush1.msra.mxu0 0.0
    %4201 = vmatprep.mubr.f32.mxu0 0.0
    %4202 = vmatmul.mubr.f32.gmra.mrb[0].mxu0 %v4132
    %v4203 = vpop.f32.mrb[0].mxu0
    %v4204 = vadd.f32 %v3213, %v4203
    %v4205 = vpop.f32.mrb[0].mxu0
    %4206 = vdwg.mxu0
    %v4207 = vadd.f32 %v3368, %v3444
    %v4208 = vadd.f32 %v3520, %v3596
    %v4209 = vadd.f32 %v3672, %v3748
    %v4210 = vadd.f32 %v3824, %v3900
    %v4211 = vadd.f32 %v3976, %v4052
    %v4212 = vadd.f32 %v4128, %v4204
    %v4213 = vadd.f32 %v4207, %v4208
    %v4214 = vadd.f32 %v4209, %v4210
    %v4215 = vadd.f32 %v4211, %v4212
    %v4216 = vadd.f32 %v4213, %v4214
    %v4217 = vadd.f32 %v4215, %v3292
    %v4218 = vadd.f32 %v4216, %v4217
    %v4219 = vld [vmem:[%s4 + $0x258] sm:$0x1]
    %v4220 = vlaneseq
    %v4221 = vshrl.u32 %v4220, 7
    %v4222 = vsub.s32 0, %v4221
    %v4223 = vrot.slane %v4219, %v4222
    %v4224 = vadd.f32 %v4218, %v4223
    %v4225 = vmax.f32 %v4224, 0.0
    %v4227 = vrot.slane %v4225, 2
    %v4229 = vmax.f32 %v4225, %v4227
    %v4231 = vrot.slane %v4229, 4
    %v4233 = vmax.f32 %v4229, %v4231
    %v4235 = vrot.slane %v4233, 2
    %4236 = vrot.lane.b32.xlu0 %v4235, 64
    %v4237 = vpop.permute.xlu0 %4236
    %v4239 = vsel %vm149, %v1067, %v4237
    %v4240 = vld [vmem:[%s5] sm:$0xff]
    %v4241 = vld [vmem:[%s5 + $0x8] sm:$0xff]
    %v4242 = vld [vmem:[%s5 + $0x10] sm:$0xff]
    %v4243 = vld [vmem:[%s5 + $0x18] sm:$0xff]
    %v4244 = vld [vmem:[%s5 + $0x20] sm:$0xff]
    %v4245 = vld [vmem:[%s5 + $0x28] sm:$0xff]
    %v4246 = vld [vmem:[%s5 + $0x30] sm:$0xff]
    %v4247 = vld [vmem:[%s5 + $0x38] sm:$0xff]
    %v4248 = vld [vmem:[%s5 + $0x40] sm:$0xff]
    %v4249 = vld [vmem:[%s5 + $0x48] sm:$0xff]
    %v4250 = vld [vmem:[%s5 + $0x50] sm:$0xff]
    %v4251 = vld [vmem:[%s5 + $0x58] sm:$0xff]
    %v4252 = vld [vmem:[%s5 + $0x60] sm:$0xff]
    %v4253 = vld [vmem:[%s5 + $0x68] sm:$0xff]
    %v4254 = vld [vmem:[%s5 + $0x70] sm:$0xff]
    %v4255 = vld [vmem:[%s5 + $0x78] sm:$0xff]
    %v4256 = vld [vmem:[%s5 + $0x80] sm:$0xff]
    %v4257 = vld [vmem:[%s5 + $0x88] sm:$0xff]
    %v4258 = vld [vmem:[%s5 + $0x90] sm:$0xff]
    %v4259 = vld [vmem:[%s5 + $0x98] sm:$0xff]
    %v4260 = vld [vmem:[%s5 + $0xa0] sm:$0xff]
    %v4261 = vld [vmem:[%s5 + $0xa8] sm:$0xff]
    %v4262 = vld [vmem:[%s5 + $0xb0] sm:$0xff]
    %v4263 = vld [vmem:[%s5 + $0xb8] sm:$0xff]
    %v4264 = vld [vmem:[%s5 + $0xc0] sm:$0xff]
    %v4265 = vld [vmem:[%s5 + $0xc8] sm:$0xff]
    %v4266 = vld [vmem:[%s5 + $0xd0] sm:$0xff]
    %v4267 = vld [vmem:[%s5 + $0xd8] sm:$0xff]
    %v4268 = vld [vmem:[%s5 + $0xe0] sm:$0xff]
    %v4269 = vld [vmem:[%s5 + $0xe8] sm:$0xff]
    %v4270 = vld [vmem:[%s5 + $0xf0] sm:$0xff]
    %v4271 = vld [vmem:[%s5 + $0xf8] sm:$0xff]
    %v4272 = vld [vmem:[%s5 + $0x100] sm:$0xff]
    %v4273 = vld [vmem:[%s5 + $0x108] sm:$0xff]
    %v4274 = vld [vmem:[%s5 + $0x110] sm:$0xff]
    %v4275 = vld [vmem:[%s5 + $0x118] sm:$0xff]
    %v4276 = vld [vmem:[%s5 + $0x120] sm:$0xff]
    %v4277 = vld [vmem:[%s5 + $0x128] sm:$0xff]
    %v4278 = vld [vmem:[%s5 + $0x130] sm:$0xff]
    %v4279 = vld [vmem:[%s5 + $0x138] sm:$0xff]
    %v4280 = vld [vmem:[%s5 + $0x140] sm:$0xff]
    %v4281 = vld [vmem:[%s5 + $0x148] sm:$0xff]
    %v4282 = vld [vmem:[%s5 + $0x150] sm:$0xff]
    %v4283 = vld [vmem:[%s5 + $0x158] sm:$0xff]
    %v4284 = vld [vmem:[%s5 + $0x160] sm:$0xff]
    %v4285 = vld [vmem:[%s5 + $0x168] sm:$0xff]
    %v4286 = vld [vmem:[%s5 + $0x170] sm:$0xff]
    %v4287 = vld [vmem:[%s5 + $0x178] sm:$0xff]
    %v4288 = vld [vmem:[%s5 + $0x180] sm:$0xff]
    %v4289 = vld [vmem:[%s5 + $0x188] sm:$0xff]
    %v4290 = vld [vmem:[%s5 + $0x190] sm:$0xff]
    %v4291 = vld [vmem:[%s5 + $0x198] sm:$0xff]
    %v4292 = vld [vmem:[%s5 + $0x1a0] sm:$0xff]
    %v4293 = vld [vmem:[%s5 + $0x1a8] sm:$0xff]
    %v4294 = vld [vmem:[%s5 + $0x1b0] sm:$0xff]
    %v4295 = vld [vmem:[%s5 + $0x1b8] sm:$0xff]
    %v4296 = vld [vmem:[%s5 + $0x1c0] sm:$0x3]
    %v4297 = vld [vmem:[%s5 + $0x1c8] sm:$0x3]
    %v4298 = vld [vmem:[%s5 + $0x1d0] sm:$0x3]
    %v4299 = vld [vmem:[%s5 + $0x1d8] sm:$0x3]
    %s4300 = scalar_lea.vmem %s5, 480
    %v4301 = vld [vmem:[%s4300] ss:$8 sm:$0xf]
    %v4303 = vlaneseq
    %v4304 = vshrl.u32 %v4303, 7
    %v4305 = vsub.s32 0, %v4304
    %v4306 = vrot.slane %v4301, %v4305
    %v4307 = vlaneseq
    %v4308 = vshrl.u32 %v4307, 7
    %v4309 = vsub.s32 1, %v4308
    %v4310 = vrot.slane %v4301, %v4309
    %v4311 = vlaneseq
    %v4312 = vshrl.u32 %v4311, 7
    %v4313 = vsub.s32 2, %v4312
    %v4314 = vrot.slane %v4301, %v4313
    %v4315 = vlaneseq
    %v4316 = vshrl.u32 %v4315, 7
    %v4317 = vsub.s32 3, %v4316
    %v4318 = vrot.slane %v4301, %v4317
    %v4324 = vrot.slane %v4239, 6
    %vm4325 = vcmask 932864
    %v4326 = vsel %vm4325, %v4324, 0
    %vm4328 = vcmask 1041408
    %v4330 = vsel %vm4328, %v4296, 0
    %v4333 = vsel %vm4328, %v4297, 0
    %v4336 = vsel %vm4328, %v4298, 0
    %v4339 = vsel %vm4328, %v4299, 0
    %4341 = vmatprep.subr.mxu0 %v4241
    %4342 = vmatpush1.msra.mxu0 %v4240
    %4343 = vmatprep.subr.mxu0 %v4245
    %4344 = vmatpush1.msra.mxu0 %v4244
    %4345 = vmatprep.subr.mxu0 %v4249
    %4346 = vmatpush1.msra.mxu0 %v4248
    %4347 = vmatprep.subr.mxu0 %v4253
    %4348 = vmatpush1.msra.mxu0 %v4252
    %4349 = vmatprep.subr.mxu0 %v4257
    %4350 = vmatpush1.msra.mxu0 %v4256
    %4351 = vmatprep.subr.mxu0 %v4261
    %4352 = vmatpush1.msra.mxu0 %v4260
    %4353 = vmatprep.subr.mxu0 %v4265
    %4354 = vmatpush1.msra.mxu0 %v4264
    %4355 = vmatprep.subr.mxu0 %v4269
    %4356 = vmatpush1.msra.mxu0 %v4268
    %4357 = vmatprep.subr.mxu0 %v4273
    %4358 = vmatpush1.msra.mxu0 %v4272
    %4359 = vmatprep.subr.mxu0 %v4277
    %4360 = vmatpush1.msra.mxu0 %v4276
    %4361 = vmatprep.subr.mxu0 %v4281
    %4362 = vmatpush1.msra.mxu0 %v4280
    %4363 = vmatprep.subr.mxu0 %v4285
    %4364 = vmatpush1.msra.mxu0 %v4284
    %4365 = vmatprep.subr.mxu0 %v4289
    %4366 = vmatpush1.msra.mxu0 %v4288
    %4367 = vmatprep.subr.mxu0 %v4293
    %4368 = vmatpush1.msra.mxu0 %v4292
    %4369 = vmatprep.subr.mxu0 %v4333
    %4370 = vmatpush1.msra.mxu0 %v4330
    %4371 = vmatprep.subr.mxu0 0.0
    %4372 = vmatpush1.msra.mxu0 0.0
    %4373 = vmatprep.subr.mxu0 0.0
    %4374 = vmatpush1.msra.mxu0 0.0
    %4375 = vmatprep.subr.mxu0 0.0
    %4376 = vmatpush1.msra.mxu0 0.0
    %4377 = vmatprep.subr.mxu0 0.0
    %4378 = vmatpush1.msra.mxu0 0.0
    %4379 = vmatprep.subr.mxu0 0.0
    %4380 = vmatpush1.msra.mxu0 0.0
    %4381 = vmatprep.subr.mxu0 0.0
    %4382 = vmatpush1.msra.mxu0 0.0
    %4383 = vmatprep.subr.mxu0 0.0
    %4384 = vmatpush1.msra.mxu0 0.0
    %4385 = vmatprep.subr.mxu0 0.0
    %4386 = vmatpush1.msra.mxu0 0.0
    %4387 = vmatprep.subr.mxu0 0.0
    %4388 = vmatpush1.msra.mxu0 0.0
    %4389 = vmatprep.subr.mxu0 0.0
    %4390 = vmatpush1.msra.mxu0 0.0
    %4391 = vmatprep.subr.mxu0 0.0
    %4392 = vmatpush1.msra.mxu0 0.0
    %4393 = vmatprep.subr.mxu0 0.0
    %4394 = vmatpush1.msra.mxu0 0.0
    %4395 = vmatprep.subr.mxu0 0.0
    %4396 = vmatpush1.msra.mxu0 0.0
    %4397 = vmatprep.subr.mxu0 0.0
    %4398 = vmatpush1.msra.mxu0 0.0
    %4399 = vmatprep.subr.mxu0 0.0
    %4400 = vmatpush1.msra.mxu0 0.0
    %4401 = vmatprep.subr.mxu0 0.0
    %4402 = vmatpush1.msra.mxu0 0.0
    %4403 = vmatprep.subr.mxu0 0.0
    %4404 = vmatpush1.msra.mxu0 0.0
    %4405 = vmatprep.mubr.f32.mxu0 0.0
    %4406 = vmatmul.mubr.f32.gmra.mrb[0].mxu0 %v4326
    %v4407 = vpop.f32.mrb[0].mxu0
    %v4408 = vadd.f32 %v4306, %v4407
    %v4409 = vpop.f32.mrb[0].mxu0
    %v4410 = vadd.f32 %v4310, %v4409
    %4411 = vdwg.mxu0
    %4412 = vmatprep.subr.mxu0 %v4243
    %4413 = vmatpush1.msra.mxu0 %v4242
    %4414 = vmatprep.subr.mxu0 %v4247
    %4415 = vmatpush1.msra.mxu0 %v4246
    %4416 = vmatprep.subr.mxu0 %v4251
    %4417 = vmatpush1.msra.mxu0 %v4250
    %4418 = vmatprep.subr.mxu0 %v4255
    %4419 = vmatpush1.msra.mxu0 %v4254
    %4420 = vmatprep.subr.mxu0 %v4259
    %4421 = vmatpush1.msra.mxu0 %v4258
    %4422 = vmatprep.subr.mxu0 %v4263
    %4423 = vmatpush1.msra.mxu0 %v4262
    %4424 = vmatprep.subr.mxu0 %v4267
    %4425 = vmatpush1.msra.mxu0 %v4266
    %4426 = vmatprep.subr.mxu0 %v4271
    %4427 = vmatpush1.msra.mxu0 %v4270
    %4428 = vmatprep.subr.mxu0 %v4275
    %4429 = vmatpush1.msra.mxu0 %v4274
    %4430 = vmatprep.subr.mxu0 %v4279
    %4431 = vmatpush1.msra.mxu0 %v4278
    %4432 = vmatprep.subr.mxu0 %v4283
    %4433 = vmatpush1.msra.mxu0 %v4282
    %4434 = vmatprep.subr.mxu0 %v4287
    %4435 = vmatpush1.msra.mxu0 %v4286
    %4436 = vmatprep.subr.mxu0 %v4291
    %4437 = vmatpush1.msra.mxu0 %v4290
    %4438 = vmatprep.subr.mxu0 %v4295
    %4439 = vmatpush1.msra.mxu0 %v4294
    %4440 = vmatprep.subr.mxu0 %v4339
    %4441 = vmatpush1.msra.mxu0 %v4336
    %4442 = vmatprep.subr.mxu0 0.0
    %4443 = vmatpush1.msra.mxu0 0.0
    %4444 = vmatprep.subr.mxu0 0.0
    %4445 = vmatpush1.msra.mxu0 0.0
    %4446 = vmatprep.subr.mxu0 0.0
    %4447 = vmatpush1.msra.mxu0 0.0
    %4448 = vmatprep.subr.mxu0 0.0
    %4449 = vmatpush1.msra.mxu0 0.0
    %4450 = vmatprep.subr.mxu0 0.0
    %4451 = vmatpush1.msra.mxu0 0.0
    %4452 = vmatprep.subr.mxu0 0.0
    %4453 = vmatpush1.msra.mxu0 0.0
    %4454 = vmatprep.subr.mxu0 0.0
    %4455 = vmatpush1.msra.mxu0 0.0
    %4456 = vmatprep.subr.mxu0 0.0
    %4457 = vmatpush1.msra.mxu0 0.0
    %4458 = vmatprep.subr.mxu0 0.0
    %4459 = vmatpush1.msra.mxu0 0.0
    %4460 = vmatprep.subr.mxu0 0.0
    %4461 = vmatpush1.msra.mxu0 0.0
    %4462 = vmatprep.subr.mxu0 0.0
    %4463 = vmatpush1.msra.mxu0 0.0
    %4464 = vmatprep.subr.mxu0 0.0
    %4465 = vmatpush1.msra.mxu0 0.0
    %4466 = vmatprep.subr.mxu0 0.0
    %4467 = vmatpush1.msra.mxu0 0.0
    %4468 = vmatprep.subr.mxu0 0.0
    %4469 = vmatpush1.msra.mxu0 0.0
    %4470 = vmatprep.subr.mxu0 0.0
    %4471 = vmatpush1.msra.mxu0 0.0
    %4472 = vmatprep.subr.mxu0 0.0
    %4473 = vmatpush1.msra.mxu0 0.0
    %4474 = vmatprep.subr.mxu0 0.0
    %4475 = vmatpush1.msra.mxu0 0.0
    %4476 = vmatprep.mubr.f32.mxu0 0.0
    %4477 = vmatmul.mubr.f32.gmra.mrb[0].mxu0 %v4326
    %v4478 = vpop.f32.mrb[0].mxu0
    %v4479 = vadd.f32 %v4314, %v4478
    %v4480 = vpop.f32.mrb[0].mxu0
    %v4481 = vadd.f32 %v4318, %v4480
    %4482 = vdwg.mxu0
    %v4483 = vmax.f32 %v4408, 0.0
    %v4484 = vmax.f32 %v4410, 0.0
    %v4485 = vmax.f32 %v4479, 0.0
    %v4486 = vmax.f32 %v4481, 0.0
    %v4487 = vld [vmem:[%s6] sm:$0xff]
    %v4488 = vld [vmem:[%s6 + $0x8] sm:$0xff]
    %v4489 = vld [vmem:[%s6 + $0x10] sm:$0xff]
    %v4490 = vld [vmem:[%s6 + $0x18] sm:$0xff]
    %v4491 = vld [vmem:[%s6 + $0x20] sm:$0xff]
    %v4492 = vld [vmem:[%s6 + $0x28] sm:$0xff]
    %v4493 = vld [vmem:[%s6 + $0x30] sm:$0xff]
    %v4494 = vld [vmem:[%s6 + $0x38] sm:$0xff]
    %v4495 = vld [vmem:[%s6 + $0x40] sm:$0xff]
    %v4496 = vld [vmem:[%s6 + $0x48] sm:$0xff]
    %v4497 = vld [vmem:[%s6 + $0x50] sm:$0xff]
    %v4498 = vld [vmem:[%s6 + $0x58] sm:$0xff]
    %v4499 = vld [vmem:[%s6 + $0x60] sm:$0xff]
    %v4500 = vld [vmem:[%s6 + $0x68] sm:$0xff]
    %v4501 = vld [vmem:[%s6 + $0x70] sm:$0xff]
    %v4502 = vld [vmem:[%s6 + $0x78] sm:$0xff]
    %v4503 = vld [vmem:[%s6 + $0x80] sm:$0xff]
    %v4504 = vld [vmem:[%s6 + $0x88] sm:$0xff]
    %v4505 = vld [vmem:[%s6 + $0x90] sm:$0xff]
    %v4506 = vld [vmem:[%s6 + $0x98] sm:$0xff]
    %v4507 = vld [vmem:[%s6 + $0xa0] sm:$0xff]
    %v4508 = vld [vmem:[%s6 + $0xa8] sm:$0xff]
    %v4509 = vld [vmem:[%s6 + $0xb0] sm:$0xff]
    %v4510 = vld [vmem:[%s6 + $0xb8] sm:$0xff]
    %v4511 = vld [vmem:[%s6 + $0xc0] sm:$0xff]
    %v4512 = vld [vmem:[%s6 + $0xc8] sm:$0xff]
    %v4513 = vld [vmem:[%s6 + $0xd0] sm:$0xff]
    %v4514 = vld [vmem:[%s6 + $0xd8] sm:$0xff]
    %v4515 = vld [vmem:[%s6 + $0xe0] sm:$0xff]
    %v4516 = vld [vmem:[%s6 + $0xe8] sm:$0xff]
    %v4517 = vld [vmem:[%s6 + $0xf0] sm:$0xff]
    %v4518 = vld [vmem:[%s6 + $0xf8] sm:$0xff]
    %v4519 = vld [vmem:[%s6 + $0x100] sm:$0xff]
    %v4520 = vld [vmem:[%s6 + $0x108] sm:$0xff]
    %v4521 = vld [vmem:[%s6 + $0x110] sm:$0xff]
    %v4522 = vld [vmem:[%s6 + $0x118] sm:$0xff]
    %v4523 = vld [vmem:[%s6 + $0x120] sm:$0xff]
    %v4524 = vld [vmem:[%s6 + $0x128] sm:$0xff]
    %v4525 = vld [vmem:[%s6 + $0x130] sm:$0xff]
    %v4526 = vld [vmem:[%s6 + $0x138] sm:$0xff]
    %v4527 = vld [vmem:[%s6 + $0x140] sm:$0xff]
    %v4528 = vld [vmem:[%s6 + $0x148] sm:$0xff]
    %v4529 = vld [vmem:[%s6 + $0x150] sm:$0xff]
    %v4530 = vld [vmem:[%s6 + $0x158] sm:$0xff]
    %v4531 = vld [vmem:[%s6 + $0x160] sm:$0xff]
    %v4532 = vld [vmem:[%s6 + $0x168] sm:$0xff]
    %v4533 = vld [vmem:[%s6 + $0x170] sm:$0xff]
    %v4534 = vld [vmem:[%s6 + $0x178] sm:$0xff]
    %v4535 = vld [vmem:[%s6 + $0x180] sm:$0xff]
    %v4536 = vld [vmem:[%s6 + $0x188] sm:$0xff]
    %v4537 = vld [vmem:[%s6 + $0x190] sm:$0xff]
    %v4538 = vld [vmem:[%s6 + $0x198] sm:$0xff]
    %v4539 = vld [vmem:[%s6 + $0x1a0] sm:$0xff]
    %v4540 = vld [vmem:[%s6 + $0x1a8] sm:$0xff]
    %v4541 = vld [vmem:[%s6 + $0x1b0] sm:$0xff]
    %v4542 = vld [vmem:[%s6 + $0x1b8] sm:$0xff]
    %v4543 = vld [vmem:[%s6 + $0x1c0] sm:$0xff]
    %v4544 = vld [vmem:[%s6 + $0x1c8] sm:$0xff]
    %v4545 = vld [vmem:[%s6 + $0x1d0] sm:$0xff]
    %v4546 = vld [vmem:[%s6 + $0x1d8] sm:$0xff]
    %v4547 = vld [vmem:[%s6 + $0x1e0] sm:$0xff]
    %v4548 = vld [vmem:[%s6 + $0x1e8] sm:$0xff]
    %v4549 = vld [vmem:[%s6 + $0x1f0] sm:$0xff]
    %v4550 = vld [vmem:[%s6 + $0x1f8] sm:$0xff]
    %v4551 = vld [vmem:[%s6 + $0x200] sm:$0xff]
    %v4552 = vld [vmem:[%s6 + $0x208] sm:$0xff]
    %v4553 = vld [vmem:[%s6 + $0x210] sm:$0xff]
    %v4554 = vld [vmem:[%s6 + $0x218] sm:$0xff]
    %v4555 = vld [vmem:[%s6 + $0x220] sm:$0xff]
    %v4556 = vld [vmem:[%s6 + $0x228] sm:$0xff]
    %v4557 = vld [vmem:[%s6 + $0x230] sm:$0xff]
    %v4558 = vld [vmem:[%s6 + $0x238] sm:$0xff]
    %v4559 = vld [vmem:[%s6 + $0x240] sm:$0xff]
    %v4560 = vld [vmem:[%s6 + $0x248] sm:$0xff]
    %v4561 = vld [vmem:[%s6 + $0x250] sm:$0xff]
    %v4562 = vld [vmem:[%s6 + $0x258] sm:$0xff]
    %v4563 = vld [vmem:[%s6 + $0x260] sm:$0xff]
    %v4564 = vld [vmem:[%s6 + $0x268] sm:$0xff]
    %v4565 = vld [vmem:[%s6 + $0x270] sm:$0xff]
    %v4566 = vld [vmem:[%s6 + $0x278] sm:$0xff]
    %v4567 = vld [vmem:[%s6 + $0x280] sm:$0xff]
    %v4568 = vld [vmem:[%s6 + $0x288] sm:$0xff]
    %v4569 = vld [vmem:[%s6 + $0x290] sm:$0xff]
    %v4570 = vld [vmem:[%s6 + $0x298] sm:$0xff]
    %v4571 = vld [vmem:[%s6 + $0x2a0] sm:$0xff]
    %v4572 = vld [vmem:[%s6 + $0x2a8] sm:$0xff]
    %v4573 = vld [vmem:[%s6 + $0x2b0] sm:$0xff]
    %v4574 = vld [vmem:[%s6 + $0x2b8] sm:$0xff]
    %v4575 = vld [vmem:[%s6 + $0x2c0] sm:$0xff]
    %v4576 = vld [vmem:[%s6 + $0x2c8] sm:$0xff]
    %v4577 = vld [vmem:[%s6 + $0x2d0] sm:$0xff]
    %v4578 = vld [vmem:[%s6 + $0x2d8] sm:$0xff]
    %v4579 = vld [vmem:[%s6 + $0x2e0] sm:$0xff]
    %v4580 = vld [vmem:[%s6 + $0x2e8] sm:$0xff]
    %v4581 = vld [vmem:[%s6 + $0x2f0] sm:$0xff]
    %v4582 = vld [vmem:[%s6 + $0x2f8] sm:$0xff]
    %v4583 = vld [vmem:[%s6 + $0x300] sm:$0xff]
    %v4584 = vld [vmem:[%s6 + $0x308] sm:$0xff]
    %v4585 = vld [vmem:[%s6 + $0x310] sm:$0xff]
    %v4586 = vld [vmem:[%s6 + $0x318] sm:$0xff]
    %v4587 = vld [vmem:[%s6 + $0x320] sm:$0xff]
    %v4588 = vld [vmem:[%s6 + $0x328] sm:$0xff]
    %v4589 = vld [vmem:[%s6 + $0x330] sm:$0xff]
    %v4590 = vld [vmem:[%s6 + $0x338] sm:$0xff]
    %v4591 = vld [vmem:[%s6 + $0x340] sm:$0xff]
    %v4592 = vld [vmem:[%s6 + $0x348] sm:$0xff]
    %v4593 = vld [vmem:[%s6 + $0x350] sm:$0xff]
    %v4594 = vld [vmem:[%s6 + $0x358] sm:$0xff]
    %v4595 = vld [vmem:[%s6 + $0x360] sm:$0xff]
    %v4596 = vld [vmem:[%s6 + $0x368] sm:$0xff]
    %v4597 = vld [vmem:[%s6 + $0x370] sm:$0xff]
    %v4598 = vld [vmem:[%s6 + $0x378] sm:$0xff]
    %v4599 = vld [vmem:[%s6 + $0x380] sm:$0xff]
    %v4600 = vld [vmem:[%s6 + $0x388] sm:$0xff]
    %v4601 = vld [vmem:[%s6 + $0x390] sm:$0xff]
    %v4602 = vld [vmem:[%s6 + $0x398] sm:$0xff]
    %v4603 = vld [vmem:[%s6 + $0x3a0] sm:$0xff]
    %v4604 = vld [vmem:[%s6 + $0x3a8] sm:$0xff]
    %v4605 = vld [vmem:[%s6 + $0x3b0] sm:$0xff]
    %v4606 = vld [vmem:[%s6 + $0x3b8] sm:$0xff]
    %v4607 = vld [vmem:[%s6 + $0x3c0] sm:$0xff]
    %v4608 = vld [vmem:[%s6 + $0x3c8] sm:$0xff]
    %v4609 = vld [vmem:[%s6 + $0x3d0] sm:$0xff]
    %v4610 = vld [vmem:[%s6 + $0x3d8] sm:$0xff]
    %v4611 = vld [vmem:[%s6 + $0x3e0] sm:$0xf]
    %v4612 = vld [vmem:[%s6 + $0x3e8] sm:$0xf]
    %s4613 = scalar_lea.vmem %s6, 1008
    %v4614 = vld [vmem:[%s4613] ss:$8 sm:$0x3]
    %v4616 = vlaneseq
    %v4617 = vshrl.u32 %v4616, 7
    %v4618 = vsub.s32 0, %v4617
    %v4619 = vrot.slane %v4614, %v4618
    %v4620 = vlaneseq
    %v4621 = vshrl.u32 %v4620, 7
    %v4622 = vsub.s32 1, %v4621
    %v4623 = vrot.slane %v4614, %v4622
    %vm4626 = vcmask 949248
    %v4628 = vsel %vm4626, %v4486, 0
    %v4631 = vsel %vm1487, %v4611, 0
    %v4634 = vsel %vm1487, %v4612, 0
    %4636 = vmatprep.subr.mxu0 %v4488
    %4637 = vmatpush1.msra.mxu0 %v4487
    %4638 = vmatprep.subr.mxu0 %v4490
    %4639 = vmatpush1.msra.mxu0 %v4489
    %4640 = vmatprep.subr.mxu0 %v4492
    %4641 = vmatpush1.msra.mxu0 %v4491
    %4642 = vmatprep.subr.mxu0 %v4494
    %4643 = vmatpush1.msra.mxu0 %v4493
    %4644 = vmatprep.subr.mxu0 %v4496
    %4645 = vmatpush1.msra.mxu0 %v4495
    %4646 = vmatprep.subr.mxu0 %v4498
    %4647 = vmatpush1.msra.mxu0 %v4497
    %4648 = vmatprep.subr.mxu0 %v4500
    %4649 = vmatpush1.msra.mxu0 %v4499
    %4650 = vmatprep.subr.mxu0 %v4502
    %4651 = vmatpush1.msra.mxu0 %v4501
    %4652 = vmatprep.subr.mxu0 %v4504
    %4653 = vmatpush1.msra.mxu0 %v4503
    %4654 = vmatprep.subr.mxu0 %v4506
    %4655 = vmatpush1.msra.mxu0 %v4505
    %4656 = vmatprep.subr.mxu0 %v4508
    %4657 = vmatpush1.msra.mxu0 %v4507
    %4658 = vmatprep.subr.mxu0 %v4510
    %4659 = vmatpush1.msra.mxu0 %v4509
    %4660 = vmatprep.subr.mxu0 %v4512
    %4661 = vmatpush1.msra.mxu0 %v4511
    %4662 = vmatprep.subr.mxu0 %v4514
    %4663 = vmatpush1.msra.mxu0 %v4513
    %4664 = vmatprep.subr.mxu0 %v4516
    %4665 = vmatpush1.msra.mxu0 %v4515
    %4666 = vmatprep.subr.mxu0 %v4518
    %4667 = vmatpush1.msra.mxu0 %v4517
    %4668 = vmatprep.subr.mxu0 %v4520
    %4669 = vmatpush1.msra.mxu0 %v4519
    %4670 = vmatprep.subr.mxu0 %v4522
    %4671 = vmatpush1.msra.mxu0 %v4521
    %4672 = vmatprep.subr.mxu0 %v4524
    %4673 = vmatpush1.msra.mxu0 %v4523
    %4674 = vmatprep.subr.mxu0 %v4526
    %4675 = vmatpush1.msra.mxu0 %v4525
    %4676 = vmatprep.subr.mxu0 %v4528
    %4677 = vmatpush1.msra.mxu0 %v4527
    %4678 = vmatprep.subr.mxu0 %v4530
    %4679 = vmatpush1.msra.mxu0 %v4529
    %4680 = vmatprep.subr.mxu0 %v4532
    %4681 = vmatpush1.msra.mxu0 %v4531
    %4682 = vmatprep.subr.mxu0 %v4534
    %4683 = vmatpush1.msra.mxu0 %v4533
    %4684 = vmatprep.subr.mxu0 %v4536
    %4685 = vmatpush1.msra.mxu0 %v4535
    %4686 = vmatprep.subr.mxu0 %v4538
    %4687 = vmatpush1.msra.mxu0 %v4537
    %4688 = vmatprep.subr.mxu0 %v4540
    %4689 = vmatpush1.msra.mxu0 %v4539
    %4690 = vmatprep.subr.mxu0 %v4542
    %4691 = vmatpush1.msra.mxu0 %v4541
    %4692 = vmatprep.subr.mxu0 %v4544
    %4693 = vmatpush1.msra.mxu0 %v4543
    %4694 = vmatprep.subr.mxu0 %v4546
    %4695 = vmatpush1.msra.mxu0 %v4545
    %4696 = vmatprep.subr.mxu0 %v4548
    %4697 = vmatpush1.msra.mxu0 %v4547
    %4698 = vmatprep.subr.mxu0 %v4550
    %4699 = vmatpush1.msra.mxu0 %v4549
    %4700 = vmatprep.mubr.f32.mxu0 %v4484
    %4701 = vmatmul.mubr.f32.gmra.mrb[0].mxu0 %v4483
    %v4702 = vpop.f32.mrb[0].mxu0
    %v4703 = vadd.f32 %v4619, %v4702
    %v4704 = vpop.f32.mrb[0].mxu0
    %v4705 = vadd.f32 %v4623, %v4704
    %4706 = vdwg.mxu0
    %4707 = vmatprep.subr.mxu0 %v4552
    %4708 = vmatpush1.msra.mxu0 %v4551
    %4709 = vmatprep.subr.mxu0 %v4554
    %4710 = vmatpush1.msra.mxu0 %v4553
    %4711 = vmatprep.subr.mxu0 %v4556
    %4712 = vmatpush1.msra.mxu0 %v4555
    %4713 = vmatprep.subr.mxu0 %v4558
    %4714 = vmatpush1.msra.mxu0 %v4557
    %4715 = vmatprep.subr.mxu0 %v4560
    %4716 = vmatpush1.msra.mxu0 %v4559
    %4717 = vmatprep.subr.mxu0 %v4562
    %4718 = vmatpush1.msra.mxu0 %v4561
    %4719 = vmatprep.subr.mxu0 %v4564
    %4720 = vmatpush1.msra.mxu0 %v4563
    %4721 = vmatprep.subr.mxu0 %v4566
    %4722 = vmatpush1.msra.mxu0 %v4565
    %4723 = vmatprep.subr.mxu0 %v4568
    %4724 = vmatpush1.msra.mxu0 %v4567
    %4725 = vmatprep.subr.mxu0 %v4570
    %4726 = vmatpush1.msra.mxu0 %v4569
    %4727 = vmatprep.subr.mxu0 %v4572
    %4728 = vmatpush1.msra.mxu0 %v4571
    %4729 = vmatprep.subr.mxu0 %v4574
    %4730 = vmatpush1.msra.mxu0 %v4573
    %4731 = vmatprep.subr.mxu0 %v4576
    %4732 = vmatpush1.msra.mxu0 %v4575
    %4733 = vmatprep.subr.mxu0 %v4578
    %4734 = vmatpush1.msra.mxu0 %v4577
    %4735 = vmatprep.subr.mxu0 %v4580
    %4736 = vmatpush1.msra.mxu0 %v4579
    %4737 = vmatprep.subr.mxu0 %v4582
    %4738 = vmatpush1.msra.mxu0 %v4581
    %4739 = vmatprep.subr.mxu0 %v4584
    %4740 = vmatpush1.msra.mxu0 %v4583
    %4741 = vmatprep.subr.mxu0 %v4586
    %4742 = vmatpush1.msra.mxu0 %v4585
    %4743 = vmatprep.subr.mxu0 %v4588
    %4744 = vmatpush1.msra.mxu0 %v4587
    %4745 = vmatprep.subr.mxu0 %v4590
    %4746 = vmatpush1.msra.mxu0 %v4589
    %4747 = vmatprep.subr.mxu0 %v4592
    %4748 = vmatpush1.msra.mxu0 %v4591
    %4749 = vmatprep.subr.mxu0 %v4594
    %4750 = vmatpush1.msra.mxu0 %v4593
    %4751 = vmatprep.subr.mxu0 %v4596
    %4752 = vmatpush1.msra.mxu0 %v4595
    %4753 = vmatprep.subr.mxu0 %v4598
    %4754 = vmatpush1.msra.mxu0 %v4597
    %4755 = vmatprep.subr.mxu0 %v4600
    %4756 = vmatpush1.msra.mxu0 %v4599
    %4757 = vmatprep.subr.mxu0 %v4602
    %4758 = vmatpush1.msra.mxu0 %v4601
    %4759 = vmatprep.subr.mxu0 %v4604
    %4760 = vmatpush1.msra.mxu0 %v4603
    %4761 = vmatprep.subr.mxu0 %v4606
    %4762 = vmatpush1.msra.mxu0 %v4605
    %4763 = vmatprep.subr.mxu0 %v4608
    %4764 = vmatpush1.msra.mxu0 %v4607
    %4765 = vmatprep.subr.mxu0 %v4610
    %4766 = vmatpush1.msra.mxu0 %v4609
    %4767 = vmatprep.subr.mxu0 %v4634
    %4768 = vmatpush1.msra.mxu0 %v4631
    %4769 = vmatprep.subr.mxu0 0.0
    %4770 = vmatpush1.msra.mxu0 0.0
    %4771 = vmatprep.mubr.f32.mxu0 %v4628
    %4772 = vmatmul.mubr.f32.gmra.mrb[0].mxu0 %v4485
    %v4773 = vpop.f32.mrb[0].mxu0
    %v4774 = vadd.f32 %v4703, %v4773
    %v4775 = vpop.f32.mrb[0].mxu0
    %v4776 = vadd.f32 %v4705, %v4775
    %4777 = vdwg.mxu0
    %v4778 = vmax.f32 %v4774, 0.0
    %v4779 = vmax.f32 %v4776, 0.0
    %v4780 = vld [vmem:[%s7] sm:$0xff]
    %v4781 = vld [vmem:[%s7 + $0x8] sm:$0xff]
    %v4782 = vld [vmem:[%s7 + $0x10] sm:$0xff]
    %v4783 = vld [vmem:[%s7 + $0x18] sm:$0xff]
    %v4784 = vld [vmem:[%s7 + $0x20] sm:$0xff]
    %v4785 = vld [vmem:[%s7 + $0x28] sm:$0xff]
    %v4786 = vld [vmem:[%s7 + $0x30] sm:$0xff]
    %v4787 = vld [vmem:[%s7 + $0x38] sm:$0xff]
    %v4788 = vld [vmem:[%s7 + $0x40] sm:$0xff]
    %v4789 = vld [vmem:[%s7 + $0x48] sm:$0xff]
    %v4790 = vld [vmem:[%s7 + $0x50] sm:$0xff]
    %v4791 = vld [vmem:[%s7 + $0x58] sm:$0xff]
    %v4792 = vld [vmem:[%s7 + $0x60] sm:$0xff]
    %v4793 = vld [vmem:[%s7 + $0x68] sm:$0xff]
    %v4794 = vld [vmem:[%s7 + $0x70] sm:$0xff]
    %v4795 = vld [vmem:[%s7 + $0x78] sm:$0xff]
    %v4796 = vld [vmem:[%s7 + $0x80] sm:$0xff]
    %v4797 = vld [vmem:[%s7 + $0x88] sm:$0xff]
    %v4798 = vld [vmem:[%s7 + $0x90] sm:$0xff]
    %v4799 = vld [vmem:[%s7 + $0x98] sm:$0xff]
    %v4800 = vld [vmem:[%s7 + $0xa0] sm:$0xff]
    %v4801 = vld [vmem:[%s7 + $0xa8] sm:$0xff]
    %v4802 = vld [vmem:[%s7 + $0xb0] sm:$0xff]
    %v4803 = vld [vmem:[%s7 + $0xb8] sm:$0xff]
    %v4804 = vld [vmem:[%s7 + $0xc0] sm:$0xff]
    %v4805 = vld [vmem:[%s7 + $0xc8] sm:$0xff]
    %v4806 = vld [vmem:[%s7 + $0xd0] sm:$0xff]
    %v4807 = vld [vmem:[%s7 + $0xd8] sm:$0xff]
    %v4808 = vld [vmem:[%s7 + $0xe0] sm:$0xff]
    %v4809 = vld [vmem:[%s7 + $0xe8] sm:$0xff]
    %v4810 = vld [vmem:[%s7 + $0xf0] sm:$0xff]
    %v4811 = vld [vmem:[%s7 + $0xf8] sm:$0x3]
    %v4812 = vld [vmem:[%s7 + $0x100] sm:$0x1]
    %v4813 = vlaneseq
    %v4814 = vshrl.u32 %v4813, 7
    %v4815 = vsub.s32 0, %v4814
    %v4816 = vrot.slane %v4812, %v4815
    %vm4817 = vcmask 998400
    %v4819 = vsel %vm4817, %v4779, 0
    %v4822 = vsel %vm4328, %v4811, 0
    %4824 = vmatprep.subr.mxu0 0.0
    %4825 = vmatpush1.msra.mxu0 %v4780
    %4826 = vmatprep.subr.mxu0 0.0
    %4827 = vmatpush1.msra.mxu0 %v4781
    %4828 = vmatprep.subr.mxu0 0.0
    %4829 = vmatpush1.msra.mxu0 %v4782
    %4830 = vmatprep.subr.mxu0 0.0
    %4831 = vmatpush1.msra.mxu0 %v4783
    %4832 = vmatprep.subr.mxu0 0.0
    %4833 = vmatpush1.msra.mxu0 %v4784
    %4834 = vmatprep.subr.mxu0 0.0
    %4835 = vmatpush1.msra.mxu0 %v4785
    %4836 = vmatprep.subr.mxu0 0.0
    %4837 = vmatpush1.msra.mxu0 %v4786
    %4838 = vmatprep.subr.mxu0 0.0
    %4839 = vmatpush1.msra.mxu0 %v4787
    %4840 = vmatprep.subr.mxu0 0.0
    %4841 = vmatpush1.msra.mxu0 %v4788
    %4842 = vmatprep.subr.mxu0 0.0
    %4843 = vmatpush1.msra.mxu0 %v4789
    %4844 = vmatprep.subr.mxu0 0.0
    %4845 = vmatpush1.msra.mxu0 %v4790
    %4846 = vmatprep.subr.mxu0 0.0
    %4847 = vmatpush1.msra.mxu0 %v4791
    %4848 = vmatprep.subr.mxu0 0.0
    %4849 = vmatpush1.msra.mxu0 %v4792
    %4850 = vmatprep.subr.mxu0 0.0
    %4851 = vmatpush1.msra.mxu0 %v4793
    %4852 = vmatprep.subr.mxu0 0.0
    %4853 = vmatpush1.msra.mxu0 %v4794
    %4854 = vmatprep.subr.mxu0 0.0
    %4855 = vmatpush1.msra.mxu0 %v4795
    %4856 = vmatprep.subr.mxu0 0.0
    %4857 = vmatpush1.msra.mxu0 %v4796
    %4858 = vmatprep.subr.mxu0 0.0
    %4859 = vmatpush1.msra.mxu0 %v4797
    %4860 = vmatprep.subr.mxu0 0.0
    %4861 = vmatpush1.msra.mxu0 %v4798
    %4862 = vmatprep.subr.mxu0 0.0
    %4863 = vmatpush1.msra.mxu0 %v4799
    %4864 = vmatprep.subr.mxu0 0.0
    %4865 = vmatpush1.msra.mxu0 %v4800
    %4866 = vmatprep.subr.mxu0 0.0
    %4867 = vmatpush1.msra.mxu0 %v4801
    %4868 = vmatprep.subr.mxu0 0.0
    %4869 = vmatpush1.msra.mxu0 %v4802
    %4870 = vmatprep.subr.mxu0 0.0
    %4871 = vmatpush1.msra.mxu0 %v4803
    %4872 = vmatprep.subr.mxu0 0.0
    %4873 = vmatpush1.msra.mxu0 %v4804
    %4874 = vmatprep.subr.mxu0 0.0
    %4875 = vmatpush1.msra.mxu0 %v4805
    %4876 = vmatprep.subr.mxu0 0.0
    %4877 = vmatpush1.msra.mxu0 %v4806
    %4878 = vmatprep.subr.mxu0 0.0
    %4879 = vmatpush1.msra.mxu0 %v4807
    %4880 = vmatprep.subr.mxu0 0.0
    %4881 = vmatpush1.msra.mxu0 %v4808
    %4882 = vmatprep.subr.mxu0 0.0
    %4883 = vmatpush1.msra.mxu0 %v4809
    %4884 = vmatprep.subr.mxu0 0.0
    %4885 = vmatpush1.msra.mxu0 %v4810
    %4886 = vmatprep.subr.mxu0 0.0
    %4887 = vmatpush1.msra.mxu0 %v4822
    %4888 = vmatprep.mubr.f32.mxu0 %v4819
    %4889 = vmatmul.mubr.f32.gmra.mrb[0].mxu0 %v4778
    %v4890 = vpop.f32.mrb[0].mxu0
    %v4891 = vadd.f32 %v4816, %v4890
    %v4892 = vpop.f32.mrb[0].mxu0
    %4893 = vdwg.mxu0
    %4894 = vst [vmem:[#allocation2] sm:$0x3] %v4891
    // Predicated region
    $region34: #{pallas_forward.1} parent=1 // pred_check
      _
    $region35: #{pallas_forward.1} parent=1 // pred_check_branch
      %4896 = sbr.rel (0) target = $region37
    $region36: #{pallas_forward.1} parent=1 // pred_region
      %s4898 = ssub.s32 32, 32
      %4899 = vsyncadd [#allocation3], %s4898
      %s4901 = sshll.u32 [#allocation2], 4
      %s4902 = int_to_ptr.vmem [resolvable:$true] %s4901
      %4904 = dma.vmem_to_hbm [thread:$0]  %s4902, 32, %s8, [#allocation3]
    $region37: #{pallas_forward.1} parent=1 // pred_fallthru
      _
    // Predicated region
    $region38: #{pallas_forward.1} parent=1 // pred_check
      _
    $region39: #{pallas_forward.1} parent=1 // pred_check_branch
      %4906 = sbr.rel (0) target = $region41
    $region40: #{pallas_forward.1} parent=1 // pred_region
      %4907 = dma.done [#allocation3], 32
    $region41: #{pallas_forward.1} parent=1 // pred_fallthru
      _
    %4908 = vsyncpa [#allocation3], 1

</llo_original>
